<compile_context>
chip_gen: v6e
topology: v6e:2x2x1
jax: 0.10.0
libtpu: 0.0.40
codegen_flags: <defaults>
</compile_context>

<pallas_src>
import functools
import math
import numpy as np
import jax
import jax.numpy as jnp
from jax import lax
from jax.experimental import pallas as pl
from jax.experimental.pallas import tpu as pltpu

# ----------------------------- configuration ------------------------------
C_IN = 64            # in_channels
HIDDEN = 512         # node_cls_middle hidden width
NUM_CLASSES = 8      # cfg.MODEL.ROI_HEADS.NUM_CLASSES
CLS_PAD = 128        # classifier logits padded to a full lane group
LN_EPS = 1e-5        # nn.LayerNorm default eps
IN_EPS = 1e-5        # nn.InstanceNorm2d default eps
SINKHORN_ITERS = 20
WEIGHT_NODES = 0.1
WEIGHT_MATCHING = 0.1

# fused Q/K/V layout inside one 384-wide column group (128-lane aligned)
QKV_W = 384
QKV_K_OFF = 128
QKV_V_OFF = 256

# big weight slab (64 rows, bf16) column offsets
COL_QKV_I = 0                       # intra  q|k|v  : 0..384
COL_QKV_C = 384                     # cross  q|k|v  : 384..768
COL_WO_I = 768                      # intra  out-proj
COL_WO_C = 896                      # cross  out-proj
COL_ASYM = 1024                     # (A + A^T)/2
COL_W1 = 1152                       # classifier first linear (64 -> 512)
W_COLS = 1664

# row-vector slab (f32) row indices
ROW_BQKV_I, ROW_BQKV_C = 0, 1
ROW_BO_I, ROW_BO_C = 2, 3
ROW_LNG_I, ROW_LNB_I = 4, 5
ROW_LNG_C, ROW_LNB_C = 6, 7
ROW_B1, ROW_B2 = 8, 9
VEC_ROWS, VEC_COLS = 16, 512

VMEM = pltpu.MemorySpace.VMEM
BF16 = jnp.bfloat16


# --------------------------------------------------------------------------
# Fused kernel: masked merged intra-MHA -> cross-MHA -> node CE loss ->
#               bilinear affinity + InstanceNorm + slack Sinkhorn(20, unrolled)
#               + TP/FP matching loss -> quadratic matching loss.
# --------------------------------------------------------------------------
def _gmodule_fused_kernel(n1, n2, x_ref, oh_ref, w_ref, w2_ref, vec_ref, out_ref):
    n = n1 + n2
    c = C_IN

    x = x_ref[...]                     # (n, c)     f32
    oh = oh_ref[...]                   # (n, 128)   f32
    w = w_ref[...]                     # (64, 1664) bf16
    vec = vec_ref[...]                 # (16, 512)  f32

    inv_sqrt_c = 1.0 / math.sqrt(c)

    def mha(xin, wqkv, bqkv, wo, bo, ln_g, ln_b, score_bias):
        # fused q|k|v projection (bf16 operands, f32 accumulation)
        qkv = jnp.dot(xin.astype(BF16), wqkv, preferred_element_type=jnp.float32) + bqkv
        q = qkv[:, 0:c]
        k = qkv[:, QKV_K_OFF:QKV_K_OFF + c]
        v = qkv[:, QKV_V_OFF:QKV_V_OFF + c]
        scores = lax.dot_general(q.astype(BF16), k.astype(BF16),
                                 (((1,), (1,)), ((), ())),
                                 preferred_element_type=jnp.float32) * inv_sqrt_c
        if score_bias is not None:
            scores = scores + score_bias
        scores = scores - jnp.max(scores, axis=-1, keepdims=True)
        e = jnp.exp(scores)
        attn = e * pl.reciprocal(jnp.sum(e, axis=-1, keepdims=True), approx=True)
        o = jnp.dot(attn.astype(BF16), v.astype(BF16),
                    preferred_element_type=jnp.float32)
        o = jnp.dot(o.astype(BF16), wo, preferred_element_type=jnp.float32) + bo
        y = o + xin                                    # residual
        mu = jnp.mean(y, axis=-1, keepdims=True)       # LayerNorm (affine), f32
        var = jnp.mean(jnp.square(y - mu), axis=-1, keepdims=True)
        y = (y - mu) * lax.rsqrt(var + LN_EPS)
        return y * ln_g + ln_b, attn

    # ---------- merged intra-domain MHA with block-diagonal mask ----------
    row = lax.broadcasted_iota(jnp.int32, (n, n), 0)
    col = lax.broadcasted_iota(jnp.int32, (n, n), 1)
    same_dom = jnp.logical_or(jnp.logical_and(row < n1, col < n1),
                              jnp.logical_and(row >= n1, col >= n1))
    block_bias = jnp.where(same_dom, 0.0, -1e30).astype(jnp.float32)

    g_intra, attn_intra = mha(
        x,
        w[:, COL_QKV_I:COL_QKV_I + QKV_W],
        vec[ROW_BQKV_I:ROW_BQKV_I + 1, 0:QKV_W],
        w[:, COL_WO_I:COL_WO_I + c],
        vec[ROW_BO_I:ROW_BO_I + 1, 0:c],
        vec[ROW_LNG_I:ROW_LNG_I + 1, 0:c],
        vec[ROW_LNB_I:ROW_LNB_I + 1, 0:c],
        block_bias)
    # off-diagonal blocks of attn_intra are exactly 0 -> these slices equal the
    # attention matrices of the two separate intra-domain calls.
    edges_s = attn_intra[0:n1, 0:n1]
    edges_t = attn_intra[n1:n, n1:n]

    # ------------- cross-domain MHA on the concatenated node set ----------
    g_enh, _ = mha(
        g_intra,
        w[:, COL_QKV_C:COL_QKV_C + QKV_W],
        vec[ROW_BQKV_C:ROW_BQKV_C + 1, 0:QKV_W],
        w[:, COL_WO_C:COL_WO_C + c],
        vec[ROW_BO_C:ROW_BO_C + 1, 0:c],
        vec[ROW_LNG_C:ROW_LNG_C + 1, 0:c],
        vec[ROW_LNB_C:ROW_LNB_C + 1, 0:c],
        None)

    # ---------------- node classification loss (CE, mean) -----------------
    h = jnp.dot(g_enh.astype(BF16), w[:, COL_W1:COL_W1 + HIDDEN],
                preferred_element_type=jnp.float32) + vec[ROW_B1:ROW_B1 + 1, 0:HIDDEN]
    h = jnp.maximum(h, 0.0)
    # padded classes carry a -1e30 bias -> vanish from the LSE
    logits = jnp.dot(h.astype(BF16), w2_ref[...],
                     preferred_element_type=jnp.float32) + vec[ROW_B2:ROW_B2 + 1, 0:CLS_PAD]
    lmax = jnp.max(logits, axis=-1, keepdims=True)
    lse = lmax + jnp.log(jnp.sum(jnp.exp(logits - lmax), axis=-1, keepdims=True))
    logp = logits - lse
    nll = jnp.sum(oh * logp, keepdims=True)                      # (1, 1)
    node_loss = -nll * (1.0 / float(n))

    # ------------- affinity -> InstanceNorm -> slack Sinkhorn -------------
    nodes_s_e = g_enh[0:n1, :]
    nodes_t_e = g_enh[n1:n, :]
    tmp = jnp.dot(nodes_s_e.astype(BF16), w[:, COL_ASYM:COL_ASYM + c],
                  preferred_element_type=jnp.float32)
    m = lax.dot_general(tmp.astype(BF16), nodes_t_e.astype(BF16),
                        (((1,), (1,)), ((), ())),
                        preferred_element_type=jnp.float32)      # (n1, n2)

    # InstanceNorm2d(1, affine=False): normalize over the whole matrix
    mu_m = jnp.mean(m, keepdims=True)
    var_m = jnp.mean(jnp.square(m - mu_m), keepdims=True)
    m = (m - mu_m) * lax.rsqrt(var_m + IN_EPS)

    # slack Sinkhorn.  In the ZeroPad2d reference the padded corner cell never
    # enters either normalisation, so keeping only the slack column u (real
    # rows) and slack row v (real cols) is exactly equivalent.
    u0 = jnp.zeros((n1, 1), jnp.float32)
    v0 = jnp.zeros((1, n2), jnp.float32)

    def sink_body(_, carry):
        mm, u, v = carry
        mr = jnp.maximum(jnp.max(mm, axis=1, keepdims=True), u)
        lse_r = mr + jnp.log(jnp.sum(jnp.exp(mm - mr), axis=1, keepdims=True)
                             + jnp.exp(u - mr))
        mm = mm - lse_r
        u = u - lse_r
        mc = jnp.maximum(jnp.max(mm, axis=0, keepdims=True), v)
        lse_c = mc + jnp.log(jnp.sum(jnp.exp(mm - mc), axis=0, keepdims=True)
                             + jnp.exp(v - mc))
        mm = mm - lse_c
        v = v - lse_c
        return (mm, u, v)

    m, _, _ = lax.fori_loop(0, SINKHORN_ITERS, sink_body, (m, u0, v0), unroll=True)
    m = jnp.exp(m)

    # matching_target = one_hot(labels_s) @ one_hot(labels_t)^T  (0/1 matrix)
    t = lax.dot_general(oh[0:n1, :].astype(BF16), oh[n1:n, :].astype(BF16),
                        (((1,), (1,)), ((), ())),
                        preferred_element_type=jnp.float32)
    tp_mask = (t == 1.0).astype(jnp.float32)
    fp_mask = (t == 0.0).astype(jnp.float32)

    # TP samples: M[i, argmax_j (M * TP_mask)[i, j]]  (first max, torch semantics)
    masked = m * tp_mask
    amax = jnp.max(masked, axis=-1, keepdims=True)
    colix = lax.broadcasted_iota(jnp.int32, (n1, n2), 1)
    first = jnp.min(jnp.where(masked == amax, colix, n2), axis=-1, keepdims=True)
    sel = (colix == first).astype(jnp.float32)
    tp_samples = jnp.sum(m * sel, axis=-1, keepdims=True)           # (n1, 1)

    # MSE(reduction='sum') / n1  and  MSE(reduction='sum') / sum(FP_samples)
    tp_loss = jnp.sum(jnp.square(tp_samples - 1.0), keepdims=True) * (1.0 / float(n1))
    fp_num = jnp.sum(jnp.square(m) * fp_mask, keepdims=True)
    # TODO(synk): eps guard differs from the reference (which would NaN when no FP entries exist).
    fp_den = jnp.maximum(jnp.sum(m * fp_mask, keepdims=True), 1e-12)
    aff_loss = tp_loss + fp_num * pl.reciprocal(fp_den, approx=True)

    # ----------------- quadratic matching loss  mean|E_s M - M E_t| -------
    mb = m.astype(BF16)
    r = (jnp.dot(edges_s.astype(BF16), mb, preferred_element_type=jnp.float32)
         - jnp.dot(mb, edges_t.astype(BF16), preferred_element_type=jnp.float32))
    qu_loss = jnp.sum(jnp.abs(r), keepdims=True) * (1.0 / float(n1 * n2))

    # ------------------ single packed (1, 128) loss output ----------------
    ocol = lax.broadcasted_iota(jnp.int32, (1, 128), 1)
    out = jnp.where(ocol == 0, node_loss,
                    jnp.where(ocol == 1, aff_loss,
                              jnp.where(ocol == 2, qu_loss, 0.0)))
    out_ref[...] = out.astype(jnp.float32)


@functools.partial(jax.jit, static_argnums=(0,))
def _fused_call(n1, x_all, oh_all, w_slab, w2_slab, vec_slab):
    n = x_all.shape[0]
    n2 = n - n1
    kernel = functools.partial(_gmodule_fused_kernel, n1, n2)
    out = pl.pallas_call(
        kernel,
        out_shape=jax.ShapeDtypeStruct((1, 128), jnp.float32),
        in_specs=[pl.BlockSpec(memory_space=VMEM)] * 5,
        out_specs=pl.BlockSpec(memory_space=VMEM),
        compiler_params=pltpu.CompilerParams(vmem_limit_bytes=16 * 1024 * 1024),
    )(x_all, oh_all, w_slab, w2_slab, vec_slab)
    return out[0, 0], out[0, 1], out[0, 2]


# --------------------------------------------------------------------------
# Parameter init: packed / precomputed slab forms built ONCE, wrapper side.
# --------------------------------------------------------------------------
def init_params(key):
    keys = jax.random.split(key, 8)

    def mha_weights(k):
        ks = jax.random.split(k, 4)
        wq, wk, wv, wo = [jax.random.normal(kk, (C_IN, C_IN), jnp.float32) * 0.02
                          for kk in ks]
        qkv = jnp.zeros((C_IN, QKV_W), jnp.float32)
        qkv = qkv.at[:, 0:C_IN].set(wq)
        qkv = qkv.at[:, QKV_K_OFF:QKV_K_OFF + C_IN].set(wk)
        qkv = qkv.at[:, QKV_V_OFF:QKV_V_OFF + C_IN].set(wv)
        return qkv, wo

    qkv_i, wo_i = mha_weights(keys[0])
    qkv_c, wo_c = mha_weights(keys[1])
    # node_cls_middle: Linear(C,512) -> ReLU -> Linear(512,K), std=0.01, bias=0
    w1 = jax.random.normal(keys[2], (C_IN, HIDDEN), jnp.float32) * 0.01
    w2 = jax.random.normal(keys[3], (HIDDEN, NUM_CLASSES), jnp.float32) * 0.01
    A = jax.random.normal(keys[4], (C_IN, C_IN), jnp.float32) * (1.0 / math.sqrt(C_IN))
    a_sym = 0.5 * (A + A.T)          # precomputed once (no in-kernel transpose)

    # ---- one (64, 1664) bf16 slab for all 64-row weights ----
    w_slab = jnp.zeros((C_IN, W_COLS), jnp.float32)
    w_slab = w_slab.at[:, COL_QKV_I:COL_QKV_I + QKV_W].set(qkv_i)
    w_slab = w_slab.at[:, COL_QKV_C:COL_QKV_C + QKV_W].set(qkv_c)
    w_slab = w_slab.at[:, COL_WO_I:COL_WO_I + C_IN].set(wo_i)
    w_slab = w_slab.at[:, COL_WO_C:COL_WO_C + C_IN].set(wo_c)
    w_slab = w_slab.at[:, COL_ASYM:COL_ASYM + C_IN].set(a_sym)
    w_slab = w_slab.at[:, COL_W1:COL_W1 + HIDDEN].set(w1)
    w_slab = w_slab.astype(BF16)

    # ---- classifier second linear padded to 128 output lanes ----
    w2_slab = (jnp.zeros((HIDDEN, CLS_PAD), jnp.float32)
               .at[:, 0:NUM_CLASSES].set(w2).astype(BF16))

    # ---- one (16, 512) f32 slab holding every 1-row bias / LN parameter ----
    vec = jnp.zeros((VEC_ROWS, VEC_COLS), jnp.float32)
    vec = vec.at[ROW_LNG_I, 0:C_IN].set(1.0)
    vec = vec.at[ROW_LNG_C, 0:C_IN].set(1.0)
    vec = vec.at[ROW_B2, NUM_CLASSES:CLS_PAD].set(-1e30)   # mask padded classes
    # (all linear biases are zero-init, matching the reference _init_weight)

    # TODO(synk): head_in_ln / supconloss / node_dis branches are constructed in
    # __init__ but unused in this forward path; parameters omitted.
    return {'w': w_slab, 'w2': w2_slab, 'vec': vec}


# --------------------------------------------------------------------------
# Forward orchestration. nodes_complete has a data-dependent OUTPUT SHAPE, so
# the "which classes are missing" decision is taken on host from the tiny
# integer label vector only; node features / centers stay on device.
# --------------------------------------------------------------------------
def gmodule_forward(params, features_s, labels_s, features_t, labels_t, center):
    labels_s = np.asarray(labels_s, dtype=np.int32)
    labels_t = np.asarray(labels_t, dtype=np.int32)

    present = set(labels_s.tolist())
    missing = [lab for lab in range(NUM_CLASSES) if lab not in present]

    xs = jnp.asarray(features_s, jnp.float32)
    if missing:
        # TODO(synk): data-dependent shape growth cannot live inside the kernel;
        # the (device-side) concat of the missing class-center rows stays in XLA.
        xs = jnp.concatenate(
            [xs, jnp.asarray(center, jnp.float32)[jnp.asarray(missing, jnp.int32)]],
            axis=0)
        labels_s = np.concatenate([labels_s, np.asarray(missing, dtype=np.int32)])
    xt = jnp.asarray(features_t, jnp.float32)

    n1 = int(xs.shape[0])
    x_all = jnp.concatenate([xs, xt], axis=0)
    labels_all = np.concatenate([labels_s, labels_t])
    # 128-wide one-hot (labels < 8) keeps CE / matching-target math lane-dense
    oh_all = jax.nn.one_hot(jnp.asarray(labels_all), CLS_PAD, dtype=jnp.float32)

    node_loss, aff_loss, qu_loss = _fused_call(
        n1, x_all, oh_all, params['w'], params['w2'], params['vec'])
    return {
        'loss_node': WEIGHT_NODES * node_loss,
        'loss_mat_aff': WEIGHT_MATCHING * aff_loss,
        'loss_mat_qu': qu_loss,
    }


if __name__ == "__main__":
    key = jax.random.PRNGKey(0)
    k_par, k_fs, k_ft, k_lt, k_c = jax.random.split(key, 5)

    params = init_params(k_par)

    # 6 labeled source nodes covering classes 0..5 -> classes 6,7 are completed
    # from `center`, giving N1 = 8; 16 target nodes; C = 64 channels; 8 classes.
    features_s = jax.random.normal(k_fs, (6, C_IN), jnp.float32)
    labels_s = np.array([0, 1, 2, 3, 4, 5], dtype=np.int32)
    features_t = jax.random.normal(k_ft, (16, C_IN), jnp.float32)
    labels_t = np.asarray(jax.random.randint(k_lt, (16,), 0, NUM_CLASSES),
                          dtype=np.int32)
    center = jax.random.normal(k_c, (NUM_CLASSES, C_IN), jnp.float32)

    losses = gmodule_forward(params, features_s, labels_s,
                             features_t, labels_t, center)
    for v in losses.values():
        jax.block_until_ready(v)
    assert all(bool(jnp.isfinite(v)) for v in losses.values())
    print("KERNEL_OK")
</pallas_src>

<mosaic_0001>
module attributes {stable_mosaic.version = 11 : i64} {
  func.func @_gmodule_fused_kernel(%arg0: memref<24x64xf32, #tpu.memory_space<vmem>>, %arg1: memref<24x128xf32, #tpu.memory_space<vmem>>, %arg2: memref<64x1664xbf16, #tpu.memory_space<vmem>>, %arg3: memref<512x128xbf16, #tpu.memory_space<vmem>>, %arg4: memref<16x512xf32, #tpu.memory_space<vmem>>, %arg5: memref<1x128xf32, #tpu.memory_space<vmem>>) attributes {dimension_semantics = [], scalar_prefetch = 0 : i64, scratch_operands = 0 : i64, tpu.core_type = #tpu.core_type<tc>} {
    %c0 = arith.constant 0 : index
    %c0_0 = arith.constant 0 : index
    %0 = vector.load %arg0[%c0, %c0_0] : memref<24x64xf32, #tpu.memory_space<vmem>>, vector<24x64xf32>
    %c0_1 = arith.constant 0 : index
    %c0_2 = arith.constant 0 : index
    %1 = vector.load %arg1[%c0_1, %c0_2] : memref<24x128xf32, #tpu.memory_space<vmem>>, vector<24x128xf32>
    %c0_3 = arith.constant 0 : index
    %c0_4 = arith.constant 0 : index
    %2 = vector.load %arg2[%c0_3, %c0_4] : memref<64x1664xbf16, #tpu.memory_space<vmem>>, vector<64x1664xbf16>
    %c0_5 = arith.constant 0 : index
    %c0_6 = arith.constant 0 : index
    %3 = vector.load %arg4[%c0_5, %c0_6] : memref<16x512xf32, #tpu.memory_space<vmem>>, vector<16x512xf32>
    %4 = tpu.iota {dimensions = array<i32: 0>} : vector<24x24xi32>
    %5 = tpu.iota {dimensions = array<i32: 1>} : vector<24x24xi32>
    %c8_i32 = arith.constant 8 : i32
    %6 = vector.broadcast %c8_i32 : i32 to vector<24x24xi32>
    %7 = arith.cmpi slt, %4, %6 : vector<24x24xi32>
    %c8_i32_7 = arith.constant 8 : i32
    %8 = vector.broadcast %c8_i32_7 : i32 to vector<24x24xi32>
    %9 = arith.cmpi slt, %5, %8 : vector<24x24xi32>
    %10 = arith.andi %7, %9 : vector<24x24xi1>
    %c8_i32_8 = arith.constant 8 : i32
    %11 = vector.broadcast %c8_i32_8 : i32 to vector<24x24xi32>
    %12 = arith.cmpi sge, %4, %11 : vector<24x24xi32>
    %c8_i32_9 = arith.constant 8 : i32
    %13 = vector.broadcast %c8_i32_9 : i32 to vector<24x24xi32>
    %14 = arith.cmpi sge, %5, %13 : vector<24x24xi32>
    %15 = arith.andi %12, %14 : vector<24x24xi1>
    %16 = arith.ori %10, %15 : vector<24x24xi1>
    %cst = arith.constant 0.000000e+00 : f32
    %cst_10 = arith.constant -1.000000e+30 : f32
    %17 = vector.broadcast %cst : f32 to vector<24x24xf32>
    %18 = vector.broadcast %cst_10 : f32 to vector<24x24xf32>
    %19 = arith.select %16, %17, %18 : vector<24x24xi1>, vector<24x24xf32>
    %20 = vector.extract_strided_slice %2 {offsets = [0, 0], sizes = [64, 384], strides = [1, 1]} : vector<64x1664xbf16> to vector<64x384xbf16>
    %21 = vector.extract_strided_slice %3 {offsets = [0, 0], sizes = [1, 384], strides = [1, 1]} : vector<16x512xf32> to vector<1x384xf32>
    %22 = vector.extract_strided_slice %2 {offsets = [0, 768], sizes = [64, 64], strides = [1, 1]} : vector<64x1664xbf16> to vector<64x64xbf16>
    %23 = vector.extract_strided_slice %3 {offsets = [2, 0], sizes = [1, 64], strides = [1, 1]} : vector<16x512xf32> to vector<1x64xf32>
    %24 = vector.extract_strided_slice %3 {offsets = [4, 0], sizes = [1, 64], strides = [1, 1]} : vector<16x512xf32> to vector<1x64xf32>
    %25 = vector.extract_strided_slice %3 {offsets = [5, 0], sizes = [1, 64], strides = [1, 1]} : vector<16x512xf32> to vector<1x64xf32>
    %26 = arith.truncf %0 : vector<24x64xf32> to vector<24x64xbf16>
    %cst_11 = arith.constant dense<0.000000e+00> : vector<24x384xf32>
    %27 = tpu.matmul %26, %20, %cst_11 {dimension_numbers = #tpu.dot_dimension_numbers<[1], [0], [0], [1], [0, 0, 1, 1], [], []>} : vector<24x64xbf16>, vector<64x384xbf16>, vector<24x384xf32> -> vector<24x384xf32>
    %28 = vector.broadcast %21 : vector<1x384xf32> to vector<24x384xf32>
    %29 = arith.addf %27, %28 : vector<24x384xf32>
    %30 = vector.extract_strided_slice %29 {offsets = [0, 0], sizes = [24, 64], strides = [1, 1]} : vector<24x384xf32> to vector<24x64xf32>
    %31 = vector.extract_strided_slice %29 {offsets = [0, 128], sizes = [24, 64], strides = [1, 1]} : vector<24x384xf32> to vector<24x64xf32>
    %32 = vector.extract_strided_slice %29 {offsets = [0, 256], sizes = [24, 64], strides = [1, 1]} : vector<24x384xf32> to vector<24x64xf32>
    %33 = arith.truncf %30 : vector<24x64xf32> to vector<24x64xbf16>
    %34 = arith.truncf %31 : vector<24x64xf32> to vector<24x64xbf16>
    %cst_12 = arith.constant dense<0.000000e+00> : vector<24x24xf32>
    %35 = tpu.matmul %33, %34, %cst_12 {dimension_numbers = #tpu.dot_dimension_numbers<[1], [1], [0], [0], [0, 0, 1, 0], [], []>} : vector<24x64xbf16>, vector<24x64xbf16>, vector<24x24xf32> -> vector<24x24xf32>
    %cst_13 = arith.constant 1.250000e-01 : f32
    %36 = vector.broadcast %cst_13 : f32 to vector<24x24xf32>
    %37 = arith.mulf %35, %36 : vector<24x24xf32>
    %38 = arith.addf %37, %19 : vector<24x24xf32>
    %cst_14 = arith.constant dense<0xFF800000> : vector<24xf32>
    %39 = vector.multi_reduction <maximumf>, %38, %cst_14 [1] : vector<24x24xf32> to vector<24xf32>
    %40 = vector.shape_cast %39 : vector<24xf32> to vector<24x1xf32>
    %41 = vector.broadcast %40 : vector<24x1xf32> to vector<24x24xf32>
    %42 = arith.subf %38, %41 : vector<24x24xf32>
    %43 = math.exp %42 : vector<24x24xf32>
    %cst_15 = arith.constant dense<0.000000e+00> : vector<24xf32>
    %44 = vector.multi_reduction <add>, %43, %cst_15 [1] : vector<24x24xf32> to vector<24xf32>
    %45 = vector.shape_cast %44 : vector<24xf32> to vector<24x1xf32>
    %46 = tpu.reciprocal %45 {approx = true} : vector<24x1xf32> -> vector<24x1xf32>
    %47 = vector.broadcast %46 : vector<24x1xf32> to vector<24x24xf32>
    %48 = arith.mulf %43, %47 : vector<24x24xf32>
    %49 = arith.truncf %48 : vector<24x24xf32> to vector<24x24xbf16>
    %50 = arith.truncf %32 : vector<24x64xf32> to vector<24x64xbf16>
    %cst_16 = arith.constant dense<0.000000e+00> : vector<24x64xf32>
    %51 = tpu.matmul %49, %50, %cst_16 {dimension_numbers = #tpu.dot_dimension_numbers<[1], [0], [0], [1], [0, 0, 1, 1], [], []>} : vector<24x24xbf16>, vector<24x64xbf16>, vector<24x64xf32> -> vector<24x64xf32>
    %52 = arith.truncf %51 : vector<24x64xf32> to vector<24x64xbf16>
    %cst_17 = arith.constant dense<0.000000e+00> : vector<24x64xf32>
    %53 = tpu.matmul %52, %22, %cst_17 {dimension_numbers = #tpu.dot_dimension_numbers<[1], [0], [0], [1], [0, 0, 1, 1], [], []>} : vector<24x64xbf16>, vector<64x64xbf16>, vector<24x64xf32> -> vector<24x64xf32>
    %54 = vector.broadcast %23 : vector<1x64xf32> to vector<24x64xf32>
    %55 = arith.addf %53, %54 : vector<24x64xf32>
    %56 = arith.addf %55, %0 : vector<24x64xf32>
    %cst_18 = arith.constant dense<0.000000e+00> : vector<24xf32>
    %57 = vector.multi_reduction <add>, %56, %cst_18 [1] : vector<24x64xf32> to vector<24xf32>
    %58 = vector.shape_cast %57 : vector<24xf32> to vector<24x1xf32>
    %cst_19 = arith.constant 6.400000e+01 : f32
    %59 = vector.broadcast %cst_19 : f32 to vector<24x1xf32>
    %60 = arith.divf %58, %59 : vector<24x1xf32>
    %61 = vector.broadcast %60 : vector<24x1xf32> to vector<24x64xf32>
    %62 = arith.subf %56, %61 : vector<24x64xf32>
    %63 = arith.mulf %62, %62 : vector<24x64xf32>
    %cst_20 = arith.constant dense<0.000000e+00> : vector<24xf32>
    %64 = vector.multi_reduction <add>, %63, %cst_20 [1] : vector<24x64xf32> to vector<24xf32>
    %65 = vector.shape_cast %64 : vector<24xf32> to vector<24x1xf32>
    %cst_21 = arith.constant 6.400000e+01 : f32
    %66 = vector.broadcast %cst_21 : f32 to vector<24x1xf32>
    %67 = arith.divf %65, %66 : vector<24x1xf32>
    %68 = vector.broadcast %60 : vector<24x1xf32> to vector<24x64xf32>
    %69 = arith.subf %56, %68 : vector<24x64xf32>
    %cst_22 = arith.constant 9.99999974E-6 : f32
    %70 = vector.broadcast %cst_22 : f32 to vector<24x1xf32>
    %71 = arith.addf %67, %70 : vector<24x1xf32>
    %72 = math.rsqrt %71 : vector<24x1xf32>
    %73 = vector.broadcast %72 : vector<24x1xf32> to vector<24x64xf32>
    %74 = arith.mulf %69, %73 : vector<24x64xf32>
    %75 = vector.broadcast %24 : vector<1x64xf32> to vector<24x64xf32>
    %76 = arith.mulf %74, %75 : vector<24x64xf32>
    %77 = vector.broadcast %25 : vector<1x64xf32> to vector<24x64xf32>
    %78 = arith.addf %76, %77 : vector<24x64xf32>
    %79 = vector.extract_strided_slice %48 {offsets = [0, 0], sizes = [8, 8], strides = [1, 1]} : vector<24x24xf32> to vector<8x8xf32>
    %80 = vector.extract_strided_slice %48 {offsets = [8, 8], sizes = [16, 16], strides = [1, 1]} : vector<24x24xf32> to vector<16x16xf32>
    %81 = vector.extract_strided_slice %2 {offsets = [0, 384], sizes = [64, 384], strides = [1, 1]} : vector<64x1664xbf16> to vector<64x384xbf16>
    %82 = vector.extract_strided_slice %3 {offsets = [1, 0], sizes = [1, 384], strides = [1, 1]} : vector<16x512xf32> to vector<1x384xf32>
    %83 = vector.extract_strided_slice %2 {offsets = [0, 896], sizes = [64, 64], strides = [1, 1]} : vector<64x1664xbf16> to vector<64x64xbf16>
    %84 = vector.extract_strided_slice %3 {offsets = [3, 0], sizes = [1, 64], strides = [1, 1]} : vector<16x512xf32> to vector<1x64xf32>
    %85 = vector.extract_strided_slice %3 {offsets = [6, 0], sizes = [1, 64], strides = [1, 1]} : vector<16x512xf32> to vector<1x64xf32>
    %86 = vector.extract_strided_slice %3 {offsets = [7, 0], sizes = [1, 64], strides = [1, 1]} : vector<16x512xf32> to vector<1x64xf32>
    %87 = arith.truncf %78 : vector<24x64xf32> to vector<24x64xbf16>
    %cst_23 = arith.constant dense<0.000000e+00> : vector<24x384xf32>
    %88 = tpu.matmul %87, %81, %cst_23 {dimension_numbers = #tpu.dot_dimension_numbers<[1], [0], [0], [1], [0, 0, 1, 1], [], []>} : vector<24x64xbf16>, vector<64x384xbf16>, vector<24x384xf32> -> vector<24x384xf32>
    %89 = vector.broadcast %82 : vector<1x384xf32> to vector<24x384xf32>
    %90 = arith.addf %88, %89 : vector<24x384xf32>
    %91 = vector.extract_strided_slice %90 {offsets = [0, 0], sizes = [24, 64], strides = [1, 1]} : vector<24x384xf32> to vector<24x64xf32>
    %92 = vector.extract_strided_slice %90 {offsets = [0, 128], sizes = [24, 64], strides = [1, 1]} : vector<24x384xf32> to vector<24x64xf32>
    %93 = vector.extract_strided_slice %90 {offsets = [0, 256], sizes = [24, 64], strides = [1, 1]} : vector<24x384xf32> to vector<24x64xf32>
    %94 = arith.truncf %91 : vector<24x64xf32> to vector<24x64xbf16>
    %95 = arith.truncf %92 : vector<24x64xf32> to vector<24x64xbf16>
    %cst_24 = arith.constant dense<0.000000e+00> : vector<24x24xf32>
    %96 = tpu.matmul %94, %95, %cst_24 {dimension_numbers = #tpu.dot_dimension_numbers<[1], [1], [0], [0], [0, 0, 1, 0], [], []>} : vector<24x64xbf16>, vector<24x64xbf16>, vector<24x24xf32> -> vector<24x24xf32>
    %cst_25 = arith.constant 1.250000e-01 : f32
    %97 = vector.broadcast %cst_25 : f32 to vector<24x24xf32>
    %98 = arith.mulf %96, %97 : vector<24x24xf32>
    %cst_26 = arith.constant dense<0xFF800000> : vector<24xf32>
    %99 = vector.multi_reduction <maximumf>, %98, %cst_26 [1] : vector<24x24xf32> to vector<24xf32>
    %100 = vector.shape_cast %99 : vector<24xf32> to vector<24x1xf32>
    %101 = vector.broadcast %100 : vector<24x1xf32> to vector<24x24xf32>
    %102 = arith.subf %98, %101 : vector<24x24xf32>
    %103 = math.exp %102 : vector<24x24xf32>
    %cst_27 = arith.constant dense<0.000000e+00> : vector<24xf32>
    %104 = vector.multi_reduction <add>, %103, %cst_27 [1] : vector<24x24xf32> to vector<24xf32>
    %105 = vector.shape_cast %104 : vector<24xf32> to vector<24x1xf32>
    %106 = tpu.reciprocal %105 {approx = true} : vector<24x1xf32> -> vector<24x1xf32>
    %107 = vector.broadcast %106 : vector<24x1xf32> to vector<24x24xf32>
    %108 = arith.mulf %103, %107 : vector<24x24xf32>
    %109 = arith.truncf %108 : vector<24x24xf32> to vector<24x24xbf16>
    %110 = arith.truncf %93 : vector<24x64xf32> to vector<24x64xbf16>
    %cst_28 = arith.constant dense<0.000000e+00> : vector<24x64xf32>
    %111 = tpu.matmul %109, %110, %cst_28 {dimension_numbers = #tpu.dot_dimension_numbers<[1], [0], [0], [1], [0, 0, 1, 1], [], []>} : vector<24x24xbf16>, vector<24x64xbf16>, vector<24x64xf32> -> vector<24x64xf32>
    %112 = arith.truncf %111 : vector<24x64xf32> to vector<24x64xbf16>
    %cst_29 = arith.constant dense<0.000000e+00> : vector<24x64xf32>
    %113 = tpu.matmul %112, %83, %cst_29 {dimension_numbers = #tpu.dot_dimension_numbers<[1], [0], [0], [1], [0, 0, 1, 1], [], []>} : vector<24x64xbf16>, vector<64x64xbf16>, vector<24x64xf32> -> vector<24x64xf32>
    %114 = vector.broadcast %84 : vector<1x64xf32> to vector<24x64xf32>
    %115 = arith.addf %113, %114 : vector<24x64xf32>
    %116 = arith.addf %115, %78 : vector<24x64xf32>
    %cst_30 = arith.constant dense<0.000000e+00> : vector<24xf32>
    %117 = vector.multi_reduction <add>, %116, %cst_30 [1] : vector<24x64xf32> to vector<24xf32>
    %118 = vector.shape_cast %117 : vector<24xf32> to vector<24x1xf32>
    %cst_31 = arith.constant 6.400000e+01 : f32
    %119 = vector.broadcast %cst_31 : f32 to vector<24x1xf32>
    %120 = arith.divf %118, %119 : vector<24x1xf32>
    %121 = vector.broadcast %120 : vector<24x1xf32> to vector<24x64xf32>
    %122 = arith.subf %116, %121 : vector<24x64xf32>
    %123 = arith.mulf %122, %122 : vector<24x64xf32>
    %cst_32 = arith.constant dense<0.000000e+00> : vector<24xf32>
    %124 = vector.multi_reduction <add>, %123, %cst_32 [1] : vector<24x64xf32> to vector<24xf32>
    %125 = vector.shape_cast %124 : vector<24xf32> to vector<24x1xf32>
    %cst_33 = arith.constant 6.400000e+01 : f32
    %126 = vector.broadcast %cst_33 : f32 to vector<24x1xf32>
    %127 = arith.divf %125, %126 : vector<24x1xf32>
    %128 = vector.broadcast %120 : vector<24x1xf32> to vector<24x64xf32>
    %129 = arith.subf %116, %128 : vector<24x64xf32>
    %cst_34 = arith.constant 9.99999974E-6 : f32
    %130 = vector.broadcast %cst_34 : f32 to vector<24x1xf32>
    %131 = arith.addf %127, %130 : vector<24x1xf32>
    %132 = math.rsqrt %131 : vector<24x1xf32>
    %133 = vector.broadcast %132 : vector<24x1xf32> to vector<24x64xf32>
    %134 = arith.mulf %129, %133 : vector<24x64xf32>
    %135 = vector.broadcast %85 : vector<1x64xf32> to vector<24x64xf32>
    %136 = arith.mulf %134, %135 : vector<24x64xf32>
    %137 = vector.broadcast %86 : vector<1x64xf32> to vector<24x64xf32>
    %138 = arith.addf %136, %137 : vector<24x64xf32>
    %139 = arith.truncf %138 : vector<24x64xf32> to vector<24x64xbf16>
    %140 = vector.extract_strided_slice %2 {offsets = [0, 1152], sizes = [64, 512], strides = [1, 1]} : vector<64x1664xbf16> to vector<64x512xbf16>
    %cst_35 = arith.constant dense<0.000000e+00> : vector<24x512xf32>
    %141 = tpu.matmul %139, %140, %cst_35 {dimension_numbers = #tpu.dot_dimension_numbers<[1], [0], [0], [1], [0, 0, 1, 1], [], []>} : vector<24x64xbf16>, vector<64x512xbf16>, vector<24x512xf32> -> vector<24x512xf32>
    %142 = vector.extract_strided_slice %3 {offsets = [8, 0], sizes = [1, 512], strides = [1, 1]} : vector<16x512xf32> to vector<1x512xf32>
    %143 = vector.broadcast %142 : vector<1x512xf32> to vector<24x512xf32>
    %144 = arith.addf %141, %143 : vector<24x512xf32>
    %cst_36 = arith.constant 0.000000e+00 : f32
    %145 = vector.broadcast %cst_36 : f32 to vector<24x512xf32>
    %146 = arith.maximumf %144, %145 : vector<24x512xf32>
    %147 = arith.truncf %146 : vector<24x512xf32> to vector<24x512xbf16>
    %c0_37 = arith.constant 0 : index
    %c0_38 = arith.constant 0 : index
    %148 = vector.load %arg3[%c0_37, %c0_38] : memref<512x128xbf16, #tpu.memory_space<vmem>>, vector<512x128xbf16>
    %cst_39 = arith.constant dense<0.000000e+00> : vector<24x128xf32>
    %149 = tpu.matmul %147, %148, %cst_39 {dimension_numbers = #tpu.dot_dimension_numbers<[1], [0], [0], [1], [0, 0, 1, 1], [], []>} : vector<24x512xbf16>, vector<512x128xbf16>, vector<24x128xf32> -> vector<24x128xf32>
    %150 = vector.extract_strided_slice %3 {offsets = [9, 0], sizes = [1, 128], strides = [1, 1]} : vector<16x512xf32> to vector<1x128xf32>
    %151 = vector.broadcast %150 : vector<1x128xf32> to vector<24x128xf32>
    %152 = arith.addf %149, %151 : vector<24x128xf32>
    %cst_40 = arith.constant dense<0xFF800000> : vector<24xf32>
    %153 = vector.multi_reduction <maximumf>, %152, %cst_40 [1] : vector<24x128xf32> to vector<24xf32>
    %154 = vector.shape_cast %153 : vector<24xf32> to vector<24x1xf32>
    %155 = vector.broadcast %154 : vector<24x1xf32> to vector<24x128xf32>
    %156 = arith.subf %152, %155 : vector<24x128xf32>
    %157 = math.exp %156 : vector<24x128xf32>
    %cst_41 = arith.constant dense<0.000000e+00> : vector<24xf32>
    %158 = vector.multi_reduction <add>, %157, %cst_41 [1] : vector<24x128xf32> to vector<24xf32>
    %159 = vector.shape_cast %158 : vector<24xf32> to vector<24x1xf32>
    %160 = math.log %159 : vector<24x1xf32>
    %161 = arith.addf %154, %160 : vector<24x1xf32>
    %162 = vector.broadcast %161 : vector<24x1xf32> to vector<24x128xf32>
    %163 = arith.subf %152, %162 : vector<24x128xf32>
    %164 = arith.mulf %1, %163 : vector<24x128xf32>
    %165 = vector.shape_cast %164 : vector<24x128xf32> to vector<1x24x128xf32>
    %cst_42 = arith.constant dense<0.000000e+00> : vector<1xf32>
    %166 = vector.multi_reduction <add>, %165, %cst_42 [1, 2] : vector<1x24x128xf32> to vector<1xf32>
    %167 = vector.shape_cast %166 : vector<1xf32> to vector<1x1x1xf32>
    %168 = vector.extract %167[0, 0, 0] : f32 from vector<1x1x1xf32>
    %169 = vector.broadcast %168 : f32 to vector<1x1xf32>
    %cst_43 = arith.constant 0.000000e+00 : f32
    %170 = vector.broadcast %cst_43 : f32 to vector<1x1xf32>
    %171 = arith.subf %170, %169 : vector<1x1xf32>
    %cst_44 = arith.constant 0.0416666679 : f32
    %172 = vector.broadcast %cst_44 : f32 to vector<1x1xf32>
    %173 = arith.mulf %171, %172 : vector<1x1xf32>
    %174 = vector.extract_strided_slice %138 {offsets = [0, 0], sizes = [8, 64], strides = [1, 1]} : vector<24x64xf32> to vector<8x64xf32>
    %175 = vector.extract_strided_slice %138 {offsets = [8, 0], sizes = [16, 64], strides = [1, 1]} : vector<24x64xf32> to vector<16x64xf32>
    %176 = arith.truncf %174 : vector<8x64xf32> to vector<8x64xbf16>
    %177 = vector.extract_strided_slice %2 {offsets = [0, 1024], sizes = [64, 64], strides = [1, 1]} : vector<64x1664xbf16> to vector<64x64xbf16>
    %cst_45 = arith.constant dense<0.000000e+00> : vector<8x64xf32>
    %178 = tpu.matmul %176, %177, %cst_45 {dimension_numbers = #tpu.dot_dimension_numbers<[1], [0], [0], [1], [0, 0, 1, 1], [], []>} : vector<8x64xbf16>, vector<64x64xbf16>, vector<8x64xf32> -> vector<8x64xf32>
    %179 = arith.truncf %178 : vector<8x64xf32> to vector<8x64xbf16>
    %180 = arith.truncf %175 : vector<16x64xf32> to vector<16x64xbf16>
    %cst_46 = arith.constant dense<0.000000e+00> : vector<8x16xf32>
    %181 = tpu.matmul %179, %180, %cst_46 {dimension_numbers = #tpu.dot_dimension_numbers<[1], [1], [0], [0], [0, 0, 1, 0], [], []>} : vector<8x64xbf16>, vector<16x64xbf16>, vector<8x16xf32> -> vector<8x16xf32>
    %182 = vector.shape_cast %181 : vector<8x16xf32> to vector<1x8x16xf32>
    %cst_47 = arith.constant dense<0.000000e+00> : vector<1xf32>
    %183 = vector.multi_reduction <add>, %182, %cst_47 [1, 2] : vector<1x8x16xf32> to vector<1xf32>
    %184 = vector.shape_cast %183 : vector<1xf32> to vector<1x1x1xf32>
    %185 = vector.extract %184[0, 0, 0] : f32 from vector<1x1x1xf32>
    %186 = vector.broadcast %185 : f32 to vector<1x1xf32>
    %cst_48 = arith.constant 1.280000e+02 : f32
    %187 = vector.broadcast %cst_48 : f32 to vector<1x1xf32>
    %188 = arith.divf %186, %187 : vector<1x1xf32>
    %189 = vector.broadcast %188 : vector<1x1xf32> to vector<8x16xf32>
    %190 = arith.subf %181, %189 : vector<8x16xf32>
    %191 = arith.mulf %190, %190 : vector<8x16xf32>
    %192 = vector.shape_cast %191 : vector<8x16xf32> to vector<1x8x16xf32>
    %cst_49 = arith.constant dense<0.000000e+00> : vector<1xf32>
    %193 = vector.multi_reduction <add>, %192, %cst_49 [1, 2] : vector<1x8x16xf32> to vector<1xf32>
    %194 = vector.shape_cast %193 : vector<1xf32> to vector<1x1x1xf32>
    %195 = vector.extract %194[0, 0, 0] : f32 from vector<1x1x1xf32>
    %196 = vector.broadcast %195 : f32 to vector<1x1xf32>
    %cst_50 = arith.constant 1.280000e+02 : f32
    %197 = vector.broadcast %cst_50 : f32 to vector<1x1xf32>
    %198 = arith.divf %196, %197 : vector<1x1xf32>
    %199 = vector.broadcast %188 : vector<1x1xf32> to vector<8x16xf32>
    %200 = arith.subf %181, %199 : vector<8x16xf32>
    %cst_51 = arith.constant 9.99999974E-6 : f32
    %201 = vector.broadcast %cst_51 : f32 to vector<1x1xf32>
    %202 = arith.addf %198, %201 : vector<1x1xf32>
    %203 = math.rsqrt %202 : vector<1x1xf32>
    %204 = vector.broadcast %203 : vector<1x1xf32> to vector<8x16xf32>
    %205 = arith.mulf %200, %204 : vector<8x16xf32>
    %cst_52 = arith.constant 0.000000e+00 : f32
    %206 = vector.broadcast %cst_52 : f32 to vector<8x1xf32>
    %cst_53 = arith.constant 0.000000e+00 : f32
    %207 = vector.broadcast %cst_53 : f32 to vector<1x16xf32>
    %c0_i32 = arith.constant 0 : i32
    %cst_54 = arith.constant dense<0xFF800000> : vector<8xf32>
    %208 = vector.multi_reduction <maximumf>, %205, %cst_54 [1] : vector<8x16xf32> to vector<8xf32>
    %209 = vector.shape_cast %208 : vector<8xf32> to vector<8x1xf32>
    %210 = arith.maximumf %209, %206 : vector<8x1xf32>
    %211 = vector.broadcast %210 : vector<8x1xf32> to vector<8x16xf32>
    %212 = arith.subf %205, %211 : vector<8x16xf32>
    %213 = math.exp %212 : vector<8x16xf32>
    %cst_55 = arith.constant dense<0.000000e+00> : vector<8xf32>
    %214 = vector.multi_reduction <add>, %213, %cst_55 [1] : vector<8x16xf32> to vector<8xf32>
    %215 = vector.shape_cast %214 : vector<8xf32> to vector<8x1xf32>
    %216 = arith.subf %206, %210 : vector<8x1xf32>
    %217 = math.exp %216 : vector<8x1xf32>
    %218 = arith.addf %215, %217 : vector<8x1xf32>
    %219 = math.log %218 : vector<8x1xf32>
    %220 = arith.addf %210, %219 : vector<8x1xf32>
    %221 = vector.broadcast %220 : vector<8x1xf32> to vector<8x16xf32>
    %222 = arith.subf %205, %221 : vector<8x16xf32>
    %223 = arith.subf %206, %220 : vector<8x1xf32>
    %cst_56 = arith.constant dense<0xFF800000> : vector<16xf32>
    %224 = vector.multi_reduction <maximumf>, %222, %cst_56 [0] : vector<8x16xf32> to vector<16xf32>
    %225 = vector.shape_cast %224 : vector<16xf32> to vector<1x16xf32>
    %226 = arith.maximumf %225, %207 : vector<1x16xf32>
    %227 = vector.broadcast %226 : vector<1x16xf32> to vector<8x16xf32>
    %228 = arith.subf %222, %227 : vector<8x16xf32>
    %229 = math.exp %228 : vector<8x16xf32>
    %cst_57 = arith.constant dense<0.000000e+00> : vector<16xf32>
    %230 = vector.multi_reduction <add>, %229, %cst_57 [0] : vector<8x16xf32> to vector<16xf32>
    %231 = vector.shape_cast %230 : vector<16xf32> to vector<1x16xf32>
    %232 = arith.subf %207, %226 : vector<1x16xf32>
    %233 = math.exp %232 : vector<1x16xf32>
    %234 = arith.addf %231, %233 : vector<1x16xf32>
    %235 = math.log %234 : vector<1x16xf32>
    %236 = arith.addf %226, %235 : vector<1x16xf32>
    %237 = vector.broadcast %236 : vector<1x16xf32> to vector<8x16xf32>
    %238 = arith.subf %222, %237 : vector<8x16xf32>
    %239 = arith.subf %207, %236 : vector<1x16xf32>
    %c1_i32 = arith.constant 1 : i32
    %cst_58 = arith.constant dense<0xFF800000> : vector<8xf32>
    %240 = vector.multi_reduction <maximumf>, %238, %cst_58 [1] : vector<8x16xf32> to vector<8xf32>
    %241 = vector.shape_cast %240 : vector<8xf32> to vector<8x1xf32>
    %242 = arith.maximumf %241, %223 : vector<8x1xf32>
    %243 = vector.broadcast %242 : vector<8x1xf32> to vector<8x16xf32>
    %244 = arith.subf %238, %243 : vector<8x16xf32>
    %245 = math.exp %244 : vector<8x16xf32>
    %cst_59 = arith.constant dense<0.000000e+00> : vector<8xf32>
    %246 = vector.multi_reduction <add>, %245, %cst_59 [1] : vector<8x16xf32> to vector<8xf32>
    %247 = vector.shape_cast %246 : vector<8xf32> to vector<8x1xf32>
    %248 = arith.subf %223, %242 : vector<8x1xf32>
    %249 = math.exp %248 : vector<8x1xf32>
    %250 = arith.addf %247, %249 : vector<8x1xf32>
    %251 = math.log %250 : vector<8x1xf32>
    %252 = arith.addf %242, %251 : vector<8x1xf32>
    %253 = vector.broadcast %252 : vector<8x1xf32> to vector<8x16xf32>
    %254 = arith.subf %238, %253 : vector<8x16xf32>
    %255 = arith.subf %223, %252 : vector<8x1xf32>
    %cst_60 = arith.constant dense<0xFF800000> : vector<16xf32>
    %256 = vector.multi_reduction <maximumf>, %254, %cst_60 [0] : vector<8x16xf32> to vector<16xf32>
    %257 = vector.shape_cast %256 : vector<16xf32> to vector<1x16xf32>
    %258 = arith.maximumf %257, %239 : vector<1x16xf32>
    %259 = vector.broadcast %258 : vector<1x16xf32> to vector<8x16xf32>
    %260 = arith.subf %254, %259 : vector<8x16xf32>
    %261 = math.exp %260 : vector<8x16xf32>
    %cst_61 = arith.constant dense<0.000000e+00> : vector<16xf32>
    %262 = vector.multi_reduction <add>, %261, %cst_61 [0] : vector<8x16xf32> to vector<16xf32>
    %263 = vector.shape_cast %262 : vector<16xf32> to vector<1x16xf32>
    %264 = arith.subf %239, %258 : vector<1x16xf32>
    %265 = math.exp %264 : vector<1x16xf32>
    %266 = arith.addf %263, %265 : vector<1x16xf32>
    %267 = math.log %266 : vector<1x16xf32>
    %268 = arith.addf %258, %267 : vector<1x16xf32>
    %269 = vector.broadcast %268 : vector<1x16xf32> to vector<8x16xf32>
    %270 = arith.subf %254, %269 : vector<8x16xf32>
    %271 = arith.subf %239, %268 : vector<1x16xf32>
    %c2_i32 = arith.constant 2 : i32
    %cst_62 = arith.constant dense<0xFF800000> : vector<8xf32>
    %272 = vector.multi_reduction <maximumf>, %270, %cst_62 [1] : vector<8x16xf32> to vector<8xf32>
    %273 = vector.shape_cast %272 : vector<8xf32> to vector<8x1xf32>
    %274 = arith.maximumf %273, %255 : vector<8x1xf32>
    %275 = vector.broadcast %274 : vector<8x1xf32> to vector<8x16xf32>
    %276 = arith.subf %270, %275 : vector<8x16xf32>
    %277 = math.exp %276 : vector<8x16xf32>
    %cst_63 = arith.constant dense<0.000000e+00> : vector<8xf32>
    %278 = vector.multi_reduction <add>, %277, %cst_63 [1] : vector<8x16xf32> to vector<8xf32>
    %279 = vector.shape_cast %278 : vector<8xf32> to vector<8x1xf32>
    %280 = arith.subf %255, %274 : vector<8x1xf32>
    %281 = math.exp %280 : vector<8x1xf32>
    %282 = arith.addf %279, %281 : vector<8x1xf32>
    %283 = math.log %282 : vector<8x1xf32>
    %284 = arith.addf %274, %283 : vector<8x1xf32>
    %285 = vector.broadcast %284 : vector<8x1xf32> to vector<8x16xf32>
    %286 = arith.subf %270, %285 : vector<8x16xf32>
    %287 = arith.subf %255, %284 : vector<8x1xf32>
    %cst_64 = arith.constant dense<0xFF800000> : vector<16xf32>
    %288 = vector.multi_reduction <maximumf>, %286, %cst_64 [0] : vector<8x16xf32> to vector<16xf32>
    %289 = vector.shape_cast %288 : vector<16xf32> to vector<1x16xf32>
    %290 = arith.maximumf %289, %271 : vector<1x16xf32>
    %291 = vector.broadcast %290 : vector<1x16xf32> to vector<8x16xf32>
    %292 = arith.subf %286, %291 : vector<8x16xf32>
    %293 = math.exp %292 : vector<8x16xf32>
    %cst_65 = arith.constant dense<0.000000e+00> : vector<16xf32>
    %294 = vector.multi_reduction <add>, %293, %cst_65 [0] : vector<8x16xf32> to vector<16xf32>
    %295 = vector.shape_cast %294 : vector<16xf32> to vector<1x16xf32>
    %296 = arith.subf %271, %290 : vector<1x16xf32>
    %297 = math.exp %296 : vector<1x16xf32>
    %298 = arith.addf %295, %297 : vector<1x16xf32>
    %299 = math.log %298 : vector<1x16xf32>
    %300 = arith.addf %290, %299 : vector<1x16xf32>
    %301 = vector.broadcast %300 : vector<1x16xf32> to vector<8x16xf32>
    %302 = arith.subf %286, %301 : vector<8x16xf32>
    %303 = arith.subf %271, %300 : vector<1x16xf32>
    %c3_i32 = arith.constant 3 : i32
    %cst_66 = arith.constant dense<0xFF800000> : vector<8xf32>
    %304 = vector.multi_reduction <maximumf>, %302, %cst_66 [1] : vector<8x16xf32> to vector<8xf32>
    %305 = vector.shape_cast %304 : vector<8xf32> to vector<8x1xf32>
    %306 = arith.maximumf %305, %287 : vector<8x1xf32>
    %307 = vector.broadcast %306 : vector<8x1xf32> to vector<8x16xf32>
    %308 = arith.subf %302, %307 : vector<8x16xf32>
    %309 = math.exp %308 : vector<8x16xf32>
    %cst_67 = arith.constant dense<0.000000e+00> : vector<8xf32>
    %310 = vector.multi_reduction <add>, %309, %cst_67 [1] : vector<8x16xf32> to vector<8xf32>
    %311 = vector.shape_cast %310 : vector<8xf32> to vector<8x1xf32>
    %312 = arith.subf %287, %306 : vector<8x1xf32>
    %313 = math.exp %312 : vector<8x1xf32>
    %314 = arith.addf %311, %313 : vector<8x1xf32>
    %315 = math.log %314 : vector<8x1xf32>
    %316 = arith.addf %306, %315 : vector<8x1xf32>
    %317 = vector.broadcast %316 : vector<8x1xf32> to vector<8x16xf32>
    %318 = arith.subf %302, %317 : vector<8x16xf32>
    %319 = arith.subf %287, %316 : vector<8x1xf32>
    %cst_68 = arith.constant dense<0xFF800000> : vector<16xf32>
    %320 = vector.multi_reduction <maximumf>, %318, %cst_68 [0] : vector<8x16xf32> to vector<16xf32>
    %321 = vector.shape_cast %320 : vector<16xf32> to vector<1x16xf32>
    %322 = arith.maximumf %321, %303 : vector<1x16xf32>
    %323 = vector.broadcast %322 : vector<1x16xf32> to vector<8x16xf32>
    %324 = arith.subf %318, %323 : vector<8x16xf32>
    %325 = math.exp %324 : vector<8x16xf32>
    %cst_69 = arith.constant dense<0.000000e+00> : vector<16xf32>
    %326 = vector.multi_reduction <add>, %325, %cst_69 [0] : vector<8x16xf32> to vector<16xf32>
    %327 = vector.shape_cast %326 : vector<16xf32> to vector<1x16xf32>
    %328 = arith.subf %303, %322 : vector<1x16xf32>
    %329 = math.exp %328 : vector<1x16xf32>
    %330 = arith.addf %327, %329 : vector<1x16xf32>
    %331 = math.log %330 : vector<1x16xf32>
    %332 = arith.addf %322, %331 : vector<1x16xf32>
    %333 = vector.broadcast %332 : vector<1x16xf32> to vector<8x16xf32>
    %334 = arith.subf %318, %333 : vector<8x16xf32>
    %335 = arith.subf %303, %332 : vector<1x16xf32>
    %c4_i32 = arith.constant 4 : i32
    %cst_70 = arith.constant dense<0xFF800000> : vector<8xf32>
    %336 = vector.multi_reduction <maximumf>, %334, %cst_70 [1] : vector<8x16xf32> to vector<8xf32>
    %337 = vector.shape_cast %336 : vector<8xf32> to vector<8x1xf32>
    %338 = arith.maximumf %337, %319 : vector<8x1xf32>
    %339 = vector.broadcast %338 : vector<8x1xf32> to vector<8x16xf32>
    %340 = arith.subf %334, %339 : vector<8x16xf32>
    %341 = math.exp %340 : vector<8x16xf32>
    %cst_71 = arith.constant dense<0.000000e+00> : vector<8xf32>
    %342 = vector.multi_reduction <add>, %341, %cst_71 [1] : vector<8x16xf32> to vector<8xf32>
    %343 = vector.shape_cast %342 : vector<8xf32> to vector<8x1xf32>
    %344 = arith.subf %319, %338 : vector<8x1xf32>
    %345 = math.exp %344 : vector<8x1xf32>
    %346 = arith.addf %343, %345 : vector<8x1xf32>
    %347 = math.log %346 : vector<8x1xf32>
    %348 = arith.addf %338, %347 : vector<8x1xf32>
    %349 = vector.broadcast %348 : vector<8x1xf32> to vector<8x16xf32>
    %350 = arith.subf %334, %349 : vector<8x16xf32>
    %351 = arith.subf %319, %348 : vector<8x1xf32>
    %cst_72 = arith.constant dense<0xFF800000> : vector<16xf32>
    %352 = vector.multi_reduction <maximumf>, %350, %cst_72 [0] : vector<8x16xf32> to vector<16xf32>
    %353 = vector.shape_cast %352 : vector<16xf32> to vector<1x16xf32>
    %354 = arith.maximumf %353, %335 : vector<1x16xf32>
    %355 = vector.broadcast %354 : vector<1x16xf32> to vector<8x16xf32>
    %356 = arith.subf %350, %355 : vector<8x16xf32>
    %357 = math.exp %356 : vector<8x16xf32>
    %cst_73 = arith.constant dense<0.000000e+00> : vector<16xf32>
    %358 = vector.multi_reduction <add>, %357, %cst_73 [0] : vector<8x16xf32> to vector<16xf32>
    %359 = vector.shape_cast %358 : vector<16xf32> to vector<1x16xf32>
    %360 = arith.subf %335, %354 : vector<1x16xf32>
    %361 = math.exp %360 : vector<1x16xf32>
    %362 = arith.addf %359, %361 : vector<1x16xf32>
    %363 = math.log %362 : vector<1x16xf32>
    %364 = arith.addf %354, %363 : vector<1x16xf32>
    %365 = vector.broadcast %364 : vector<1x16xf32> to vector<8x16xf32>
    %366 = arith.subf %350, %365 : vector<8x16xf32>
    %367 = arith.subf %335, %364 : vector<1x16xf32>
    %c5_i32 = arith.constant 5 : i32
    %cst_74 = arith.constant dense<0xFF800000> : vector<8xf32>
    %368 = vector.multi_reduction <maximumf>, %366, %cst_74 [1] : vector<8x16xf32> to vector<8xf32>
    %369 = vector.shape_cast %368 : vector<8xf32> to vector<8x1xf32>
    %370 = arith.maximumf %369, %351 : vector<8x1xf32>
    %371 = vector.broadcast %370 : vector<8x1xf32> to vector<8x16xf32>
    %372 = arith.subf %366, %371 : vector<8x16xf32>
    %373 = math.exp %372 : vector<8x16xf32>
    %cst_75 = arith.constant dense<0.000000e+00> : vector<8xf32>
    %374 = vector.multi_reduction <add>, %373, %cst_75 [1] : vector<8x16xf32> to vector<8xf32>
    %375 = vector.shape_cast %374 : vector<8xf32> to vector<8x1xf32>
    %376 = arith.subf %351, %370 : vector<8x1xf32>
    %377 = math.exp %376 : vector<8x1xf32>
    %378 = arith.addf %375, %377 : vector<8x1xf32>
    %379 = math.log %378 : vector<8x1xf32>
    %380 = arith.addf %370, %379 : vector<8x1xf32>
    %381 = vector.broadcast %380 : vector<8x1xf32> to vector<8x16xf32>
    %382 = arith.subf %366, %381 : vector<8x16xf32>
    %383 = arith.subf %351, %380 : vector<8x1xf32>
    %cst_76 = arith.constant dense<0xFF800000> : vector<16xf32>
    %384 = vector.multi_reduction <maximumf>, %382, %cst_76 [0] : vector<8x16xf32> to vector<16xf32>
    %385 = vector.shape_cast %384 : vector<16xf32> to vector<1x16xf32>
    %386 = arith.maximumf %385, %367 : vector<1x16xf32>
    %387 = vector.broadcast %386 : vector<1x16xf32> to vector<8x16xf32>
    %388 = arith.subf %382, %387 : vector<8x16xf32>
    %389 = math.exp %388 : vector<8x16xf32>
    %cst_77 = arith.constant dense<0.000000e+00> : vector<16xf32>
    %390 = vector.multi_reduction <add>, %389, %cst_77 [0] : vector<8x16xf32> to vector<16xf32>
    %391 = vector.shape_cast %390 : vector<16xf32> to vector<1x16xf32>
    %392 = arith.subf %367, %386 : vector<1x16xf32>
    %393 = math.exp %392 : vector<1x16xf32>
    %394 = arith.addf %391, %393 : vector<1x16xf32>
    %395 = math.log %394 : vector<1x16xf32>
    %396 = arith.addf %386, %395 : vector<1x16xf32>
    %397 = vector.broadcast %396 : vector<1x16xf32> to vector<8x16xf32>
    %398 = arith.subf %382, %397 : vector<8x16xf32>
    %399 = arith.subf %367, %396 : vector<1x16xf32>
    %c6_i32 = arith.constant 6 : i32
    %cst_78 = arith.constant dense<0xFF800000> : vector<8xf32>
    %400 = vector.multi_reduction <maximumf>, %398, %cst_78 [1] : vector<8x16xf32> to vector<8xf32>
    %401 = vector.shape_cast %400 : vector<8xf32> to vector<8x1xf32>
    %402 = arith.maximumf %401, %383 : vector<8x1xf32>
    %403 = vector.broadcast %402 : vector<8x1xf32> to vector<8x16xf32>
    %404 = arith.subf %398, %403 : vector<8x16xf32>
    %405 = math.exp %404 : vector<8x16xf32>
    %cst_79 = arith.constant dense<0.000000e+00> : vector<8xf32>
    %406 = vector.multi_reduction <add>, %405, %cst_79 [1] : vector<8x16xf32> to vector<8xf32>
    %407 = vector.shape_cast %406 : vector<8xf32> to vector<8x1xf32>
    %408 = arith.subf %383, %402 : vector<8x1xf32>
    %409 = math.exp %408 : vector<8x1xf32>
    %410 = arith.addf %407, %409 : vector<8x1xf32>
    %411 = math.log %410 : vector<8x1xf32>
    %412 = arith.addf %402, %411 : vector<8x1xf32>
    %413 = vector.broadcast %412 : vector<8x1xf32> to vector<8x16xf32>
    %414 = arith.subf %398, %413 : vector<8x16xf32>
    %415 = arith.subf %383, %412 : vector<8x1xf32>
    %cst_80 = arith.constant dense<0xFF800000> : vector<16xf32>
    %416 = vector.multi_reduction <maximumf>, %414, %cst_80 [0] : vector<8x16xf32> to vector<16xf32>
    %417 = vector.shape_cast %416 : vector<16xf32> to vector<1x16xf32>
    %418 = arith.maximumf %417, %399 : vector<1x16xf32>
    %419 = vector.broadcast %418 : vector<1x16xf32> to vector<8x16xf32>
    %420 = arith.subf %414, %419 : vector<8x16xf32>
    %421 = math.exp %420 : vector<8x16xf32>
    %cst_81 = arith.constant dense<0.000000e+00> : vector<16xf32>
    %422 = vector.multi_reduction <add>, %421, %cst_81 [0] : vector<8x16xf32> to vector<16xf32>
    %423 = vector.shape_cast %422 : vector<16xf32> to vector<1x16xf32>
    %424 = arith.subf %399, %418 : vector<1x16xf32>
    %425 = math.exp %424 : vector<1x16xf32>
    %426 = arith.addf %423, %425 : vector<1x16xf32>
    %427 = math.log %426 : vector<1x16xf32>
    %428 = arith.addf %418, %427 : vector<1x16xf32>
    %429 = vector.broadcast %428 : vector<1x16xf32> to vector<8x16xf32>
    %430 = arith.subf %414, %429 : vector<8x16xf32>
    %431 = arith.subf %399, %428 : vector<1x16xf32>
    %c7_i32 = arith.constant 7 : i32
    %cst_82 = arith.constant dense<0xFF800000> : vector<8xf32>
    %432 = vector.multi_reduction <maximumf>, %430, %cst_82 [1] : vector<8x16xf32> to vector<8xf32>
    %433 = vector.shape_cast %432 : vector<8xf32> to vector<8x1xf32>
    %434 = arith.maximumf %433, %415 : vector<8x1xf32>
    %435 = vector.broadcast %434 : vector<8x1xf32> to vector<8x16xf32>
    %436 = arith.subf %430, %435 : vector<8x16xf32>
    %437 = math.exp %436 : vector<8x16xf32>
    %cst_83 = arith.constant dense<0.000000e+00> : vector<8xf32>
    %438 = vector.multi_reduction <add>, %437, %cst_83 [1] : vector<8x16xf32> to vector<8xf32>
    %439 = vector.shape_cast %438 : vector<8xf32> to vector<8x1xf32>
    %440 = arith.subf %415, %434 : vector<8x1xf32>
    %441 = math.exp %440 : vector<8x1xf32>
    %442 = arith.addf %439, %441 : vector<8x1xf32>
    %443 = math.log %442 : vector<8x1xf32>
    %444 = arith.addf %434, %443 : vector<8x1xf32>
    %445 = vector.broadcast %444 : vector<8x1xf32> to vector<8x16xf32>
    %446 = arith.subf %430, %445 : vector<8x16xf32>
    %447 = arith.subf %415, %444 : vector<8x1xf32>
    %cst_84 = arith.constant dense<0xFF800000> : vector<16xf32>
    %448 = vector.multi_reduction <maximumf>, %446, %cst_84 [0] : vector<8x16xf32> to vector<16xf32>
    %449 = vector.shape_cast %448 : vector<16xf32> to vector<1x16xf32>
    %450 = arith.maximumf %449, %431 : vector<1x16xf32>
    %451 = vector.broadcast %450 : vector<1x16xf32> to vector<8x16xf32>
    %452 = arith.subf %446, %451 : vector<8x16xf32>
    %453 = math.exp %452 : vector<8x16xf32>
    %cst_85 = arith.constant dense<0.000000e+00> : vector<16xf32>
    %454 = vector.multi_reduction <add>, %453, %cst_85 [0] : vector<8x16xf32> to vector<16xf32>
    %455 = vector.shape_cast %454 : vector<16xf32> to vector<1x16xf32>
    %456 = arith.subf %431, %450 : vector<1x16xf32>
    %457 = math.exp %456 : vector<1x16xf32>
    %458 = arith.addf %455, %457 : vector<1x16xf32>
    %459 = math.log %458 : vector<1x16xf32>
    %460 = arith.addf %450, %459 : vector<1x16xf32>
    %461 = vector.broadcast %460 : vector<1x16xf32> to vector<8x16xf32>
    %462 = arith.subf %446, %461 : vector<8x16xf32>
    %463 = arith.subf %431, %460 : vector<1x16xf32>
    %c8_i32_86 = arith.constant 8 : i32
    %cst_87 = arith.constant dense<0xFF800000> : vector<8xf32>
    %464 = vector.multi_reduction <maximumf>, %462, %cst_87 [1] : vector<8x16xf32> to vector<8xf32>
    %465 = vector.shape_cast %464 : vector<8xf32> to vector<8x1xf32>
    %466 = arith.maximumf %465, %447 : vector<8x1xf32>
    %467 = vector.broadcast %466 : vector<8x1xf32> to vector<8x16xf32>
    %468 = arith.subf %462, %467 : vector<8x16xf32>
    %469 = math.exp %468 : vector<8x16xf32>
    %cst_88 = arith.constant dense<0.000000e+00> : vector<8xf32>
    %470 = vector.multi_reduction <add>, %469, %cst_88 [1] : vector<8x16xf32> to vector<8xf32>
    %471 = vector.shape_cast %470 : vector<8xf32> to vector<8x1xf32>
    %472 = arith.subf %447, %466 : vector<8x1xf32>
    %473 = math.exp %472 : vector<8x1xf32>
    %474 = arith.addf %471, %473 : vector<8x1xf32>
    %475 = math.log %474 : vector<8x1xf32>
    %476 = arith.addf %466, %475 : vector<8x1xf32>
    %477 = vector.broadcast %476 : vector<8x1xf32> to vector<8x16xf32>
    %478 = arith.subf %462, %477 : vector<8x16xf32>
    %479 = arith.subf %447, %476 : vector<8x1xf32>
    %cst_89 = arith.constant dense<0xFF800000> : vector<16xf32>
    %480 = vector.multi_reduction <maximumf>, %478, %cst_89 [0] : vector<8x16xf32> to vector<16xf32>
    %481 = vector.shape_cast %480 : vector<16xf32> to vector<1x16xf32>
    %482 = arith.maximumf %481, %463 : vector<1x16xf32>
    %483 = vector.broadcast %482 : vector<1x16xf32> to vector<8x16xf32>
    %484 = arith.subf %478, %483 : vector<8x16xf32>
    %485 = math.exp %484 : vector<8x16xf32>
    %cst_90 = arith.constant dense<0.000000e+00> : vector<16xf32>
    %486 = vector.multi_reduction <add>, %485, %cst_90 [0] : vector<8x16xf32> to vector<16xf32>
    %487 = vector.shape_cast %486 : vector<16xf32> to vector<1x16xf32>
    %488 = arith.subf %463, %482 : vector<1x16xf32>
    %489 = math.exp %488 : vector<1x16xf32>
    %490 = arith.addf %487, %489 : vector<1x16xf32>
    %491 = math.log %490 : vector<1x16xf32>
    %492 = arith.addf %482, %491 : vector<1x16xf32>
    %493 = vector.broadcast %492 : vector<1x16xf32> to vector<8x16xf32>
    %494 = arith.subf %478, %493 : vector<8x16xf32>
    %495 = arith.subf %463, %492 : vector<1x16xf32>
    %c9_i32 = arith.constant 9 : i32
    %cst_91 = arith.constant dense<0xFF800000> : vector<8xf32>
    %496 = vector.multi_reduction <maximumf>, %494, %cst_91 [1] : vector<8x16xf32> to vector<8xf32>
    %497 = vector.shape_cast %496 : vector<8xf32> to vector<8x1xf32>
    %498 = arith.maximumf %497, %479 : vector<8x1xf32>
    %499 = vector.broadcast %498 : vector<8x1xf32> to vector<8x16xf32>
    %500 = arith.subf %494, %499 : vector<8x16xf32>
    %501 = math.exp %500 : vector<8x16xf32>
    %cst_92 = arith.constant dense<0.000000e+00> : vector<8xf32>
    %502 = vector.multi_reduction <add>, %501, %cst_92 [1] : vector<8x16xf32> to vector<8xf32>
    %503 = vector.shape_cast %502 : vector<8xf32> to vector<8x1xf32>
    %504 = arith.subf %479, %498 : vector<8x1xf32>
    %505 = math.exp %504 : vector<8x1xf32>
    %506 = arith.addf %503, %505 : vector<8x1xf32>
    %507 = math.log %506 : vector<8x1xf32>
    %508 = arith.addf %498, %507 : vector<8x1xf32>
    %509 = vector.broadcast %508 : vector<8x1xf32> to vector<8x16xf32>
    %510 = arith.subf %494, %509 : vector<8x16xf32>
    %511 = arith.subf %479, %508 : vector<8x1xf32>
    %cst_93 = arith.constant dense<0xFF800000> : vector<16xf32>
    %512 = vector.multi_reduction <maximumf>, %510, %cst_93 [0] : vector<8x16xf32> to vector<16xf32>
    %513 = vector.shape_cast %512 : vector<16xf32> to vector<1x16xf32>
    %514 = arith.maximumf %513, %495 : vector<1x16xf32>
    %515 = vector.broadcast %514 : vector<1x16xf32> to vector<8x16xf32>
    %516 = arith.subf %510, %515 : vector<8x16xf32>
    %517 = math.exp %516 : vector<8x16xf32>
    %cst_94 = arith.constant dense<0.000000e+00> : vector<16xf32>
    %518 = vector.multi_reduction <add>, %517, %cst_94 [0] : vector<8x16xf32> to vector<16xf32>
    %519 = vector.shape_cast %518 : vector<16xf32> to vector<1x16xf32>
    %520 = arith.subf %495, %514 : vector<1x16xf32>
    %521 = math.exp %520 : vector<1x16xf32>
    %522 = arith.addf %519, %521 : vector<1x16xf32>
    %523 = math.log %522 : vector<1x16xf32>
    %524 = arith.addf %514, %523 : vector<1x16xf32>
    %525 = vector.broadcast %524 : vector<1x16xf32> to vector<8x16xf32>
    %526 = arith.subf %510, %525 : vector<8x16xf32>
    %527 = arith.subf %495, %524 : vector<1x16xf32>
    %c10_i32 = arith.constant 10 : i32
    %cst_95 = arith.constant dense<0xFF800000> : vector<8xf32>
    %528 = vector.multi_reduction <maximumf>, %526, %cst_95 [1] : vector<8x16xf32> to vector<8xf32>
    %529 = vector.shape_cast %528 : vector<8xf32> to vector<8x1xf32>
    %530 = arith.maximumf %529, %511 : vector<8x1xf32>
    %531 = vector.broadcast %530 : vector<8x1xf32> to vector<8x16xf32>
    %532 = arith.subf %526, %531 : vector<8x16xf32>
    %533 = math.exp %532 : vector<8x16xf32>
    %cst_96 = arith.constant dense<0.000000e+00> : vector<8xf32>
    %534 = vector.multi_reduction <add>, %533, %cst_96 [1] : vector<8x16xf32> to vector<8xf32>
    %535 = vector.shape_cast %534 : vector<8xf32> to vector<8x1xf32>
    %536 = arith.subf %511, %530 : vector<8x1xf32>
    %537 = math.exp %536 : vector<8x1xf32>
    %538 = arith.addf %535, %537 : vector<8x1xf32>
    %539 = math.log %538 : vector<8x1xf32>
    %540 = arith.addf %530, %539 : vector<8x1xf32>
    %541 = vector.broadcast %540 : vector<8x1xf32> to vector<8x16xf32>
    %542 = arith.subf %526, %541 : vector<8x16xf32>
    %543 = arith.subf %511, %540 : vector<8x1xf32>
    %cst_97 = arith.constant dense<0xFF800000> : vector<16xf32>
    %544 = vector.multi_reduction <maximumf>, %542, %cst_97 [0] : vector<8x16xf32> to vector<16xf32>
    %545 = vector.shape_cast %544 : vector<16xf32> to vector<1x16xf32>
    %546 = arith.maximumf %545, %527 : vector<1x16xf32>
    %547 = vector.broadcast %546 : vector<1x16xf32> to vector<8x16xf32>
    %548 = arith.subf %542, %547 : vector<8x16xf32>
    %549 = math.exp %548 : vector<8x16xf32>
    %cst_98 = arith.constant dense<0.000000e+00> : vector<16xf32>
    %550 = vector.multi_reduction <add>, %549, %cst_98 [0] : vector<8x16xf32> to vector<16xf32>
    %551 = vector.shape_cast %550 : vector<16xf32> to vector<1x16xf32>
    %552 = arith.subf %527, %546 : vector<1x16xf32>
    %553 = math.exp %552 : vector<1x16xf32>
    %554 = arith.addf %551, %553 : vector<1x16xf32>
    %555 = math.log %554 : vector<1x16xf32>
    %556 = arith.addf %546, %555 : vector<1x16xf32>
    %557 = vector.broadcast %556 : vector<1x16xf32> to vector<8x16xf32>
    %558 = arith.subf %542, %557 : vector<8x16xf32>
    %559 = arith.subf %527, %556 : vector<1x16xf32>
    %c11_i32 = arith.constant 11 : i32
    %cst_99 = arith.constant dense<0xFF800000> : vector<8xf32>
    %560 = vector.multi_reduction <maximumf>, %558, %cst_99 [1] : vector<8x16xf32> to vector<8xf32>
    %561 = vector.shape_cast %560 : vector<8xf32> to vector<8x1xf32>
    %562 = arith.maximumf %561, %543 : vector<8x1xf32>
    %563 = vector.broadcast %562 : vector<8x1xf32> to vector<8x16xf32>
    %564 = arith.subf %558, %563 : vector<8x16xf32>
    %565 = math.exp %564 : vector<8x16xf32>
    %cst_100 = arith.constant dense<0.000000e+00> : vector<8xf32>
    %566 = vector.multi_reduction <add>, %565, %cst_100 [1] : vector<8x16xf32> to vector<8xf32>
    %567 = vector.shape_cast %566 : vector<8xf32> to vector<8x1xf32>
    %568 = arith.subf %543, %562 : vector<8x1xf32>
    %569 = math.exp %568 : vector<8x1xf32>
    %570 = arith.addf %567, %569 : vector<8x1xf32>
    %571 = math.log %570 : vector<8x1xf32>
    %572 = arith.addf %562, %571 : vector<8x1xf32>
    %573 = vector.broadcast %572 : vector<8x1xf32> to vector<8x16xf32>
    %574 = arith.subf %558, %573 : vector<8x16xf32>
    %575 = arith.subf %543, %572 : vector<8x1xf32>
    %cst_101 = arith.constant dense<0xFF800000> : vector<16xf32>
    %576 = vector.multi_reduction <maximumf>, %574, %cst_101 [0] : vector<8x16xf32> to vector<16xf32>
    %577 = vector.shape_cast %576 : vector<16xf32> to vector<1x16xf32>
    %578 = arith.maximumf %577, %559 : vector<1x16xf32>
    %579 = vector.broadcast %578 : vector<1x16xf32> to vector<8x16xf32>
    %580 = arith.subf %574, %579 : vector<8x16xf32>
    %581 = math.exp %580 : vector<8x16xf32>
    %cst_102 = arith.constant dense<0.000000e+00> : vector<16xf32>
    %582 = vector.multi_reduction <add>, %581, %cst_102 [0] : vector<8x16xf32> to vector<16xf32>
    %583 = vector.shape_cast %582 : vector<16xf32> to vector<1x16xf32>
    %584 = arith.subf %559, %578 : vector<1x16xf32>
    %585 = math.exp %584 : vector<1x16xf32>
    %586 = arith.addf %583, %585 : vector<1x16xf32>
    %587 = math.log %586 : vector<1x16xf32>
    %588 = arith.addf %578, %587 : vector<1x16xf32>
    %589 = vector.broadcast %588 : vector<1x16xf32> to vector<8x16xf32>
    %590 = arith.subf %574, %589 : vector<8x16xf32>
    %591 = arith.subf %559, %588 : vector<1x16xf32>
    %c12_i32 = arith.constant 12 : i32
    %cst_103 = arith.constant dense<0xFF800000> : vector<8xf32>
    %592 = vector.multi_reduction <maximumf>, %590, %cst_103 [1] : vector<8x16xf32> to vector<8xf32>
    %593 = vector.shape_cast %592 : vector<8xf32> to vector<8x1xf32>
    %594 = arith.maximumf %593, %575 : vector<8x1xf32>
    %595 = vector.broadcast %594 : vector<8x1xf32> to vector<8x16xf32>
    %596 = arith.subf %590, %595 : vector<8x16xf32>
    %597 = math.exp %596 : vector<8x16xf32>
    %cst_104 = arith.constant dense<0.000000e+00> : vector<8xf32>
    %598 = vector.multi_reduction <add>, %597, %cst_104 [1] : vector<8x16xf32> to vector<8xf32>
    %599 = vector.shape_cast %598 : vector<8xf32> to vector<8x1xf32>
    %600 = arith.subf %575, %594 : vector<8x1xf32>
    %601 = math.exp %600 : vector<8x1xf32>
    %602 = arith.addf %599, %601 : vector<8x1xf32>
    %603 = math.log %602 : vector<8x1xf32>
    %604 = arith.addf %594, %603 : vector<8x1xf32>
    %605 = vector.broadcast %604 : vector<8x1xf32> to vector<8x16xf32>
    %606 = arith.subf %590, %605 : vector<8x16xf32>
    %607 = arith.subf %575, %604 : vector<8x1xf32>
    %cst_105 = arith.constant dense<0xFF800000> : vector<16xf32>
    %608 = vector.multi_reduction <maximumf>, %606, %cst_105 [0] : vector<8x16xf32> to vector<16xf32>
    %609 = vector.shape_cast %608 : vector<16xf32> to vector<1x16xf32>
    %610 = arith.maximumf %609, %591 : vector<1x16xf32>
    %611 = vector.broadcast %610 : vector<1x16xf32> to vector<8x16xf32>
    %612 = arith.subf %606, %611 : vector<8x16xf32>
    %613 = math.exp %612 : vector<8x16xf32>
    %cst_106 = arith.constant dense<0.000000e+00> : vector<16xf32>
    %614 = vector.multi_reduction <add>, %613, %cst_106 [0] : vector<8x16xf32> to vector<16xf32>
    %615 = vector.shape_cast %614 : vector<16xf32> to vector<1x16xf32>
    %616 = arith.subf %591, %610 : vector<1x16xf32>
    %617 = math.exp %616 : vector<1x16xf32>
    %618 = arith.addf %615, %617 : vector<1x16xf32>
    %619 = math.log %618 : vector<1x16xf32>
    %620 = arith.addf %610, %619 : vector<1x16xf32>
    %621 = vector.broadcast %620 : vector<1x16xf32> to vector<8x16xf32>
    %622 = arith.subf %606, %621 : vector<8x16xf32>
    %623 = arith.subf %591, %620 : vector<1x16xf32>
    %c13_i32 = arith.constant 13 : i32
    %cst_107 = arith.constant dense<0xFF800000> : vector<8xf32>
    %624 = vector.multi_reduction <maximumf>, %622, %cst_107 [1] : vector<8x16xf32> to vector<8xf32>
    %625 = vector.shape_cast %624 : vector<8xf32> to vector<8x1xf32>
    %626 = arith.maximumf %625, %607 : vector<8x1xf32>
    %627 = vector.broadcast %626 : vector<8x1xf32> to vector<8x16xf32>
    %628 = arith.subf %622, %627 : vector<8x16xf32>
    %629 = math.exp %628 : vector<8x16xf32>
    %cst_108 = arith.constant dense<0.000000e+00> : vector<8xf32>
    %630 = vector.multi_reduction <add>, %629, %cst_108 [1] : vector<8x16xf32> to vector<8xf32>
    %631 = vector.shape_cast %630 : vector<8xf32> to vector<8x1xf32>
    %632 = arith.subf %607, %626 : vector<8x1xf32>
    %633 = math.exp %632 : vector<8x1xf32>
    %634 = arith.addf %631, %633 : vector<8x1xf32>
    %635 = math.log %634 : vector<8x1xf32>
    %636 = arith.addf %626, %635 : vector<8x1xf32>
    %637 = vector.broadcast %636 : vector<8x1xf32> to vector<8x16xf32>
    %638 = arith.subf %622, %637 : vector<8x16xf32>
    %639 = arith.subf %607, %636 : vector<8x1xf32>
    %cst_109 = arith.constant dense<0xFF800000> : vector<16xf32>
    %640 = vector.multi_reduction <maximumf>, %638, %cst_109 [0] : vector<8x16xf32> to vector<16xf32>
    %641 = vector.shape_cast %640 : vector<16xf32> to vector<1x16xf32>
    %642 = arith.maximumf %641, %623 : vector<1x16xf32>
    %643 = vector.broadcast %642 : vector<1x16xf32> to vector<8x16xf32>
    %644 = arith.subf %638, %643 : vector<8x16xf32>
    %645 = math.exp %644 : vector<8x16xf32>
    %cst_110 = arith.constant dense<0.000000e+00> : vector<16xf32>
    %646 = vector.multi_reduction <add>, %645, %cst_110 [0] : vector<8x16xf32> to vector<16xf32>
    %647 = vector.shape_cast %646 : vector<16xf32> to vector<1x16xf32>
    %648 = arith.subf %623, %642 : vector<1x16xf32>
    %649 = math.exp %648 : vector<1x16xf32>
    %650 = arith.addf %647, %649 : vector<1x16xf32>
    %651 = math.log %650 : vector<1x16xf32>
    %652 = arith.addf %642, %651 : vector<1x16xf32>
    %653 = vector.broadcast %652 : vector<1x16xf32> to vector<8x16xf32>
    %654 = arith.subf %638, %653 : vector<8x16xf32>
    %655 = arith.subf %623, %652 : vector<1x16xf32>
    %c14_i32 = arith.constant 14 : i32
    %cst_111 = arith.constant dense<0xFF800000> : vector<8xf32>
    %656 = vector.multi_reduction <maximumf>, %654, %cst_111 [1] : vector<8x16xf32> to vector<8xf32>
    %657 = vector.shape_cast %656 : vector<8xf32> to vector<8x1xf32>
    %658 = arith.maximumf %657, %639 : vector<8x1xf32>
    %659 = vector.broadcast %658 : vector<8x1xf32> to vector<8x16xf32>
    %660 = arith.subf %654, %659 : vector<8x16xf32>
    %661 = math.exp %660 : vector<8x16xf32>
    %cst_112 = arith.constant dense<0.000000e+00> : vector<8xf32>
    %662 = vector.multi_reduction <add>, %661, %cst_112 [1] : vector<8x16xf32> to vector<8xf32>
    %663 = vector.shape_cast %662 : vector<8xf32> to vector<8x1xf32>
    %664 = arith.subf %639, %658 : vector<8x1xf32>
    %665 = math.exp %664 : vector<8x1xf32>
    %666 = arith.addf %663, %665 : vector<8x1xf32>
    %667 = math.log %666 : vector<8x1xf32>
    %668 = arith.addf %658, %667 : vector<8x1xf32>
    %669 = vector.broadcast %668 : vector<8x1xf32> to vector<8x16xf32>
    %670 = arith.subf %654, %669 : vector<8x16xf32>
    %671 = arith.subf %639, %668 : vector<8x1xf32>
    %cst_113 = arith.constant dense<0xFF800000> : vector<16xf32>
    %672 = vector.multi_reduction <maximumf>, %670, %cst_113 [0] : vector<8x16xf32> to vector<16xf32>
    %673 = vector.shape_cast %672 : vector<16xf32> to vector<1x16xf32>
    %674 = arith.maximumf %673, %655 : vector<1x16xf32>
    %675 = vector.broadcast %674 : vector<1x16xf32> to vector<8x16xf32>
    %676 = arith.subf %670, %675 : vector<8x16xf32>
    %677 = math.exp %676 : vector<8x16xf32>
    %cst_114 = arith.constant dense<0.000000e+00> : vector<16xf32>
    %678 = vector.multi_reduction <add>, %677, %cst_114 [0] : vector<8x16xf32> to vector<16xf32>
    %679 = vector.shape_cast %678 : vector<16xf32> to vector<1x16xf32>
    %680 = arith.subf %655, %674 : vector<1x16xf32>
    %681 = math.exp %680 : vector<1x16xf32>
    %682 = arith.addf %679, %681 : vector<1x16xf32>
    %683 = math.log %682 : vector<1x16xf32>
    %684 = arith.addf %674, %683 : vector<1x16xf32>
    %685 = vector.broadcast %684 : vector<1x16xf32> to vector<8x16xf32>
    %686 = arith.subf %670, %685 : vector<8x16xf32>
    %687 = arith.subf %655, %684 : vector<1x16xf32>
    %c15_i32 = arith.constant 15 : i32
    %cst_115 = arith.constant dense<0xFF800000> : vector<8xf32>
    %688 = vector.multi_reduction <maximumf>, %686, %cst_115 [1] : vector<8x16xf32> to vector<8xf32>
    %689 = vector.shape_cast %688 : vector<8xf32> to vector<8x1xf32>
    %690 = arith.maximumf %689, %671 : vector<8x1xf32>
    %691 = vector.broadcast %690 : vector<8x1xf32> to vector<8x16xf32>
    %692 = arith.subf %686, %691 : vector<8x16xf32>
    %693 = math.exp %692 : vector<8x16xf32>
    %cst_116 = arith.constant dense<0.000000e+00> : vector<8xf32>
    %694 = vector.multi_reduction <add>, %693, %cst_116 [1] : vector<8x16xf32> to vector<8xf32>
    %695 = vector.shape_cast %694 : vector<8xf32> to vector<8x1xf32>
    %696 = arith.subf %671, %690 : vector<8x1xf32>
    %697 = math.exp %696 : vector<8x1xf32>
    %698 = arith.addf %695, %697 : vector<8x1xf32>
    %699 = math.log %698 : vector<8x1xf32>
    %700 = arith.addf %690, %699 : vector<8x1xf32>
    %701 = vector.broadcast %700 : vector<8x1xf32> to vector<8x16xf32>
    %702 = arith.subf %686, %701 : vector<8x16xf32>
    %703 = arith.subf %671, %700 : vector<8x1xf32>
    %cst_117 = arith.constant dense<0xFF800000> : vector<16xf32>
    %704 = vector.multi_reduction <maximumf>, %702, %cst_117 [0] : vector<8x16xf32> to vector<16xf32>
    %705 = vector.shape_cast %704 : vector<16xf32> to vector<1x16xf32>
    %706 = arith.maximumf %705, %687 : vector<1x16xf32>
    %707 = vector.broadcast %706 : vector<1x16xf32> to vector<8x16xf32>
    %708 = arith.subf %702, %707 : vector<8x16xf32>
    %709 = math.exp %708 : vector<8x16xf32>
    %cst_118 = arith.constant dense<0.000000e+00> : vector<16xf32>
    %710 = vector.multi_reduction <add>, %709, %cst_118 [0] : vector<8x16xf32> to vector<16xf32>
    %711 = vector.shape_cast %710 : vector<16xf32> to vector<1x16xf32>
    %712 = arith.subf %687, %706 : vector<1x16xf32>
    %713 = math.exp %712 : vector<1x16xf32>
    %714 = arith.addf %711, %713 : vector<1x16xf32>
    %715 = math.log %714 : vector<1x16xf32>
    %716 = arith.addf %706, %715 : vector<1x16xf32>
    %717 = vector.broadcast %716 : vector<1x16xf32> to vector<8x16xf32>
    %718 = arith.subf %702, %717 : vector<8x16xf32>
    %719 = arith.subf %687, %716 : vector<1x16xf32>
    %c16_i32 = arith.constant 16 : i32
    %cst_119 = arith.constant dense<0xFF800000> : vector<8xf32>
    %720 = vector.multi_reduction <maximumf>, %718, %cst_119 [1] : vector<8x16xf32> to vector<8xf32>
    %721 = vector.shape_cast %720 : vector<8xf32> to vector<8x1xf32>
    %722 = arith.maximumf %721, %703 : vector<8x1xf32>
    %723 = vector.broadcast %722 : vector<8x1xf32> to vector<8x16xf32>
    %724 = arith.subf %718, %723 : vector<8x16xf32>
    %725 = math.exp %724 : vector<8x16xf32>
    %cst_120 = arith.constant dense<0.000000e+00> : vector<8xf32>
    %726 = vector.multi_reduction <add>, %725, %cst_120 [1] : vector<8x16xf32> to vector<8xf32>
    %727 = vector.shape_cast %726 : vector<8xf32> to vector<8x1xf32>
    %728 = arith.subf %703, %722 : vector<8x1xf32>
    %729 = math.exp %728 : vector<8x1xf32>
    %730 = arith.addf %727, %729 : vector<8x1xf32>
    %731 = math.log %730 : vector<8x1xf32>
    %732 = arith.addf %722, %731 : vector<8x1xf32>
    %733 = vector.broadcast %732 : vector<8x1xf32> to vector<8x16xf32>
    %734 = arith.subf %718, %733 : vector<8x16xf32>
    %735 = arith.subf %703, %732 : vector<8x1xf32>
    %cst_121 = arith.constant dense<0xFF800000> : vector<16xf32>
    %736 = vector.multi_reduction <maximumf>, %734, %cst_121 [0] : vector<8x16xf32> to vector<16xf32>
    %737 = vector.shape_cast %736 : vector<16xf32> to vector<1x16xf32>
    %738 = arith.maximumf %737, %719 : vector<1x16xf32>
    %739 = vector.broadcast %738 : vector<1x16xf32> to vector<8x16xf32>
    %740 = arith.subf %734, %739 : vector<8x16xf32>
    %741 = math.exp %740 : vector<8x16xf32>
    %cst_122 = arith.constant dense<0.000000e+00> : vector<16xf32>
    %742 = vector.multi_reduction <add>, %741, %cst_122 [0] : vector<8x16xf32> to vector<16xf32>
    %743 = vector.shape_cast %742 : vector<16xf32> to vector<1x16xf32>
    %744 = arith.subf %719, %738 : vector<1x16xf32>
    %745 = math.exp %744 : vector<1x16xf32>
    %746 = arith.addf %743, %745 : vector<1x16xf32>
    %747 = math.log %746 : vector<1x16xf32>
    %748 = arith.addf %738, %747 : vector<1x16xf32>
    %749 = vector.broadcast %748 : vector<1x16xf32> to vector<8x16xf32>
    %750 = arith.subf %734, %749 : vector<8x16xf32>
    %751 = arith.subf %719, %748 : vector<1x16xf32>
    %c17_i32 = arith.constant 17 : i32
    %cst_123 = arith.constant dense<0xFF800000> : vector<8xf32>
    %752 = vector.multi_reduction <maximumf>, %750, %cst_123 [1] : vector<8x16xf32> to vector<8xf32>
    %753 = vector.shape_cast %752 : vector<8xf32> to vector<8x1xf32>
    %754 = arith.maximumf %753, %735 : vector<8x1xf32>
    %755 = vector.broadcast %754 : vector<8x1xf32> to vector<8x16xf32>
    %756 = arith.subf %750, %755 : vector<8x16xf32>
    %757 = math.exp %756 : vector<8x16xf32>
    %cst_124 = arith.constant dense<0.000000e+00> : vector<8xf32>
    %758 = vector.multi_reduction <add>, %757, %cst_124 [1] : vector<8x16xf32> to vector<8xf32>
    %759 = vector.shape_cast %758 : vector<8xf32> to vector<8x1xf32>
    %760 = arith.subf %735, %754 : vector<8x1xf32>
    %761 = math.exp %760 : vector<8x1xf32>
    %762 = arith.addf %759, %761 : vector<8x1xf32>
    %763 = math.log %762 : vector<8x1xf32>
    %764 = arith.addf %754, %763 : vector<8x1xf32>
    %765 = vector.broadcast %764 : vector<8x1xf32> to vector<8x16xf32>
    %766 = arith.subf %750, %765 : vector<8x16xf32>
    %767 = arith.subf %735, %764 : vector<8x1xf32>
    %cst_125 = arith.constant dense<0xFF800000> : vector<16xf32>
    %768 = vector.multi_reduction <maximumf>, %766, %cst_125 [0] : vector<8x16xf32> to vector<16xf32>
    %769 = vector.shape_cast %768 : vector<16xf32> to vector<1x16xf32>
    %770 = arith.maximumf %769, %751 : vector<1x16xf32>
    %771 = vector.broadcast %770 : vector<1x16xf32> to vector<8x16xf32>
    %772 = arith.subf %766, %771 : vector<8x16xf32>
    %773 = math.exp %772 : vector<8x16xf32>
    %cst_126 = arith.constant dense<0.000000e+00> : vector<16xf32>
    %774 = vector.multi_reduction <add>, %773, %cst_126 [0] : vector<8x16xf32> to vector<16xf32>
    %775 = vector.shape_cast %774 : vector<16xf32> to vector<1x16xf32>
    %776 = arith.subf %751, %770 : vector<1x16xf32>
    %777 = math.exp %776 : vector<1x16xf32>
    %778 = arith.addf %775, %777 : vector<1x16xf32>
    %779 = math.log %778 : vector<1x16xf32>
    %780 = arith.addf %770, %779 : vector<1x16xf32>
    %781 = vector.broadcast %780 : vector<1x16xf32> to vector<8x16xf32>
    %782 = arith.subf %766, %781 : vector<8x16xf32>
    %783 = arith.subf %751, %780 : vector<1x16xf32>
    %c18_i32 = arith.constant 18 : i32
    %cst_127 = arith.constant dense<0xFF800000> : vector<8xf32>
    %784 = vector.multi_reduction <maximumf>, %782, %cst_127 [1] : vector<8x16xf32> to vector<8xf32>
    %785 = vector.shape_cast %784 : vector<8xf32> to vector<8x1xf32>
    %786 = arith.maximumf %785, %767 : vector<8x1xf32>
    %787 = vector.broadcast %786 : vector<8x1xf32> to vector<8x16xf32>
    %788 = arith.subf %782, %787 : vector<8x16xf32>
    %789 = math.exp %788 : vector<8x16xf32>
    %cst_128 = arith.constant dense<0.000000e+00> : vector<8xf32>
    %790 = vector.multi_reduction <add>, %789, %cst_128 [1] : vector<8x16xf32> to vector<8xf32>
    %791 = vector.shape_cast %790 : vector<8xf32> to vector<8x1xf32>
    %792 = arith.subf %767, %786 : vector<8x1xf32>
    %793 = math.exp %792 : vector<8x1xf32>
    %794 = arith.addf %791, %793 : vector<8x1xf32>
    %795 = math.log %794 : vector<8x1xf32>
    %796 = arith.addf %786, %795 : vector<8x1xf32>
    %797 = vector.broadcast %796 : vector<8x1xf32> to vector<8x16xf32>
    %798 = arith.subf %782, %797 : vector<8x16xf32>
    %799 = arith.subf %767, %796 : vector<8x1xf32>
    %cst_129 = arith.constant dense<0xFF800000> : vector<16xf32>
    %800 = vector.multi_reduction <maximumf>, %798, %cst_129 [0] : vector<8x16xf32> to vector<16xf32>
    %801 = vector.shape_cast %800 : vector<16xf32> to vector<1x16xf32>
    %802 = arith.maximumf %801, %783 : vector<1x16xf32>
    %803 = vector.broadcast %802 : vector<1x16xf32> to vector<8x16xf32>
    %804 = arith.subf %798, %803 : vector<8x16xf32>
    %805 = math.exp %804 : vector<8x16xf32>
    %cst_130 = arith.constant dense<0.000000e+00> : vector<16xf32>
    %806 = vector.multi_reduction <add>, %805, %cst_130 [0] : vector<8x16xf32> to vector<16xf32>
    %807 = vector.shape_cast %806 : vector<16xf32> to vector<1x16xf32>
    %808 = arith.subf %783, %802 : vector<1x16xf32>
    %809 = math.exp %808 : vector<1x16xf32>
    %810 = arith.addf %807, %809 : vector<1x16xf32>
    %811 = math.log %810 : vector<1x16xf32>
    %812 = arith.addf %802, %811 : vector<1x16xf32>
    %813 = vector.broadcast %812 : vector<1x16xf32> to vector<8x16xf32>
    %814 = arith.subf %798, %813 : vector<8x16xf32>
    %815 = arith.subf %783, %812 : vector<1x16xf32>
    %c19_i32 = arith.constant 19 : i32
    %cst_131 = arith.constant dense<0xFF800000> : vector<8xf32>
    %816 = vector.multi_reduction <maximumf>, %814, %cst_131 [1] : vector<8x16xf32> to vector<8xf32>
    %817 = vector.shape_cast %816 : vector<8xf32> to vector<8x1xf32>
    %818 = arith.maximumf %817, %799 : vector<8x1xf32>
    %819 = vector.broadcast %818 : vector<8x1xf32> to vector<8x16xf32>
    %820 = arith.subf %814, %819 : vector<8x16xf32>
    %821 = math.exp %820 : vector<8x16xf32>
    %cst_132 = arith.constant dense<0.000000e+00> : vector<8xf32>
    %822 = vector.multi_reduction <add>, %821, %cst_132 [1] : vector<8x16xf32> to vector<8xf32>
    %823 = vector.shape_cast %822 : vector<8xf32> to vector<8x1xf32>
    %824 = arith.subf %799, %818 : vector<8x1xf32>
    %825 = math.exp %824 : vector<8x1xf32>
    %826 = arith.addf %823, %825 : vector<8x1xf32>
    %827 = math.log %826 : vector<8x1xf32>
    %828 = arith.addf %818, %827 : vector<8x1xf32>
    %829 = vector.broadcast %828 : vector<8x1xf32> to vector<8x16xf32>
    %830 = arith.subf %814, %829 : vector<8x16xf32>
    %831 = arith.subf %799, %828 : vector<8x1xf32>
    %cst_133 = arith.constant dense<0xFF800000> : vector<16xf32>
    %832 = vector.multi_reduction <maximumf>, %830, %cst_133 [0] : vector<8x16xf32> to vector<16xf32>
    %833 = vector.shape_cast %832 : vector<16xf32> to vector<1x16xf32>
    %834 = arith.maximumf %833, %815 : vector<1x16xf32>
    %835 = vector.broadcast %834 : vector<1x16xf32> to vector<8x16xf32>
    %836 = arith.subf %830, %835 : vector<8x16xf32>
    %837 = math.exp %836 : vector<8x16xf32>
    %cst_134 = arith.constant dense<0.000000e+00> : vector<16xf32>
    %838 = vector.multi_reduction <add>, %837, %cst_134 [0] : vector<8x16xf32> to vector<16xf32>
    %839 = vector.shape_cast %838 : vector<16xf32> to vector<1x16xf32>
    %840 = arith.subf %815, %834 : vector<1x16xf32>
    %841 = math.exp %840 : vector<1x16xf32>
    %842 = arith.addf %839, %841 : vector<1x16xf32>
    %843 = math.log %842 : vector<1x16xf32>
    %844 = arith.addf %834, %843 : vector<1x16xf32>
    %845 = vector.broadcast %844 : vector<1x16xf32> to vector<8x16xf32>
    %846 = arith.subf %830, %845 : vector<8x16xf32>
    %847 = arith.subf %815, %844 : vector<1x16xf32>
    %848 = math.exp %846 : vector<8x16xf32>
    %849 = vector.extract_strided_slice %1 {offsets = [0, 0], sizes = [8, 128], strides = [1, 1]} : vector<24x128xf32> to vector<8x128xf32>
    %850 = arith.truncf %849 : vector<8x128xf32> to vector<8x128xbf16>
    %851 = vector.extract_strided_slice %1 {offsets = [8, 0], sizes = [16, 128], strides = [1, 1]} : vector<24x128xf32> to vector<16x128xf32>
    %852 = arith.truncf %851 : vector<16x128xf32> to vector<16x128xbf16>
    %cst_135 = arith.constant dense<0.000000e+00> : vector<8x16xf32>
    %853 = tpu.matmul %850, %852, %cst_135 {dimension_numbers = #tpu.dot_dimension_numbers<[1], [1], [0], [0], [0, 0, 1, 0], [], []>} : vector<8x128xbf16>, vector<16x128xbf16>, vector<8x16xf32> -> vector<8x16xf32>
    %cst_136 = arith.constant 1.000000e+00 : f32
    %854 = vector.broadcast %cst_136 : f32 to vector<8x16xf32>
    %855 = arith.cmpf oeq, %853, %854 : vector<8x16xf32>
    %856 = arith.extui %855 : vector<8x16xi1> to vector<8x16xi32>
    %857 = arith.sitofp %856 : vector<8x16xi32> to vector<8x16xf32>
    %cst_137 = arith.constant 0.000000e+00 : f32
    %858 = vector.broadcast %cst_137 : f32 to vector<8x16xf32>
    %859 = arith.cmpf oeq, %853, %858 : vector<8x16xf32>
    %860 = arith.extui %859 : vector<8x16xi1> to vector<8x16xi32>
    %861 = arith.sitofp %860 : vector<8x16xi32> to vector<8x16xf32>
    %862 = arith.mulf %848, %857 : vector<8x16xf32>
    %cst_138 = arith.constant dense<0xFF800000> : vector<8xf32>
    %863 = vector.multi_reduction <maximumf>, %862, %cst_138 [1] : vector<8x16xf32> to vector<8xf32>
    %864 = vector.shape_cast %863 : vector<8xf32> to vector<8x1xf32>
    %865 = tpu.iota {dimensions = array<i32: 1>} : vector<8x16xi32>
    %866 = vector.broadcast %864 : vector<8x1xf32> to vector<8x16xf32>
    %867 = arith.cmpf oeq, %862, %866 : vector<8x16xf32>
    %c16_i32_139 = arith.constant 16 : i32
    %868 = vector.broadcast %c16_i32_139 : i32 to vector<8x16xi32>
    %869 = arith.select %867, %865, %868 : vector<8x16xi1>, vector<8x16xi32>
    %cst_140 = arith.constant dense<2147483647> : vector<8xi32>
    %870 = vector.multi_reduction <minsi>, %869, %cst_140 [1] : vector<8x16xi32> to vector<8xi32>
    %871 = vector.shape_cast %870 : vector<8xi32> to vector<8x1xi32>
    %872 = vector.broadcast %871 : vector<8x1xi32> to vector<8x16xi32>
    %873 = arith.cmpi eq, %865, %872 : vector<8x16xi32>
    %874 = arith.extui %873 : vector<8x16xi1> to vector<8x16xi32>
    %875 = arith.sitofp %874 : vector<8x16xi32> to vector<8x16xf32>
    %876 = arith.mulf %848, %875 : vector<8x16xf32>
    %cst_141 = arith.constant dense<0.000000e+00> : vector<8xf32>
    %877 = vector.multi_reduction <add>, %876, %cst_141 [1] : vector<8x16xf32> to vector<8xf32>
    %878 = vector.shape_cast %877 : vector<8xf32> to vector<8x1xf32>
    %cst_142 = arith.constant 1.000000e+00 : f32
    %879 = vector.broadcast %cst_142 : f32 to vector<8x1xf32>
    %880 = arith.subf %878, %879 : vector<8x1xf32>
    %881 = arith.mulf %880, %880 : vector<8x1xf32>
    %882 = vector.shape_cast %881 : vector<8x1xf32> to vector<1x8x1xf32>
    %cst_143 = arith.constant dense<0.000000e+00> : vector<1xf32>
    %883 = vector.multi_reduction <add>, %882, %cst_143 [1, 2] : vector<1x8x1xf32> to vector<1xf32>
    %884 = vector.shape_cast %883 : vector<1xf32> to vector<1x1x1xf32>
    %885 = vector.extract %884[0, 0, 0] : f32 from vector<1x1x1xf32>
    %886 = vector.broadcast %885 : f32 to vector<1x1xf32>
    %cst_144 = arith.constant 1.250000e-01 : f32
    %887 = vector.broadcast %cst_144 : f32 to vector<1x1xf32>
    %888 = arith.mulf %886, %887 : vector<1x1xf32>
    %889 = arith.mulf %848, %848 : vector<8x16xf32>
    %890 = arith.mulf %889, %861 : vector<8x16xf32>
    %891 = vector.shape_cast %890 : vector<8x16xf32> to vector<1x8x16xf32>
    %cst_145 = arith.constant dense<0.000000e+00> : vector<1xf32>
    %892 = vector.multi_reduction <add>, %891, %cst_145 [1, 2] : vector<1x8x16xf32> to vector<1xf32>
    %893 = vector.shape_cast %892 : vector<1xf32> to vector<1x1x1xf32>
    %894 = vector.extract %893[0, 0, 0] : f32 from vector<1x1x1xf32>
    %895 = vector.broadcast %894 : f32 to vector<1x1xf32>
    %896 = arith.mulf %848, %861 : vector<8x16xf32>
    %897 = vector.shape_cast %896 : vector<8x16xf32> to vector<1x8x16xf32>
    %cst_146 = arith.constant dense<0.000000e+00> : vector<1xf32>
    %898 = vector.multi_reduction <add>, %897, %cst_146 [1, 2] : vector<1x8x16xf32> to vector<1xf32>
    %899 = vector.shape_cast %898 : vector<1xf32> to vector<1x1x1xf32>
    %900 = vector.extract %899[0, 0, 0] : f32 from vector<1x1x1xf32>
    %901 = vector.broadcast %900 : f32 to vector<1x1xf32>
    %cst_147 = arith.constant 9.99999996E-13 : f32
    %902 = vector.broadcast %cst_147 : f32 to vector<1x1xf32>
    %903 = arith.maximumf %901, %902 : vector<1x1xf32>
    %904 = tpu.reciprocal %903 {approx = true} : vector<1x1xf32> -> vector<1x1xf32>
    %905 = arith.mulf %895, %904 : vector<1x1xf32>
    %906 = arith.addf %888, %905 : vector<1x1xf32>
    %907 = arith.truncf %848 : vector<8x16xf32> to vector<8x16xbf16>
    %908 = arith.truncf %79 : vector<8x8xf32> to vector<8x8xbf16>
    %cst_148 = arith.constant dense<0.000000e+00> : vector<8x16xf32>
    %909 = tpu.matmul %908, %907, %cst_148 {dimension_numbers = #tpu.dot_dimension_numbers<[1], [0], [0], [1], [0, 0, 1, 1], [], []>} : vector<8x8xbf16>, vector<8x16xbf16>, vector<8x16xf32> -> vector<8x16xf32>
    %910 = arith.truncf %80 : vector<16x16xf32> to vector<16x16xbf16>
    %cst_149 = arith.constant dense<0.000000e+00> : vector<8x16xf32>
    %911 = tpu.matmul %907, %910, %cst_149 {dimension_numbers = #tpu.dot_dimension_numbers<[1], [0], [0], [1], [0, 0, 1, 1], [], []>} : vector<8x16xbf16>, vector<16x16xbf16>, vector<8x16xf32> -> vector<8x16xf32>
    %912 = arith.subf %909, %911 : vector<8x16xf32>
    %913 = math.absf %912 : vector<8x16xf32>
    %914 = vector.shape_cast %913 : vector<8x16xf32> to vector<1x8x16xf32>
    %cst_150 = arith.constant dense<0.000000e+00> : vector<1xf32>
    %915 = vector.multi_reduction <add>, %914, %cst_150 [1, 2] : vector<1x8x16xf32> to vector<1xf32>
    %916 = vector.shape_cast %915 : vector<1xf32> to vector<1x1x1xf32>
    %917 = vector.extract %916[0, 0, 0] : f32 from vector<1x1x1xf32>
    %918 = vector.broadcast %917 : f32 to vector<1x1xf32>
    %cst_151 = arith.constant 7.812500e-03 : f32
    %919 = vector.broadcast %cst_151 : f32 to vector<1x1xf32>
    %920 = arith.mulf %918, %919 : vector<1x1xf32>
    %921 = tpu.iota {dimensions = array<i32: 1>} : vector<1x128xi32>
    %c0_i32_152 = arith.constant 0 : i32
    %922 = vector.broadcast %c0_i32_152 : i32 to vector<1x128xi32>
    %923 = arith.cmpi eq, %921, %922 : vector<1x128xi32>
    %c1_i32_153 = arith.constant 1 : i32
    %924 = vector.broadcast %c1_i32_153 : i32 to vector<1x128xi32>
    %925 = arith.cmpi eq, %921, %924 : vector<1x128xi32>
    %c2_i32_154 = arith.constant 2 : i32
    %926 = vector.broadcast %c2_i32_154 : i32 to vector<1x128xi32>
    %927 = arith.cmpi eq, %921, %926 : vector<1x128xi32>
    %cst_155 = arith.constant 0.000000e+00 : f32
    %928 = vector.shape_cast %920 : vector<1x1xf32> to vector<1x1xf32>
    %929 = vector.broadcast %928 : vector<1x1xf32> to vector<1x128xf32>
    %930 = vector.broadcast %cst_155 : f32 to vector<1x128xf32>
    %931 = arith.select %927, %929, %930 : vector<1x128xi1>, vector<1x128xf32>
    %932 = vector.shape_cast %906 : vector<1x1xf32> to vector<1x1xf32>
    %933 = vector.broadcast %932 : vector<1x1xf32> to vector<1x128xf32>
    %934 = arith.select %925, %933, %931 : vector<1x128xi1>, vector<1x128xf32>
    %935 = vector.shape_cast %173 : vector<1x1xf32> to vector<1x1xf32>
    %936 = vector.broadcast %935 : vector<1x1xf32> to vector<1x128xf32>
    %937 = arith.select %923, %936, %934 : vector<1x128xi1>, vector<1x128xf32>
    %c0_156 = arith.constant 0 : index
    %c0_157 = arith.constant 0 : index
    %938 = vector.load %arg5[%c0_156, %c0_157] : memref<1x128xf32, #tpu.memory_space<vmem>>, vector<1x128xf32>
    tpu.vector_store %arg5[%c0_156, %c0_157], %937 {strides = array<i32>} : memref<1x128xf32, #tpu.memory_space<vmem>>, vector<1x128xf32>,
    return
  }
}

</mosaic_0001>

<llo_original>
// kernel: _fused_call.1
$region0: #{_fused_call.1}
  #allocation0 [shape = 'u32[]', space=smem, size = 0x4, offset = 0x4, fixed_abs, tag = 'smem constant byte address 0x4 - core index']
  #allocation1 [shape = 'u32[144,128]{1,0:T(1,128)}', space=vmem, size = 0x12000, scoped, tag = 'internal scratch']
  %s0 = inlined_call_operand.hbm [shape: f32[24,64], index: 0, kind: input, shape index: {}]
  %s1 = inlined_call_operand.hbm [shape: f32[24,128], index: 1, kind: input, shape index: {}]
  %s2 = inlined_call_operand.hbm [shape: bf16[64,1664], index: 2, kind: input, shape index: {}]
  %s3 = inlined_call_operand.hbm [shape: bf16[512,128], index: 3, kind: input, shape index: {}]
  %s4 = inlined_call_operand.hbm [shape: f32[16,512], index: 4, kind: input, shape index: {}]
  %s5 = inlined_call_operand.vmem [shape: f32[1,128], index: 5, kind: output, shape index: {}]
  %s6 = sld [smem:[#allocation0]]
  $region50: #{_fused_call.1} parent=0
    _
  %s8 = ssub.s32 1, %s6
  %s9 = scalar_select 0, %s8, %s6
  $region1: #{_fused_call.1} parent=0
    #allocation2 [shape = 'u8[12288]{0}', space=vmem, size = 0x3000, scoped, tag = 'input window, operand 0, single buffered']
    #allocation3 [shape = 's32[1]{0}', space=sflag, size = 0x4, scoped, tag = 'scoped memory for _fused_call.1']
    #allocation4 [shape = 'u8[12288]{0}', space=vmem, size = 0x3000, scoped, tag = 'input window, operand 1, single buffered']
    #allocation5 [shape = 's32[1]{0}', space=sflag, size = 0x4, scoped, tag = 'scoped memory for _fused_call.1']
    #allocation6 [shape = 'u8[212992]{0}', space=vmem, size = 0x34000, scoped, tag = 'input window, operand 2, single buffered']
    #allocation7 [shape = 'u8[131072]{0}', space=vmem, size = 0x20000, scoped, tag = 'input window, operand 3, single buffered']
    #allocation8 [shape = 's32[1]{0}', space=sflag, size = 0x4, scoped, tag = 'scoped memory for _fused_call.1']
    #allocation9 [shape = 'u8[32768]{0}', space=vmem, size = 0x8000, scoped, tag = 'input window, operand 4, single buffered']
    %10 = vsyncpa [#allocation3], 0
    %11 = vsyncpa [#allocation5], 0
    %12 = vsyncpa [#allocation8], 0
    // Predicated region
    $region2: #{_fused_call.1} parent=1 // pred_check
      _
    $region3: #{_fused_call.1} parent=1 // pred_check_branch
      %14 = sbr.rel (0) target = $region5
    $region4: #{_fused_call.1} parent=1 // pred_region
      %s16 = ssub.s32 384, 384
      %17 = vsyncadd [#allocation3], %s16
      %s18 = sshll.u32 [#allocation2], 4
      %s19 = int_to_ptr.vmem [resolvable:$true] %s18
      %24 = dma.hbm_to_vmem [thread:$0]  %s0, 384, %s19, [#allocation3], 128, 128, 8
    $region5: #{_fused_call.1} parent=1 // pred_fallthru
      _
    // Predicated region
    $region6: #{_fused_call.1} parent=1 // pred_check
      _
    $region7: #{_fused_call.1} parent=1 // pred_check_branch
      %26 = sbr.rel (0) target = $region9
    $region8: #{_fused_call.1} parent=1 // pred_region
      %s28 = ssub.s32 384, 384
      %29 = vsyncadd [#allocation5], %s28
      %s30 = sshll.u32 [#allocation4], 4
      %s31 = int_to_ptr.vmem [resolvable:$true] %s30
      %36 = dma.hbm_to_vmem [thread:$0]  %s1, 384, %s31, [#allocation5], 128, 128, 8
    $region9: #{_fused_call.1} parent=1 // pred_fallthru
      _
    // Predicated region
    $region10: #{_fused_call.1} parent=1 // pred_check
      _
    $region11: #{_fused_call.1} parent=1 // pred_check_branch
      %38 = sbr.rel (0) target = $region13
    $region12: #{_fused_call.1} parent=1 // pred_region
      %s40 = ssub.s32 6656, 6656
      %41 = vsyncadd [#allocation5], %s40
      %s42 = sshll.u32 [#allocation6], 4
      %s43 = int_to_ptr.vmem [resolvable:$true] %s42
      %48 = dma.hbm_to_vmem [thread:$0]  %s2, 6656, %s43, [#allocation5], 832, 832, 52
    $region13: #{_fused_call.1} parent=1 // pred_fallthru
      _
    // Predicated region
    $region14: #{_fused_call.1} parent=1 // pred_check
      _
    $region15: #{_fused_call.1} parent=1 // pred_check_branch
      %50 = sbr.rel (0) target = $region17
    $region16: #{_fused_call.1} parent=1 // pred_region
      %s52 = ssub.s32 4096, 4096
      %53 = vsyncadd [#allocation8], %s52
      %s54 = sshll.u32 [#allocation7], 4
      %s55 = int_to_ptr.vmem [resolvable:$true] %s54
      %60 = dma.hbm_to_vmem [thread:$0]  %s3, 4096, %s55, [#allocation8], 64, 64, 4
    $region17: #{_fused_call.1} parent=1 // pred_fallthru
      _
    // Predicated region
    $region18: #{_fused_call.1} parent=1 // pred_check
      _
    $region19: #{_fused_call.1} parent=1 // pred_check_branch
      %62 = sbr.rel (0) target = $region21
    $region20: #{_fused_call.1} parent=1 // pred_region
      %s64 = ssub.s32 1024, 1024
      %65 = vsyncadd [#allocation8], %s64
      %s66 = sshll.u32 [#allocation9], 4
      %s67 = int_to_ptr.vmem [resolvable:$true] %s66
      %72 = dma.hbm_to_vmem [thread:$0]  %s4, 1024, %s67, [#allocation8], 512, 512, 32
    $region21: #{_fused_call.1} parent=1 // pred_fallthru
      _
    // Predicated region
    $region22: #{_fused_call.1} parent=1 // pred_check
      _
    $region23: #{_fused_call.1} parent=1 // pred_check_branch
      %74 = sbr.rel (0) target = $region25
    $region24: #{_fused_call.1} parent=1 // pred_region
      %75 = dma.done [#allocation3], 384
    $region25: #{_fused_call.1} parent=1 // pred_fallthru
      _
    // Predicated region
    $region26: #{_fused_call.1} parent=1 // pred_check
      _
    $region27: #{_fused_call.1} parent=1 // pred_check_branch
      %77 = sbr.rel (0) target = $region29
    $region28: #{_fused_call.1} parent=1 // pred_region
      %78 = dma.done [#allocation5], 384
    $region29: #{_fused_call.1} parent=1 // pred_fallthru
      _
    // Predicated region
    $region30: #{_fused_call.1} parent=1 // pred_check
      _
    $region31: #{_fused_call.1} parent=1 // pred_check_branch
      %80 = sbr.rel (0) target = $region33
    $region32: #{_fused_call.1} parent=1 // pred_region
      %81 = dma.done [#allocation5], 6656
    $region33: #{_fused_call.1} parent=1 // pred_fallthru
      _
    // Predicated region
    $region34: #{_fused_call.1} parent=1 // pred_check
      _
    $region35: #{_fused_call.1} parent=1 // pred_check_branch
      %83 = sbr.rel (0) target = $region37
    $region36: #{_fused_call.1} parent=1 // pred_region
      %84 = dma.done [#allocation8], 4096
    $region37: #{_fused_call.1} parent=1 // pred_fallthru
      _
    // Predicated region
    $region38: #{_fused_call.1} parent=1 // pred_check
      _
    $region39: #{_fused_call.1} parent=1 // pred_check_branch
      %86 = sbr.rel (0) target = $region41
    $region40: #{_fused_call.1} parent=1 // pred_region
      %87 = dma.done [#allocation8], 1024
    $region41: #{_fused_call.1} parent=1 // pred_fallthru
      _
    %v89 = vld [vmem:[#allocation2] sm:$0xff]
    %v90 = vld [vmem:[#allocation2 + $0x8] sm:$0xff]
    %v91 = vld [vmem:[#allocation2 + $0x10] sm:$0xff]
    %v92 = vld [vmem:[#allocation4] sm:$0xff]
    %v93 = vld [vmem:[#allocation4 + $0x8] sm:$0xff]
    %v94 = vld [vmem:[#allocation4 + $0x10] sm:$0xff]
    %v95 = vld [vmem:[#allocation6] sm:$0xff]
    %v96 = vld [vmem:[#allocation6 + $0x8] sm:$0xff]
    %v97 = vld [vmem:[#allocation6 + $0x10] sm:$0xff]
    %v98 = vld [vmem:[#allocation6 + $0x18] sm:$0xff]
    %v99 = vld [vmem:[#allocation6 + $0x20] sm:$0xff]
    %v100 = vld [vmem:[#allocation6 + $0x28] sm:$0xff]
    %v101 = vld [vmem:[#allocation6 + $0x30] sm:$0xf]
    %v102 = vld [vmem:[#allocation6 + $0x34] sm:$0xff]
    %v103 = vld [vmem:[#allocation6 + $0x3c] sm:$0xff]
    %v104 = vld [vmem:[#allocation6 + $0x44] sm:$0xff]
    %v105 = vld [vmem:[#allocation6 + $0x4c] sm:$0xff]
    %v106 = vld [vmem:[#allocation6 + $0x54] sm:$0xff]
    %v107 = vld [vmem:[#allocation6 + $0x5c] sm:$0xff]
    %v108 = vld [vmem:[#allocation6 + $0x64] sm:$0xf]
    %v109 = vld [vmem:[#allocation6 + $0x68] sm:$0xff]
    %v110 = vld [vmem:[#allocation6 + $0x70] sm:$0xff]
    %v111 = vld [vmem:[#allocation6 + $0x78] sm:$0xff]
    %v112 = vld [vmem:[#allocation6 + $0x80] sm:$0xff]
    %v113 = vld [vmem:[#allocation6 + $0x88] sm:$0xff]
    %v114 = vld [vmem:[#allocation6 + $0x90] sm:$0xff]
    %v115 = vld [vmem:[#allocation6 + $0x98] sm:$0xf]
    %v116 = vld [vmem:[#allocation6 + $0x9c] sm:$0xff]
    %v117 = vld [vmem:[#allocation6 + $0xa4] sm:$0xff]
    %v118 = vld [vmem:[#allocation6 + $0xac] sm:$0xff]
    %v119 = vld [vmem:[#allocation6 + $0xb4] sm:$0xff]
    %v120 = vld [vmem:[#allocation6 + $0xbc] sm:$0xff]
    %v121 = vld [vmem:[#allocation6 + $0xc4] sm:$0xff]
    %v122 = vld [vmem:[#allocation6 + $0xcc] sm:$0xf]
    %v123 = vld [vmem:[#allocation6 + $0xd0] sm:$0xff]
    %v124 = vld [vmem:[#allocation6 + $0xd8] sm:$0xff]
    %v125 = vld [vmem:[#allocation6 + $0xe0] sm:$0xff]
    %v126 = vld [vmem:[#allocation6 + $0xe8] sm:$0xff]
    %v127 = vld [vmem:[#allocation6 + $0xf0] sm:$0xff]
    %v128 = vld [vmem:[#allocation6 + $0xf8] sm:$0xff]
    %v129 = vld [vmem:[#allocation6 + $0x100] sm:$0xf]
    %v130 = vld [vmem:[#allocation6 + $0x104] sm:$0xff]
    %v131 = vld [vmem:[#allocation6 + $0x10c] sm:$0xff]
    %v132 = vld [vmem:[#allocation6 + $0x114] sm:$0xff]
    %v133 = vld [vmem:[#allocation6 + $0x11c] sm:$0xff]
    %v134 = vld [vmem:[#allocation6 + $0x124] sm:$0xff]
    %v135 = vld [vmem:[#allocation6 + $0x12c] sm:$0xff]
    %v136 = vld [vmem:[#allocation6 + $0x134] sm:$0xf]
    %v137 = vld [vmem:[#allocation6 + $0x138] sm:$0xff]
    %v138 = vld [vmem:[#allocation6 + $0x140] sm:$0xff]
    %v139 = vld [vmem:[#allocation6 + $0x148] sm:$0xff]
    %v140 = vld [vmem:[#allocation6 + $0x150] sm:$0xff]
    %v141 = vld [vmem:[#allocation6 + $0x158] sm:$0xff]
    %v142 = vld [vmem:[#allocation6 + $0x160] sm:$0xff]
    %v143 = vld [vmem:[#allocation6 + $0x168] sm:$0xf]
    %v144 = vld [vmem:[#allocation6 + $0x16c] sm:$0xff]
    %v145 = vld [vmem:[#allocation6 + $0x174] sm:$0xff]
    %v146 = vld [vmem:[#allocation6 + $0x17c] sm:$0xff]
    %v147 = vld [vmem:[#allocation6 + $0x184] sm:$0xff]
    %v148 = vld [vmem:[#allocation6 + $0x18c] sm:$0xff]
    %v149 = vld [vmem:[#allocation6 + $0x194] sm:$0xff]
    %v150 = vld [vmem:[#allocation6 + $0x19c] sm:$0xf]
    %v151 = vld [vmem:[#allocation9] sm:$0xff]
    %v152 = vld [vmem:[#allocation9 + $0x8] sm:$0xff]
    %v153 = vld [vmem:[#allocation9 + $0x10] sm:$0xff]
    %v154 = vld [vmem:[#allocation9 + $0x20] sm:$0xff]
    %v155 = vld [vmem:[#allocation9 + $0x28] sm:$0xff]
    %v156 = vld [vmem:[#allocation9 + $0x30] sm:$0xff]
    %v157 = vld [vmem:[#allocation9 + $0x38] sm:$0xff]
    %v158 = vlaneseq
    %v159 = vshrl.u32 %v158, 7
    %v160 = vadd.s32 %v159, 8
    %v161 = vadd.s32 %v159, 16
    %v162 = vlaneseq
    %v163 = vand.u32 %v162, 127
    %vm164 = vcmp.lt.s32.totalorder %v159, 8
    %vm165 = vcmp.lt.s32.totalorder %v160, 8
    %vm166 = vcmp.lt.s32.totalorder %v161, 8
    %vm167 = vcmp.lt.s32.totalorder %v163, 8
    %vm168 = vmand %vm164, %vm167
    %vm169 = vmand %vm165, %vm167
    %vm170 = vmand %vm166, %vm167
    %vm171 = vcmp.ge.s32.totalorder %v159, 8
    %vm172 = vcmp.ge.s32.totalorder %v160, 8
    %vm173 = vcmp.ge.s32.totalorder %v161, 8
    %vm174 = vcmp.ge.s32.totalorder %v163, 8
    %vm175 = vmand %vm171, %vm174
    %vm176 = vmand %vm172, %vm174
    %vm177 = vmand %vm173, %vm174
    %vm178 = vmor %vm168, %vm175
    %vm179 = vmor %vm169, %vm176
    %vm180 = vmor %vm170, %vm177
    %v181 = vsel %vm178, 0.0, -1e+30
    %v182 = vsel %vm179, 0.0, -1e+30
    %v183 = vsel %vm180, 0.0, -1e+30
    %v184 = vpack.c.bf16 %v90, %v89
    %v185 = vpack.c.bf16 %v91, %v91
    %v186 = vlaneseq
    %v187 = vshrl.u32 %v186, 7
    %v188 = vsub.s32 0, %v187
    %v189 = vrot.slane %v151, %v188
    %v190 = vlaneseq
    %v191 = vshrl.u32 %v190, 7
    %v192 = vsub.s32 0, %v191
    %v193 = vrot.slane %v152, %v192
    %v194 = vlaneseq
    %v195 = vshrl.u32 %v194, 7
    %v196 = vsub.s32 0, %v195
    %v197 = vrot.slane %v153, %v196
    %v214 = vunpack.c.l.b16 %v95
    %v215 = vunpack.c.h.b16 %v95
    %v216 = vunpack.c.l.b16 %v96
    %v217 = vunpack.c.l.b16 %v102
    %v218 = vunpack.c.h.b16 %v102
    %v219 = vunpack.c.l.b16 %v103
    %v220 = vunpack.c.l.b16 %v109
    %v221 = vunpack.c.h.b16 %v109
    %v222 = vunpack.c.l.b16 %v110
    %v223 = vunpack.c.l.b16 %v116
    %v224 = vunpack.c.h.b16 %v116
    %v225 = vunpack.c.l.b16 %v117
    %v226 = vunpack.c.l.b16 %v123
    %v227 = vunpack.c.h.b16 %v123
    %v228 = vunpack.c.l.b16 %v124
    %v229 = vunpack.c.l.b16 %v130
    %v230 = vunpack.c.h.b16 %v130
    %v231 = vunpack.c.l.b16 %v131
    %v232 = vunpack.c.l.b16 %v137
    %v233 = vunpack.c.h.b16 %v137
    %v234 = vunpack.c.l.b16 %v138
    %v235 = vunpack.c.l.b16 %v144
    %v236 = vunpack.c.h.b16 %v144
    %v237 = vunpack.c.l.b16 %v145
    %v238 = vpack.c.b16 %v217, %v214
    %v239 = vpack.c.b16 %v218, %v215
    %v240 = vpack.c.b16 %v219, %v216
    %v241 = vpack.c.b16 %v223, %v220
    %v242 = vpack.c.b16 %v224, %v221
    %v243 = vpack.c.b16 %v225, %v222
    %v244 = vpack.c.b16 %v229, %v226
    %v245 = vpack.c.b16 %v230, %v227
    %v246 = vpack.c.b16 %v231, %v228
    %v247 = vpack.c.b16 %v235, %v232
    %v248 = vpack.c.b16 %v236, %v233
    %v249 = vpack.c.b16 %v237, %v234
    %vm262 = vcmask 523264
    %v264 = vsel %vm262, %v184, 0
    %v267 = vsel %vm262, %v185, 0
    %269 = vmatprep.subr.bf16.mxu0 0
    %270 = vmatpush1.bf16.msra.mxu0 0
    %271 = vmatprep.subr.bf16.mxu0 0
    %272 = vmatpush1.bf16.msra.mxu0 0
    %273 = vmatprep.subr.bf16.mxu0 0
    %274 = vmatpush1.bf16.msra.mxu0 0
    %275 = vmatprep.subr.bf16.mxu0 0
    %276 = vmatpush1.bf16.msra.mxu0 0
    %277 = vmatprep.subr.bf16.mxu0 %v248
    %278 = vmatpush1.bf16.msra.mxu0 %v247
    %279 = vmatprep.subr.bf16.mxu0 %v245
    %280 = vmatpush1.bf16.msra.mxu0 %v244
    %281 = vmatprep.subr.bf16.mxu0 %v242
    %282 = vmatpush1.bf16.msra.mxu0 %v241
    %283 = vmatprep.subr.bf16.mxu0 %v239
    %284 = vmatpush1.bf16.msra.mxu0 %v238
    %285 = vmatprep.subr.bf16.mxu0 0
    %286 = vmatpush2.bf16.msra.mxu0 0
    %287 = vmatprep.subr.bf16.mxu0 0
    %288 = vmatpush2.bf16.msra.mxu0 0
    %289 = vmatprep.subr.bf16.mxu0 0
    %290 = vmatpush2.bf16.msra.mxu0 0
    %291 = vmatprep.subr.bf16.mxu0 0
    %292 = vmatpush2.bf16.msra.mxu0 0
    %293 = vmatprep.subr.bf16.mxu0 0
    %294 = vmatpush2.bf16.msra.mxu0 0
    %295 = vmatprep.subr.bf16.mxu0 0
    %296 = vmatpush2.bf16.msra.mxu0 0
    %297 = vmatprep.subr.bf16.mxu0 0
    %298 = vmatpush2.bf16.msra.mxu0 0
    %299 = vmatprep.subr.bf16.mxu0 0
    %300 = vmatpush2.bf16.msra.mxu0 0
    %301 = vmatprep.mubr.bf16.mxu0 0
    %302 = vmatmul.mubr.bf16.gmra.mxu0 %v264
    %v303 = vpop.f32.mrf.mxu0
    %v304 = vadd.f32 %v189, %v303
    %v305 = vpop.f32.mrf.mxu0
    %v306 = vadd.f32 %v193, %v305
    %v307 = vpop.f32.mrf.mxu0
    %v308 = vadd.f32 %v189, %v307
    %v309 = vpop.f32.mrf.mxu0
    %v310 = vadd.f32 %v193, %v309
    %311 = vmatprep.mubr.bf16.mxu0 0
    %312 = vmatmul.mubr.bf16.gmra.mxu0 %v267
    %v313 = vpop.f32.mrf.mxu0
    %v314 = vadd.f32 %v189, %v313
    %v315 = vpop.f32.mrf.mxu0
    %v316 = vadd.f32 %v193, %v315
    %v317 = vpop.f32.mrf.mxu0
    %v318 = vpop.f32.mrf.mxu0
    %319 = vdwg.mxu0
    %320 = vmatprep.subr.bf16.mxu0 0
    %321 = vmatpush1.bf16.msra.mxu0 0
    %322 = vmatprep.subr.bf16.mxu0 0
    %323 = vmatpush1.bf16.msra.mxu0 0
    %324 = vmatprep.subr.bf16.mxu0 0
    %325 = vmatpush1.bf16.msra.mxu0 0
    %326 = vmatprep.subr.bf16.mxu0 0
    %327 = vmatpush1.bf16.msra.mxu0 0
    %328 = vmatprep.subr.bf16.mxu0 0
    %329 = vmatpush1.bf16.msra.mxu0 %v249
    %330 = vmatprep.subr.bf16.mxu0 0
    %331 = vmatpush1.bf16.msra.mxu0 %v246
    %332 = vmatprep.subr.bf16.mxu0 0
    %333 = vmatpush1.bf16.msra.mxu0 %v243
    %334 = vmatprep.subr.bf16.mxu0 0
    %335 = vmatpush1.bf16.msra.mxu0 %v240
    %336 = vmatprep.subr.bf16.mxu0 0
    %337 = vmatpush2.bf16.msra.mxu0 0
    %338 = vmatprep.subr.bf16.mxu0 0
    %339 = vmatpush2.bf16.msra.mxu0 0
    %340 = vmatprep.subr.bf16.mxu0 0
    %341 = vmatpush2.bf16.msra.mxu0 0
    %342 = vmatprep.subr.bf16.mxu0 0
    %343 = vmatpush2.bf16.msra.mxu0 0
    %344 = vmatprep.subr.bf16.mxu0 0
    %345 = vmatpush2.bf16.msra.mxu0 0
    %346 = vmatprep.subr.bf16.mxu0 0
    %347 = vmatpush2.bf16.msra.mxu0 0
    %348 = vmatprep.subr.bf16.mxu0 0
    %349 = vmatpush2.bf16.msra.mxu0 0
    %350 = vmatprep.subr.bf16.mxu0 0
    %351 = vmatpush2.bf16.msra.mxu0 0
    %352 = vmatprep.mubr.bf16.mxu0 0
    %353 = vmatmul.mubr.bf16.gmra.mxu0 %v264
    %v354 = vpop.f32.mrf.mxu0
    %v355 = vadd.f32 %v197, %v354
    %v356 = vpop.f32.mrf.mxu0
    %v357 = vpop.f32.mrf.mxu0
    %v358 = vadd.f32 %v197, %v357
    %v359 = vpop.f32.mrf.mxu0
    %360 = vmatprep.mubr.bf16.mxu0 0
    %361 = vmatmul.mubr.bf16.gmra.mxu0 %v267
    %v362 = vpop.f32.mrf.mxu0
    %v363 = vadd.f32 %v197, %v362
    %v364 = vpop.f32.mrf.mxu0
    %v365 = vpop.f32.mrf.mxu0
    %v366 = vpop.f32.mrf.mxu0
    %367 = vdwg.mxu0
    %v368 = vpack.c.bf16 %v308, %v304
    %v369 = vpack.c.bf16 %v314, %v314
    %v370 = vpack.c.bf16 %v310, %v306
    %v371 = vpack.c.bf16 %v316, %v316
    %v373 = vsel %vm262, %v368, 0
    %v376 = vsel %vm262, %v369, 0
    %v379 = vsel %vm262, %v370, 0
    %v382 = vsel %vm262, %v371, 0
    %384 = vmatprep.subr.bf16.mxu0 0
    %385 = vmatpush1.bf16.xpose.msra.mxu0 0
    %386 = vmatprep.subr.bf16.mxu0 0
    %387 = vmatpush1.bf16.xpose.msra.mxu0 0
    %388 = vmatprep.subr.bf16.mxu0 0
    %389 = vmatpush1.bf16.xpose.msra.mxu0 0
    %390 = vmatprep.subr.bf16.mxu0 0
    %391 = vmatpush1.bf16.xpose.msra.mxu0 0
    %392 = vmatprep.subr.bf16.mxu0 0
    %393 = vmatpush1.bf16.xpose.msra.mxu0 0
    %394 = vmatprep.subr.bf16.mxu0 0
    %395 = vmatpush1.bf16.xpose.msra.mxu0 0
    %396 = vmatprep.subr.bf16.mxu0 0
    %397 = vmatpush1.bf16.xpose.msra.mxu0 %v382
    %398 = vmatprep.subr.bf16.mxu0 0
    %399 = vmatpush1.bf16.xpose.msra.mxu0 %v379
    %400 = vmatprep.subr.bf16.mxu0 0
    %401 = vmatpush2.bf16.xpose.msra.mxu0 0
    %402 = vmatprep.subr.bf16.mxu0 0
    %403 = vmatpush2.bf16.xpose.msra.mxu0 0
    %404 = vmatprep.subr.bf16.mxu0 0
    %405 = vmatpush2.bf16.xpose.msra.mxu0 0
    %406 = vmatprep.subr.bf16.mxu0 0
    %407 = vmatpush2.bf16.xpose.msra.mxu0 0
    %408 = vmatprep.subr.bf16.mxu0 0
    %409 = vmatpush2.bf16.xpose.msra.mxu0 0
    %410 = vmatprep.subr.bf16.mxu0 0
    %411 = vmatpush2.bf16.xpose.msra.mxu0 0
    %412 = vmatprep.subr.bf16.mxu0 0
    %413 = vmatpush2.bf16.xpose.msra.mxu0 0
    %414 = vmatprep.subr.bf16.mxu0 0
    %415 = vmatpush2.bf16.xpose.msra.mxu0 0
    %416 = vmatprep.mubr.bf16.mxu0 0
    %417 = vmatmul.mubr.bf16.gmra.mxu0 %v373
    %v418 = vpop.f32.mrf.mxu0
    %v419 = vadd.f32 0.0, %v418
    %v420 = vpop.f32.mrf.mxu0
    %v421 = vpop.f32.mrf.mxu0
    %v422 = vadd.f32 0.0, %v421
    %v423 = vpop.f32.mrf.mxu0
    %424 = vmatprep.mubr.bf16.mxu0 0
    %425 = vmatmul.mubr.bf16.gmra.mxu0 %v376
    %v426 = vpop.f32.mrf.mxu0
    %v427 = vadd.f32 0.0, %v426
    %v428 = vpop.f32.mrf.mxu0
    %v429 = vpop.f32.mrf.mxu0
    %v430 = vpop.f32.mrf.mxu0
    %431 = vdwg.mxu0
    %v432 = vmul.f32 %v419, 0.125
    %v433 = vmul.f32 %v422, 0.125
    %v434 = vmul.f32 %v427, 0.125
    %v435 = vadd.f32 %v432, %v181
    %v436 = vadd.f32 %v433, %v182
    %v437 = vadd.f32 %v434, %v183
    %vm438 = vcmask 195584
    %v439 = vsel %vm438, %v435, -inf
    %440 = vmax.xlane.f32.xlu0 %v439
    %v441 = vpop.xlane.xlu0 %440
    %v442 = vsel %vm438, %v436, -inf
    %443 = vmax.xlane.f32.xlu0 %v442
    %v444 = vpop.xlane.xlu0 %443
    %v445 = vsel %vm438, %v437, -inf
    %446 = vmax.xlane.f32.xlu0 %v445
    %v447 = vpop.xlane.xlu0 %446
    %v448 = vsub.f32 %v435, %v441
    %v449 = vsub.f32 %v436, %v444
    %v450 = vsub.f32 %v437, %v447
    %v451 = vmul.f32 %v448, 1.442695
    %v452 = vpow.pop %v451
    %v453 = vmul.f32 %v449, 1.442695
    %v454 = vpow.pop %v453
    %v455 = vmul.f32 %v450, 1.442695
    %v456 = vpow.pop %v455
    %v457 = vsel %vm438, %v452, 0.0
    %458 = vadd.xlane.f32.xlu0 %v457
    %v459 = vpop.xlane.xlu0 %458
    %v460 = vsel %vm438, %v454, 0.0
    %461 = vadd.xlane.f32.xlu0 %v460
    %v462 = vpop.xlane.xlu0 %461
    %v463 = vsel %vm438, %v456, 0.0
    %464 = vadd.xlane.f32.xlu0 %v463
    %v465 = vpop.xlane.xlu0 %464
    %v466 = vrcp.pop %v459
    %v467 = vrcp.pop %v462
    %v468 = vrcp.pop %v465
    %v469 = vmul.f32 %v452, %v466
    %v470 = vmul.f32 %v454, %v467
    %v471 = vmul.f32 %v456, %v468
    %v472 = vpack.c.bf16 %v470, %v469
    %v473 = vpack.c.bf16 %v471, %v471
    %v474 = vpack.c.bf16 %v358, %v355
    %v475 = vpack.c.bf16 %v363, %v363
    %v477 = vsel %vm438, %v472, 0
    %v480 = vsel %vm438, %v473, 0
    %vm482 = vcmask 1043456
    %v484 = vsel %vm482, %v475, 0
    %486 = vmatprep.subr.bf16.mxu0 0
    %487 = vmatpush1.bf16.msra.mxu0 0
    %488 = vmatprep.subr.bf16.mxu0 0
    %489 = vmatpush1.bf16.msra.mxu0 0
    %490 = vmatprep.subr.bf16.mxu0 0
    %491 = vmatpush1.bf16.msra.mxu0 0
    %492 = vmatprep.subr.bf16.mxu0 0
    %493 = vmatpush1.bf16.msra.mxu0 0
    %494 = vmatprep.subr.bf16.mxu0 0
    %495 = vmatpush1.bf16.msra.mxu0 0
    %496 = vmatprep.subr.bf16.mxu0 0
    %497 = vmatpush1.bf16.msra.mxu0 0
    %498 = vmatprep.subr.bf16.mxu0 0
    %499 = vmatpush1.bf16.msra.mxu0 %v484
    %500 = vmatprep.subr.bf16.mxu0 0
    %501 = vmatpush1.bf16.msra.mxu0 %v474
    %502 = vmatprep.subr.bf16.mxu0 0
    %503 = vmatpush2.bf16.msra.mxu0 0
    %504 = vmatprep.subr.bf16.mxu0 0
    %505 = vmatpush2.bf16.msra.mxu0 0
    %506 = vmatprep.subr.bf16.mxu0 0
    %507 = vmatpush2.bf16.msra.mxu0 0
    %508 = vmatprep.subr.bf16.mxu0 0
    %509 = vmatpush2.bf16.msra.mxu0 0
    %510 = vmatprep.subr.bf16.mxu0 0
    %511 = vmatpush2.bf16.msra.mxu0 0
    %512 = vmatprep.subr.bf16.mxu0 0
    %513 = vmatpush2.bf16.msra.mxu0 0
    %514 = vmatprep.subr.bf16.mxu0 0
    %515 = vmatpush2.bf16.msra.mxu0 0
    %516 = vmatprep.subr.bf16.mxu0 0
    %517 = vmatpush2.bf16.msra.mxu0 0
    %518 = vmatprep.mubr.bf16.mxu0 0
    %519 = vmatmul.mubr.bf16.gmra.mxu0 %v477
    %v520 = vpop.f32.mrf.mxu0
    %v521 = vadd.f32 0.0, %v520
    %v522 = vpop.f32.mrf.mxu0
    %v523 = vpop.f32.mrf.mxu0
    %v524 = vadd.f32 0.0, %v523
    %v525 = vpop.f32.mrf.mxu0
    %526 = vmatprep.mubr.bf16.mxu0 0
    %527 = vmatmul.mubr.bf16.gmra.mxu0 %v480
    %v528 = vpop.f32.mrf.mxu0
    %v529 = vadd.f32 0.0, %v528
    %v530 = vpop.f32.mrf.mxu0
    %v531 = vpop.f32.mrf.mxu0
    %v532 = vpop.f32.mrf.mxu0
    %533 = vdwg.mxu0
    %v534 = vpack.c.bf16 %v524, %v521
    %v535 = vpack.c.bf16 %v529, %v529
    %v536 = vlaneseq
    %v537 = vshrl.u32 %v536, 7
    %v538 = vsub.s32 2, %v537
    %v539 = vrot.slane %v151, %v538
    %v548 = vunpack.c.l.b16 %v98
    %v549 = vunpack.c.l.b16 %v105
    %v550 = vunpack.c.l.b16 %v112
    %v551 = vunpack.c.l.b16 %v119
    %v552 = vunpack.c.l.b16 %v126
    %v553 = vunpack.c.l.b16 %v133
    %v554 = vunpack.c.l.b16 %v140
    %v555 = vunpack.c.l.b16 %v147
    %v556 = vpack.c.b16 %v549, %v548
    %v557 = vpack.c.b16 %v551, %v550
    %v558 = vpack.c.b16 %v553, %v552
    %v559 = vpack.c.b16 %v555, %v554
    %v565 = vsel %vm262, %v534, 0
    %v568 = vsel %vm262, %v535, 0
    %570 = vmatprep.subr.bf16.mxu0 0
    %571 = vmatpush1.bf16.msra.mxu0 0
    %572 = vmatprep.subr.bf16.mxu0 0
    %573 = vmatpush1.bf16.msra.mxu0 0
    %574 = vmatprep.subr.bf16.mxu0 0
    %575 = vmatpush1.bf16.msra.mxu0 0
    %576 = vmatprep.subr.bf16.mxu0 0
    %577 = vmatpush1.bf16.msra.mxu0 0
    %578 = vmatprep.subr.bf16.mxu0 0
    %579 = vmatpush1.bf16.msra.mxu0 %v559
    %580 = vmatprep.subr.bf16.mxu0 0
    %581 = vmatpush1.bf16.msra.mxu0 %v558
    %582 = vmatprep.subr.bf16.mxu0 0
    %583 = vmatpush1.bf16.msra.mxu0 %v557
    %584 = vmatprep.subr.bf16.mxu0 0
    %585 = vmatpush1.bf16.msra.mxu0 %v556
    %586 = vmatprep.subr.bf16.mxu0 0
    %587 = vmatpush2.bf16.msra.mxu0 0
    %588 = vmatprep.subr.bf16.mxu0 0
    %589 = vmatpush2.bf16.msra.mxu0 0
    %590 = vmatprep.subr.bf16.mxu0 0
    %591 = vmatpush2.bf16.msra.mxu0 0
    %592 = vmatprep.subr.bf16.mxu0 0
    %593 = vmatpush2.bf16.msra.mxu0 0
    %594 = vmatprep.subr.bf16.mxu0 0
    %595 = vmatpush2.bf16.msra.mxu0 0
    %596 = vmatprep.subr.bf16.mxu0 0
    %597 = vmatpush2.bf16.msra.mxu0 0
    %598 = vmatprep.subr.bf16.mxu0 0
    %599 = vmatpush2.bf16.msra.mxu0 0
    %600 = vmatprep.subr.bf16.mxu0 0
    %601 = vmatpush2.bf16.msra.mxu0 0
    %602 = vmatprep.mubr.bf16.mxu0 0
    %603 = vmatmul.mubr.bf16.gmra.mxu0 %v565
    %v604 = vpop.f32.mrf.mxu0
    %v605 = vadd.f32 %v539, %v604
    %v606 = vpop.f32.mrf.mxu0
    %v607 = vpop.f32.mrf.mxu0
    %v608 = vadd.f32 %v539, %v607
    %v609 = vpop.f32.mrf.mxu0
    %610 = vmatprep.mubr.bf16.mxu0 0
    %611 = vmatmul.mubr.bf16.gmra.mxu0 %v568
    %v612 = vpop.f32.mrf.mxu0
    %v613 = vadd.f32 %v539, %v612
    %v614 = vpop.f32.mrf.mxu0
    %v615 = vpop.f32.mrf.mxu0
    %v616 = vpop.f32.mrf.mxu0
    %617 = vdwg.mxu0
    %v618 = vadd.f32 %v605, %v89
    %v619 = vadd.f32 %v608, %v90
    %v620 = vadd.f32 %v613, %v91
    %v621 = vsel %vm262, %v618, 0.0
    %622 = vadd.xlane.f32.xlu0 %v621
    %v623 = vpop.xlane.xlu0 %622
    %v624 = vsel %vm262, %v619, 0.0
    %625 = vadd.xlane.f32.xlu0 %v624
    %v626 = vpop.xlane.xlu0 %625
    %v627 = vsel %vm262, %v620, 0.0
    %628 = vadd.xlane.f32.xlu0 %v627
    %v629 = vpop.xlane.xlu0 %628
    %v630 = vrcp.pop 64.0
    %v631 = vmul.f32 %v623, %v630
    %v632 = vmul.f32 %v626, %v630
    %v633 = vmul.f32 %v629, %v630
    %v634 = vsub.f32 %v618, %v631
    %v635 = vsub.f32 %v619, %v632
    %v636 = vsub.f32 %v620, %v633
    %v637 = vmul.f32 %v634, %v634
    %v638 = vmul.f32 %v635, %v635
    %v639 = vmul.f32 %v636, %v636
    %v640 = vsel %vm262, %v637, 0.0
    %641 = vadd.xlane.f32.xlu0 %v640
    %v642 = vpop.xlane.xlu0 %641
    %v643 = vsel %vm262, %v638, 0.0
    %644 = vadd.xlane.f32.xlu0 %v643
    %v645 = vpop.xlane.xlu0 %644
    %v646 = vsel %vm262, %v639, 0.0
    %647 = vadd.xlane.f32.xlu0 %v646
    %v648 = vpop.xlane.xlu0 %647
    %v649 = vmul.f32 %v642, %v630
    %v650 = vmul.f32 %v645, %v630
    %v651 = vmul.f32 %v648, %v630
    %v652 = vadd.f32 %v649, 1e-05
    %v653 = vadd.f32 %v650, 1e-05
    %v654 = vadd.f32 %v651, 1e-05
    %v655 = vrsqrt.pop %v652
    %v656 = vrsqrt.pop %v653
    %v657 = vrsqrt.pop %v654
    %v658 = vmul.f32 %v634, %v655
    %v659 = vmul.f32 %v635, %v656
    %v660 = vmul.f32 %v636, %v657
    %v661 = vlaneseq
    %v662 = vshrl.u32 %v661, 7
    %v663 = vsub.s32 4, %v662
    %v664 = vrot.slane %v151, %v663
    %v665 = vmul.f32 %v658, %v664
    %v666 = vmul.f32 %v659, %v664
    %v667 = vmul.f32 %v660, %v664
    %v668 = vlaneseq
    %v669 = vshrl.u32 %v668, 7
    %v670 = vsub.s32 5, %v669
    %v671 = vrot.slane %v151, %v670
    %v672 = vadd.f32 %v665, %v671
    %v673 = vadd.f32 %v666, %v671
    %v674 = vadd.f32 %v667, %v671
    %v675 = vpack.c.bf16 %v673, %v672
    %v676 = vpack.c.bf16 %v674, %v674
    %v677 = vlaneseq
    %v678 = vshrl.u32 %v677, 7
    %v679 = vsub.s32 1, %v678
    %v680 = vrot.slane %v151, %v679
    %v681 = vlaneseq
    %v682 = vshrl.u32 %v681, 7
    %v683 = vsub.s32 1, %v682
    %v684 = vrot.slane %v152, %v683
    %v685 = vlaneseq
    %v686 = vshrl.u32 %v685, 7
    %v687 = vsub.s32 1, %v686
    %v688 = vrot.slane %v153, %v687
    %v697 = vunpack.c.h.b16 %v96
    %v698 = vunpack.c.l.b16 %v97
    %v699 = vunpack.c.h.b16 %v97
    %v700 = vunpack.c.h.b16 %v103
    %v701 = vunpack.c.l.b16 %v104
    %v702 = vunpack.c.h.b16 %v104
    %v703 = vunpack.c.h.b16 %v110
    %v704 = vunpack.c.l.b16 %v111
    %v705 = vunpack.c.h.b16 %v111
    %v706 = vunpack.c.h.b16 %v117
    %v707 = vunpack.c.l.b16 %v118
    %v708 = vunpack.c.h.b16 %v118
    %v709 = vunpack.c.h.b16 %v124
    %v710 = vunpack.c.l.b16 %v125
    %v711 = vunpack.c.h.b16 %v125
    %v712 = vunpack.c.h.b16 %v131
    %v713 = vunpack.c.l.b16 %v132
    %v714 = vunpack.c.h.b16 %v132
    %v715 = vunpack.c.h.b16 %v138
    %v716 = vunpack.c.l.b16 %v139
    %v717 = vunpack.c.h.b16 %v139
    %v718 = vunpack.c.h.b16 %v145
    %v719 = vunpack.c.l.b16 %v146
    %v720 = vunpack.c.h.b16 %v146
    %v721 = vpack.c.b16 %v700, %v697
    %v722 = vpack.c.b16 %v701, %v698
    %v723 = vpack.c.b16 %v702, %v699
    %v724 = vpack.c.b16 %v706, %v703
    %v725 = vpack.c.b16 %v707, %v704
    %v726 = vpack.c.b16 %v708, %v705
    %v727 = vpack.c.b16 %v712, %v709
    %v728 = vpack.c.b16 %v713, %v710
    %v729 = vpack.c.b16 %v714, %v711
    %v730 = vpack.c.b16 %v718, %v715
    %v731 = vpack.c.b16 %v719, %v716
    %v732 = vpack.c.b16 %v720, %v717
    %v746 = vsel %vm262, %v675, 0
    %v749 = vsel %vm262, %v676, 0
    %751 = vmatprep.subr.bf16.mxu0 0
    %752 = vmatpush1.bf16.msra.mxu0 0
    %753 = vmatprep.subr.bf16.mxu0 0
    %754 = vmatpush1.bf16.msra.mxu0 0
    %755 = vmatprep.subr.bf16.mxu0 0
    %756 = vmatpush1.bf16.msra.mxu0 0
    %757 = vmatprep.subr.bf16.mxu0 0
    %758 = vmatpush1.bf16.msra.mxu0 0
    %759 = vmatprep.subr.bf16.mxu0 %v731
    %760 = vmatpush1.bf16.msra.mxu0 %v730
    %761 = vmatprep.subr.bf16.mxu0 %v728
    %762 = vmatpush1.bf16.msra.mxu0 %v727
    %763 = vmatprep.subr.bf16.mxu0 %v725
    %764 = vmatpush1.bf16.msra.mxu0 %v724
    %765 = vmatprep.subr.bf16.mxu0 %v722
    %766 = vmatpush1.bf16.msra.mxu0 %v721
    %767 = vmatprep.subr.bf16.mxu0 0
    %768 = vmatpush2.bf16.msra.mxu0 0
    %769 = vmatprep.subr.bf16.mxu0 0
    %770 = vmatpush2.bf16.msra.mxu0 0
    %771 = vmatprep.subr.bf16.mxu0 0
    %772 = vmatpush2.bf16.msra.mxu0 0
    %773 = vmatprep.subr.bf16.mxu0 0
    %774 = vmatpush2.bf16.msra.mxu0 0
    %775 = vmatprep.subr.bf16.mxu0 0
    %776 = vmatpush2.bf16.msra.mxu0 0
    %777 = vmatprep.subr.bf16.mxu0 0
    %778 = vmatpush2.bf16.msra.mxu0 0
    %779 = vmatprep.subr.bf16.mxu0 0
    %780 = vmatpush2.bf16.msra.mxu0 0
    %781 = vmatprep.subr.bf16.mxu0 0
    %782 = vmatpush2.bf16.msra.mxu0 0
    %783 = vmatprep.mubr.bf16.mxu0 0
    %784 = vmatmul.mubr.bf16.gmra.mxu0 %v746
    %v785 = vpop.f32.mrf.mxu0
    %v786 = vadd.f32 %v680, %v785
    %v787 = vpop.f32.mrf.mxu0
    %v788 = vadd.f32 %v684, %v787
    %v789 = vpop.f32.mrf.mxu0
    %v790 = vadd.f32 %v680, %v789
    %v791 = vpop.f32.mrf.mxu0
    %v792 = vadd.f32 %v684, %v791
    %793 = vmatprep.mubr.bf16.mxu0 0
    %794 = vmatmul.mubr.bf16.gmra.mxu0 %v749
    %v795 = vpop.f32.mrf.mxu0
    %v796 = vadd.f32 %v680, %v795
    %v797 = vpop.f32.mrf.mxu0
    %v798 = vadd.f32 %v684, %v797
    %v799 = vpop.f32.mrf.mxu0
    %v800 = vpop.f32.mrf.mxu0
    %801 = vdwg.mxu0
    %802 = vmatprep.subr.bf16.mxu0 0
    %803 = vmatpush1.bf16.msra.mxu0 0
    %804 = vmatprep.subr.bf16.mxu0 0
    %805 = vmatpush1.bf16.msra.mxu0 0
    %806 = vmatprep.subr.bf16.mxu0 0
    %807 = vmatpush1.bf16.msra.mxu0 0
    %808 = vmatprep.subr.bf16.mxu0 0
    %809 = vmatpush1.bf16.msra.mxu0 0
    %810 = vmatprep.subr.bf16.mxu0 0
    %811 = vmatpush1.bf16.msra.mxu0 %v732
    %812 = vmatprep.subr.bf16.mxu0 0
    %813 = vmatpush1.bf16.msra.mxu0 %v729
    %814 = vmatprep.subr.bf16.mxu0 0
    %815 = vmatpush1.bf16.msra.mxu0 %v726
    %816 = vmatprep.subr.bf16.mxu0 0
    %817 = vmatpush1.bf16.msra.mxu0 %v723
    %818 = vmatprep.subr.bf16.mxu0 0
    %819 = vmatpush2.bf16.msra.mxu0 0
    %820 = vmatprep.subr.bf16.mxu0 0
    %821 = vmatpush2.bf16.msra.mxu0 0
    %822 = vmatprep.subr.bf16.mxu0 0
    %823 = vmatpush2.bf16.msra.mxu0 0
    %824 = vmatprep.subr.bf16.mxu0 0
    %825 = vmatpush2.bf16.msra.mxu0 0
    %826 = vmatprep.subr.bf16.mxu0 0
    %827 = vmatpush2.bf16.msra.mxu0 0
    %828 = vmatprep.subr.bf16.mxu0 0
    %829 = vmatpush2.bf16.msra.mxu0 0
    %830 = vmatprep.subr.bf16.mxu0 0
    %831 = vmatpush2.bf16.msra.mxu0 0
    %832 = vmatprep.subr.bf16.mxu0 0
    %833 = vmatpush2.bf16.msra.mxu0 0
    %834 = vmatprep.mubr.bf16.mxu0 0
    %835 = vmatmul.mubr.bf16.gmra.mxu0 %v746
    %v836 = vpop.f32.mrf.mxu0
    %v837 = vadd.f32 %v688, %v836
    %v838 = vpop.f32.mrf.mxu0
    %v839 = vpop.f32.mrf.mxu0
    %v840 = vadd.f32 %v688, %v839
    %v841 = vpop.f32.mrf.mxu0
    %842 = vmatprep.mubr.bf16.mxu0 0
    %843 = vmatmul.mubr.bf16.gmra.mxu0 %v749
    %v844 = vpop.f32.mrf.mxu0
    %v845 = vadd.f32 %v688, %v844
    %v846 = vpop.f32.mrf.mxu0
    %v847 = vpop.f32.mrf.mxu0
    %v848 = vpop.f32.mrf.mxu0
    %849 = vdwg.mxu0
    %v850 = vpack.c.bf16 %v790, %v786
    %v851 = vpack.c.bf16 %v796, %v796
    %v852 = vpack.c.bf16 %v792, %v788
    %v853 = vpack.c.bf16 %v798, %v798
    %v855 = vsel %vm262, %v850, 0
    %v858 = vsel %vm262, %v851, 0
    %v861 = vsel %vm262, %v852, 0
    %v864 = vsel %vm262, %v853, 0
    %866 = vmatprep.subr.bf16.mxu0 0
    %867 = vmatpush1.bf16.xpose.msra.mxu0 0
    %868 = vmatprep.subr.bf16.mxu0 0
    %869 = vmatpush1.bf16.xpose.msra.mxu0 0
    %870 = vmatprep.subr.bf16.mxu0 0
    %871 = vmatpush1.bf16.xpose.msra.mxu0 0
    %872 = vmatprep.subr.bf16.mxu0 0
    %873 = vmatpush1.bf16.xpose.msra.mxu0 0
    %874 = vmatprep.subr.bf16.mxu0 0
    %875 = vmatpush1.bf16.xpose.msra.mxu0 0
    %876 = vmatprep.subr.bf16.mxu0 0
    %877 = vmatpush1.bf16.xpose.msra.mxu0 0
    %878 = vmatprep.subr.bf16.mxu0 0
    %879 = vmatpush1.bf16.xpose.msra.mxu0 %v864
    %880 = vmatprep.subr.bf16.mxu0 0
    %881 = vmatpush1.bf16.xpose.msra.mxu0 %v861
    %882 = vmatprep.subr.bf16.mxu0 0
    %883 = vmatpush2.bf16.xpose.msra.mxu0 0
    %884 = vmatprep.subr.bf16.mxu0 0
    %885 = vmatpush2.bf16.xpose.msra.mxu0 0
    %886 = vmatprep.subr.bf16.mxu0 0
    %887 = vmatpush2.bf16.xpose.msra.mxu0 0
    %888 = vmatprep.subr.bf16.mxu0 0
    %889 = vmatpush2.bf16.xpose.msra.mxu0 0
    %890 = vmatprep.subr.bf16.mxu0 0
    %891 = vmatpush2.bf16.xpose.msra.mxu0 0
    %892 = vmatprep.subr.bf16.mxu0 0
    %893 = vmatpush2.bf16.xpose.msra.mxu0 0
    %894 = vmatprep.subr.bf16.mxu0 0
    %895 = vmatpush2.bf16.xpose.msra.mxu0 0
    %896 = vmatprep.subr.bf16.mxu0 0
    %897 = vmatpush2.bf16.xpose.msra.mxu0 0
    %898 = vmatprep.mubr.bf16.mxu0 0
    %899 = vmatmul.mubr.bf16.gmra.mxu0 %v855
    %v900 = vpop.f32.mrf.mxu0
    %v901 = vadd.f32 0.0, %v900
    %v902 = vpop.f32.mrf.mxu0
    %v903 = vpop.f32.mrf.mxu0
    %v904 = vadd.f32 0.0, %v903
    %v905 = vpop.f32.mrf.mxu0
    %906 = vmatprep.mubr.bf16.mxu0 0
    %907 = vmatmul.mubr.bf16.gmra.mxu0 %v858
    %v908 = vpop.f32.mrf.mxu0
    %v909 = vadd.f32 0.0, %v908
    %v910 = vpop.f32.mrf.mxu0
    %v911 = vpop.f32.mrf.mxu0
    %v912 = vpop.f32.mrf.mxu0
    %913 = vdwg.mxu0
    %v914 = vmul.f32 %v901, 0.125
    %v915 = vmul.f32 %v904, 0.125
    %v916 = vmul.f32 %v909, 0.125
    %v917 = vsel %vm438, %v914, -inf
    %918 = vmax.xlane.f32.xlu0 %v917
    %v919 = vpop.xlane.xlu0 %918
    %v920 = vsel %vm438, %v915, -inf
    %921 = vmax.xlane.f32.xlu0 %v920
    %v922 = vpop.xlane.xlu0 %921
    %v923 = vsel %vm438, %v916, -inf
    %924 = vmax.xlane.f32.xlu0 %v923
    %v925 = vpop.xlane.xlu0 %924
    %v926 = vsub.f32 %v914, %v919
    %v927 = vsub.f32 %v915, %v922
    %v928 = vsub.f32 %v916, %v925
    %v929 = vmul.f32 %v926, 1.442695
    %v930 = vpow.pop %v929
    %v931 = vmul.f32 %v927, 1.442695
    %v932 = vpow.pop %v931
    %v933 = vmul.f32 %v928, 1.442695
    %v934 = vpow.pop %v933
    %v935 = vsel %vm438, %v930, 0.0
    %936 = vadd.xlane.f32.xlu0 %v935
    %v937 = vpop.xlane.xlu0 %936
    %v938 = vsel %vm438, %v932, 0.0
    %939 = vadd.xlane.f32.xlu0 %v938
    %v940 = vpop.xlane.xlu0 %939
    %v941 = vsel %vm438, %v934, 0.0
    %942 = vadd.xlane.f32.xlu0 %v941
    %v943 = vpop.xlane.xlu0 %942
    %v944 = vrcp.pop %v937
    %v945 = vrcp.pop %v940
    %v946 = vrcp.pop %v943
    %v947 = vmul.f32 %v930, %v944
    %v948 = vmul.f32 %v932, %v945
    %v949 = vmul.f32 %v934, %v946
    %v950 = vpack.c.bf16 %v948, %v947
    %v951 = vpack.c.bf16 %v949, %v949
    %v952 = vpack.c.bf16 %v840, %v837
    %v953 = vpack.c.bf16 %v845, %v845
    %v955 = vsel %vm438, %v950, 0
    %v958 = vsel %vm438, %v951, 0
    %v961 = vsel %vm482, %v953, 0
    %963 = vmatprep.subr.bf16.mxu0 0
    %964 = vmatpush1.bf16.msra.mxu0 0
    %965 = vmatprep.subr.bf16.mxu0 0
    %966 = vmatpush1.bf16.msra.mxu0 0
    %967 = vmatprep.subr.bf16.mxu0 0
    %968 = vmatpush1.bf16.msra.mxu0 0
    %969 = vmatprep.subr.bf16.mxu0 0
    %970 = vmatpush1.bf16.msra.mxu0 0
    %971 = vmatprep.subr.bf16.mxu0 0
    %972 = vmatpush1.bf16.msra.mxu0 0
    %973 = vmatprep.subr.bf16.mxu0 0
    %974 = vmatpush1.bf16.msra.mxu0 0
    %975 = vmatprep.subr.bf16.mxu0 0
    %976 = vmatpush1.bf16.msra.mxu0 %v961
    %977 = vmatprep.subr.bf16.mxu0 0
    %978 = vmatpush1.bf16.msra.mxu0 %v952
    %979 = vmatprep.subr.bf16.mxu0 0
    %980 = vmatpush2.bf16.msra.mxu0 0
    %981 = vmatprep.subr.bf16.mxu0 0
    %982 = vmatpush2.bf16.msra.mxu0 0
    %983 = vmatprep.subr.bf16.mxu0 0
    %984 = vmatpush2.bf16.msra.mxu0 0
    %985 = vmatprep.subr.bf16.mxu0 0
    %986 = vmatpush2.bf16.msra.mxu0 0
    %987 = vmatprep.subr.bf16.mxu0 0
    %988 = vmatpush2.bf16.msra.mxu0 0
    %989 = vmatprep.subr.bf16.mxu0 0
    %990 = vmatpush2.bf16.msra.mxu0 0
    %991 = vmatprep.subr.bf16.mxu0 0
    %992 = vmatpush2.bf16.msra.mxu0 0
    %993 = vmatprep.subr.bf16.mxu0 0
    %994 = vmatpush2.bf16.msra.mxu0 0
    %995 = vmatprep.mubr.bf16.mxu0 0
    %996 = vmatmul.mubr.bf16.gmra.mxu0 %v955
    %v997 = vpop.f32.mrf.mxu0
    %v998 = vadd.f32 0.0, %v997
    %v999 = vpop.f32.mrf.mxu0
    %v1000 = vpop.f32.mrf.mxu0
    %v1001 = vadd.f32 0.0, %v1000
    %v1002 = vpop.f32.mrf.mxu0
    %1003 = vmatprep.mubr.bf16.mxu0 0
    %1004 = vmatmul.mubr.bf16.gmra.mxu0 %v958
    %v1005 = vpop.f32.mrf.mxu0
    %v1006 = vadd.f32 0.0, %v1005
    %v1007 = vpop.f32.mrf.mxu0
    %v1008 = vpop.f32.mrf.mxu0
    %v1009 = vpop.f32.mrf.mxu0
    %1010 = vdwg.mxu0
    %v1011 = vpack.c.bf16 %v1001, %v998
    %v1012 = vpack.c.bf16 %v1006, %v1006
    %v1013 = vlaneseq
    %v1014 = vshrl.u32 %v1013, 7
    %v1015 = vsub.s32 3, %v1014
    %v1016 = vrot.slane %v151, %v1015
    %v1017 = vunpack.c.h.b16 %v98
    %v1018 = vunpack.c.h.b16 %v105
    %v1019 = vunpack.c.h.b16 %v112
    %v1020 = vunpack.c.h.b16 %v119
    %v1021 = vunpack.c.h.b16 %v126
    %v1022 = vunpack.c.h.b16 %v133
    %v1023 = vunpack.c.h.b16 %v140
    %v1024 = vunpack.c.h.b16 %v147
    %v1025 = vpack.c.b16 %v1018, %v1017
    %v1026 = vpack.c.b16 %v1020, %v1019
    %v1027 = vpack.c.b16 %v1022, %v1021
    %v1028 = vpack.c.b16 %v1024, %v1023
    %v1034 = vsel %vm262, %v1011, 0
    %v1037 = vsel %vm262, %v1012, 0
    %1039 = vmatprep.subr.bf16.mxu0 0
    %1040 = vmatpush1.bf16.msra.mxu0 0
    %1041 = vmatprep.subr.bf16.mxu0 0
    %1042 = vmatpush1.bf16.msra.mxu0 0
    %1043 = vmatprep.subr.bf16.mxu0 0
    %1044 = vmatpush1.bf16.msra.mxu0 0
    %1045 = vmatprep.subr.bf16.mxu0 0
    %1046 = vmatpush1.bf16.msra.mxu0 0
    %1047 = vmatprep.subr.bf16.mxu0 0
    %1048 = vmatpush1.bf16.msra.mxu0 %v1028
    %1049 = vmatprep.subr.bf16.mxu0 0
    %1050 = vmatpush1.bf16.msra.mxu0 %v1027
    %1051 = vmatprep.subr.bf16.mxu0 0
    %1052 = vmatpush1.bf16.msra.mxu0 %v1026
    %1053 = vmatprep.subr.bf16.mxu0 0
    %1054 = vmatpush1.bf16.msra.mxu0 %v1025
    %1055 = vmatprep.subr.bf16.mxu0 0
    %1056 = vmatpush2.bf16.msra.mxu0 0
    %1057 = vmatprep.subr.bf16.mxu0 0
    %1058 = vmatpush2.bf16.msra.mxu0 0
    %1059 = vmatprep.subr.bf16.mxu0 0
    %1060 = vmatpush2.bf16.msra.mxu0 0
    %1061 = vmatprep.subr.bf16.mxu0 0
    %1062 = vmatpush2.bf16.msra.mxu0 0
    %1063 = vmatprep.subr.bf16.mxu0 0
    %1064 = vmatpush2.bf16.msra.mxu0 0
    %1065 = vmatprep.subr.bf16.mxu0 0
    %1066 = vmatpush2.bf16.msra.mxu0 0
    %1067 = vmatprep.subr.bf16.mxu0 0
    %1068 = vmatpush2.bf16.msra.mxu0 0
    %1069 = vmatprep.subr.bf16.mxu0 0
    %1070 = vmatpush2.bf16.msra.mxu0 0
    %1071 = vmatprep.mubr.bf16.mxu0 0
    %1072 = vmatmul.mubr.bf16.gmra.mxu0 %v1034
    %v1073 = vpop.f32.mrf.mxu0
    %v1074 = vadd.f32 %v1016, %v1073
    %v1075 = vpop.f32.mrf.mxu0
    %v1076 = vpop.f32.mrf.mxu0
    %v1077 = vadd.f32 %v1016, %v1076
    %v1078 = vpop.f32.mrf.mxu0
    %1079 = vmatprep.mubr.bf16.mxu0 0
    %1080 = vmatmul.mubr.bf16.gmra.mxu0 %v1037
    %v1081 = vpop.f32.mrf.mxu0
    %v1082 = vadd.f32 %v1016, %v1081
    %v1083 = vpop.f32.mrf.mxu0
    %v1084 = vpop.f32.mrf.mxu0
    %v1085 = vpop.f32.mrf.mxu0
    %1086 = vdwg.mxu0
    %v1087 = vadd.f32 %v1074, %v672
    %v1088 = vadd.f32 %v1077, %v673
    %v1089 = vadd.f32 %v1082, %v674
    %v1090 = vsel %vm262, %v1087, 0.0
    %1091 = vadd.xlane.f32.xlu0 %v1090
    %v1092 = vpop.xlane.xlu0 %1091
    %v1093 = vsel %vm262, %v1088, 0.0
    %1094 = vadd.xlane.f32.xlu0 %v1093
    %v1095 = vpop.xlane.xlu0 %1094
    %v1096 = vsel %vm262, %v1089, 0.0
    %1097 = vadd.xlane.f32.xlu0 %v1096
    %v1098 = vpop.xlane.xlu0 %1097
    %v1099 = vmul.f32 %v1092, %v630
    %v1100 = vmul.f32 %v1095, %v630
    %v1101 = vmul.f32 %v1098, %v630
    %v1102 = vsub.f32 %v1087, %v1099
    %v1103 = vsub.f32 %v1088, %v1100
    %v1104 = vsub.f32 %v1089, %v1101
    %v1105 = vmul.f32 %v1102, %v1102
    %v1106 = vmul.f32 %v1103, %v1103
    %v1107 = vmul.f32 %v1104, %v1104
    %v1108 = vsel %vm262, %v1105, 0.0
    %1109 = vadd.xlane.f32.xlu0 %v1108
    %v1110 = vpop.xlane.xlu0 %1109
    %v1111 = vsel %vm262, %v1106, 0.0
    %1112 = vadd.xlane.f32.xlu0 %v1111
    %v1113 = vpop.xlane.xlu0 %1112
    %v1114 = vsel %vm262, %v1107, 0.0
    %1115 = vadd.xlane.f32.xlu0 %v1114
    %v1116 = vpop.xlane.xlu0 %1115
    %v1117 = vmul.f32 %v1110, %v630
    %v1118 = vmul.f32 %v1113, %v630
    %v1119 = vmul.f32 %v1116, %v630
    %v1120 = vadd.f32 %v1117, 1e-05
    %v1121 = vadd.f32 %v1118, 1e-05
    %v1122 = vadd.f32 %v1119, 1e-05
    %v1123 = vrsqrt.pop %v1120
    %v1124 = vrsqrt.pop %v1121
    %v1125 = vrsqrt.pop %v1122
    %v1126 = vmul.f32 %v1102, %v1123
    %v1127 = vmul.f32 %v1103, %v1124
    %v1128 = vmul.f32 %v1104, %v1125
    %v1129 = vlaneseq
    %v1130 = vshrl.u32 %v1129, 7
    %v1131 = vsub.s32 6, %v1130
    %v1132 = vrot.slane %v151, %v1131
    %v1133 = vmul.f32 %v1126, %v1132
    %v1134 = vmul.f32 %v1127, %v1132
    %v1135 = vmul.f32 %v1128, %v1132
    %v1136 = vlaneseq
    %v1137 = vshrl.u32 %v1136, 7
    %v1138 = vsub.s32 7, %v1137
    %v1139 = vrot.slane %v151, %v1138
    %v1140 = vadd.f32 %v1133, %v1139
    %v1141 = vadd.f32 %v1134, %v1139
    %v1142 = vadd.f32 %v1135, %v1139
    %v1143 = vpack.c.bf16 %v1141, %v1140
    %v1144 = vpack.c.bf16 %v1142, %v1142
    %v1145 = vlaneseq
    %v1146 = vshrl.u32 %v1145, 7
    %v1147 = vsub.s32 0, %v1146
    %v1148 = vrot.slane %v154, %v1147
    %v1149 = vlaneseq
    %v1150 = vshrl.u32 %v1149, 7
    %v1151 = vsub.s32 0, %v1150
    %v1152 = vrot.slane %v155, %v1151
    %v1153 = vlaneseq
    %v1154 = vshrl.u32 %v1153, 7
    %v1155 = vsub.s32 0, %v1154
    %v1156 = vrot.slane %v156, %v1155
    %v1157 = vlaneseq
    %v1158 = vshrl.u32 %v1157, 7
    %v1159 = vsub.s32 0, %v1158
    %v1160 = vrot.slane %v157, %v1159
    %v1185 = vunpack.c.h.b16 %v99
    %v1186 = vunpack.c.l.b16 %v100
    %v1187 = vunpack.c.h.b16 %v100
    %v1188 = vunpack.c.l.b16 %v101
    %v1189 = vunpack.c.h.b16 %v106
    %v1190 = vunpack.c.l.b16 %v107
    %v1191 = vunpack.c.h.b16 %v107
    %v1192 = vunpack.c.l.b16 %v108
    %v1193 = vunpack.c.h.b16 %v113
    %v1194 = vunpack.c.l.b16 %v114
    %v1195 = vunpack.c.h.b16 %v114
    %v1196 = vunpack.c.l.b16 %v115
    %v1197 = vunpack.c.h.b16 %v120
    %v1198 = vunpack.c.l.b16 %v121
    %v1199 = vunpack.c.h.b16 %v121
    %v1200 = vunpack.c.l.b16 %v122
    %v1201 = vunpack.c.h.b16 %v127
    %v1202 = vunpack.c.l.b16 %v128
    %v1203 = vunpack.c.h.b16 %v128
    %v1204 = vunpack.c.l.b16 %v129
    %v1205 = vunpack.c.h.b16 %v134
    %v1206 = vunpack.c.l.b16 %v135
    %v1207 = vunpack.c.h.b16 %v135
    %v1208 = vunpack.c.l.b16 %v136
    %v1209 = vunpack.c.h.b16 %v141
    %v1210 = vunpack.c.l.b16 %v142
    %v1211 = vunpack.c.h.b16 %v142
    %v1212 = vunpack.c.l.b16 %v143
    %v1213 = vunpack.c.h.b16 %v148
    %v1214 = vunpack.c.l.b16 %v149
    %v1215 = vunpack.c.h.b16 %v149
    %v1216 = vunpack.c.l.b16 %v150
    %v1217 = vpack.c.b16 %v1189, %v1185
    %v1218 = vpack.c.b16 %v1190, %v1186
    %v1219 = vpack.c.b16 %v1191, %v1187
    %v1220 = vpack.c.b16 %v1192, %v1188
    %v1221 = vpack.c.b16 %v1197, %v1193
    %v1222 = vpack.c.b16 %v1198, %v1194
    %v1223 = vpack.c.b16 %v1199, %v1195
    %v1224 = vpack.c.b16 %v1200, %v1196
    %v1225 = vpack.c.b16 %v1205, %v1201
    %v1226 = vpack.c.b16 %v1206, %v1202
    %v1227 = vpack.c.b16 %v1207, %v1203
    %v1228 = vpack.c.b16 %v1208, %v1204
    %v1229 = vpack.c.b16 %v1213, %v1209
    %v1230 = vpack.c.b16 %v1214, %v1210
    %v1231 = vpack.c.b16 %v1215, %v1211
    %v1232 = vpack.c.b16 %v1216, %v1212
    %v1250 = vsel %vm262, %v1143, 0
    %v1253 = vsel %vm262, %v1144, 0
    %1255 = vmatprep.subr.bf16.mxu0 0
    %1256 = vmatpush1.bf16.msra.mxu0 0
    %1257 = vmatprep.subr.bf16.mxu0 0
    %1258 = vmatpush1.bf16.msra.mxu0 0
    %1259 = vmatprep.subr.bf16.mxu0 0
    %1260 = vmatpush1.bf16.msra.mxu0 0
    %1261 = vmatprep.subr.bf16.mxu0 0
    %1262 = vmatpush1.bf16.msra.mxu0 0
    %1263 = vmatprep.subr.bf16.mxu0 %v1230
    %1264 = vmatpush1.bf16.msra.mxu0 %v1229
    %1265 = vmatprep.subr.bf16.mxu0 %v1226
    %1266 = vmatpush1.bf16.msra.mxu0 %v1225
    %1267 = vmatprep.subr.bf16.mxu0 %v1222
    %1268 = vmatpush1.bf16.msra.mxu0 %v1221
    %1269 = vmatprep.subr.bf16.mxu0 %v1218
    %1270 = vmatpush1.bf16.msra.mxu0 %v1217
    %1271 = vmatprep.subr.bf16.mxu0 0
    %1272 = vmatpush2.bf16.msra.mxu0 0
    %1273 = vmatprep.subr.bf16.mxu0 0
    %1274 = vmatpush2.bf16.msra.mxu0 0
    %1275 = vmatprep.subr.bf16.mxu0 0
    %1276 = vmatpush2.bf16.msra.mxu0 0
    %1277 = vmatprep.subr.bf16.mxu0 0
    %1278 = vmatpush2.bf16.msra.mxu0 0
    %1279 = vmatprep.subr.bf16.mxu0 0
    %1280 = vmatpush2.bf16.msra.mxu0 0
    %1281 = vmatprep.subr.bf16.mxu0 0
    %1282 = vmatpush2.bf16.msra.mxu0 0
    %1283 = vmatprep.subr.bf16.mxu0 0
    %1284 = vmatpush2.bf16.msra.mxu0 0
    %1285 = vmatprep.subr.bf16.mxu0 0
    %1286 = vmatpush2.bf16.msra.mxu0 0
    %1287 = vmatprep.mubr.bf16.mxu0 0
    %1288 = vmatmul.mubr.bf16.gmra.mxu0 %v1250
    %v1289 = vpop.f32.mrf.mxu0
    %v1290 = vadd.f32 %v1148, %v1289
    %v1291 = vpop.f32.mrf.mxu0
    %v1292 = vadd.f32 %v1152, %v1291
    %v1293 = vpop.f32.mrf.mxu0
    %v1294 = vadd.f32 %v1148, %v1293
    %v1295 = vpop.f32.mrf.mxu0
    %v1296 = vadd.f32 %v1152, %v1295
    %1297 = vmatprep.mubr.bf16.mxu0 0
    %1298 = vmatmul.mubr.bf16.gmra.mxu0 %v1253
    %v1299 = vpop.f32.mrf.mxu0
    %v1300 = vadd.f32 %v1148, %v1299
    %v1301 = vpop.f32.mrf.mxu0
    %v1302 = vadd.f32 %v1152, %v1301
    %v1303 = vpop.f32.mrf.mxu0
    %v1304 = vpop.f32.mrf.mxu0
    %1305 = vdwg.mxu0
    %1306 = vmatprep.subr.bf16.mxu0 0
    %1307 = vmatpush1.bf16.msra.mxu0 0
    %1308 = vmatprep.subr.bf16.mxu0 0
    %1309 = vmatpush1.bf16.msra.mxu0 0
    %1310 = vmatprep.subr.bf16.mxu0 0
    %1311 = vmatpush1.bf16.msra.mxu0 0
    %1312 = vmatprep.subr.bf16.mxu0 0
    %1313 = vmatpush1.bf16.msra.mxu0 0
    %1314 = vmatprep.subr.bf16.mxu0 %v1232
    %1315 = vmatpush1.bf16.msra.mxu0 %v1231
    %1316 = vmatprep.subr.bf16.mxu0 %v1228
    %1317 = vmatpush1.bf16.msra.mxu0 %v1227
    %1318 = vmatprep.subr.bf16.mxu0 %v1224
    %1319 = vmatpush1.bf16.msra.mxu0 %v1223
    %1320 = vmatprep.subr.bf16.mxu0 %v1220
    %1321 = vmatpush1.bf16.msra.mxu0 %v1219
    %1322 = vmatprep.subr.bf16.mxu0 0
    %1323 = vmatpush2.bf16.msra.mxu0 0
    %1324 = vmatprep.subr.bf16.mxu0 0
    %1325 = vmatpush2.bf16.msra.mxu0 0
    %1326 = vmatprep.subr.bf16.mxu0 0
    %1327 = vmatpush2.bf16.msra.mxu0 0
    %1328 = vmatprep.subr.bf16.mxu0 0
    %1329 = vmatpush2.bf16.msra.mxu0 0
    %1330 = vmatprep.subr.bf16.mxu0 0
    %1331 = vmatpush2.bf16.msra.mxu0 0
    %1332 = vmatprep.subr.bf16.mxu0 0
    %1333 = vmatpush2.bf16.msra.mxu0 0
    %1334 = vmatprep.subr.bf16.mxu0 0
    %1335 = vmatpush2.bf16.msra.mxu0 0
    %1336 = vmatprep.subr.bf16.mxu0 0
    %1337 = vmatpush2.bf16.msra.mxu0 0
    %1338 = vmatprep.mubr.bf16.mxu0 0
    %1339 = vmatmul.mubr.bf16.gmra.mxu0 %v1250
    %v1340 = vpop.f32.mrf.mxu0
    %v1341 = vadd.f32 %v1156, %v1340
    %v1342 = vpop.f32.mrf.mxu0
    %v1343 = vadd.f32 %v1160, %v1342
    %v1344 = vpop.f32.mrf.mxu0
    %v1345 = vadd.f32 %v1156, %v1344
    %v1346 = vpop.f32.mrf.mxu0
    %v1347 = vadd.f32 %v1160, %v1346
    %1348 = vmatprep.mubr.bf16.mxu0 0
    %1349 = vmatmul.mubr.bf16.gmra.mxu0 %v1253
    %v1350 = vpop.f32.mrf.mxu0
    %v1351 = vadd.f32 %v1156, %v1350
    %v1352 = vpop.f32.mrf.mxu0
    %v1353 = vadd.f32 %v1160, %v1352
    %v1354 = vpop.f32.mrf.mxu0
    %v1355 = vpop.f32.mrf.mxu0
    %1356 = vdwg.mxu0
    %v1357 = vmax.f32 %v1290, 0.0
    %v1358 = vmax.f32 %v1292, 0.0
    %v1359 = vmax.f32 %v1341, 0.0
    %v1360 = vmax.f32 %v1343, 0.0
    %v1361 = vmax.f32 %v1294, 0.0
    %v1362 = vmax.f32 %v1296, 0.0
    %v1363 = vmax.f32 %v1345, 0.0
    %v1364 = vmax.f32 %v1347, 0.0
    %v1365 = vmax.f32 %v1300, 0.0
    %v1366 = vmax.f32 %v1302, 0.0
    %v1367 = vmax.f32 %v1351, 0.0
    %v1368 = vmax.f32 %v1353, 0.0
    %v1369 = vpack.c.bf16 %v1361, %v1357
    %v1370 = vpack.c.bf16 %v1362, %v1358
    %v1371 = vpack.c.bf16 %v1363, %v1359
    %v1372 = vpack.c.bf16 %v1364, %v1360
    %v1373 = vpack.c.bf16 %v1365, %v1365
    %v1374 = vpack.c.bf16 %v1366, %v1366
    %v1375 = vpack.c.bf16 %v1367, %v1367
    %v1376 = vpack.c.bf16 %v1368, %v1368
    %v1377 = vld [vmem:[#allocation7] sm:$0xf]
    %v1378 = vld [vmem:[#allocation7 + $0x4] sm:$0xf]
    %v1379 = vld [vmem:[#allocation7 + $0x8] sm:$0xf]
    %v1380 = vld [vmem:[#allocation7 + $0xc] sm:$0xf]
    %v1381 = vld [vmem:[#allocation7 + $0x10] sm:$0xf]
    %v1382 = vld [vmem:[#allocation7 + $0x14] sm:$0xf]
    %v1383 = vld [vmem:[#allocation7 + $0x18] sm:$0xf]
    %v1384 = vld [vmem:[#allocation7 + $0x1c] sm:$0xf]
    %v1385 = vld [vmem:[#allocation7 + $0x20] sm:$0xf]
    %v1386 = vld [vmem:[#allocation7 + $0x24] sm:$0xf]
    %v1387 = vld [vmem:[#allocation7 + $0x28] sm:$0xf]
    %v1388 = vld [vmem:[#allocation7 + $0x2c] sm:$0xf]
    %v1389 = vld [vmem:[#allocation7 + $0x30] sm:$0xf]
    %v1390 = vld [vmem:[#allocation7 + $0x34] sm:$0xf]
    %v1391 = vld [vmem:[#allocation7 + $0x38] sm:$0xf]
    %v1392 = vld [vmem:[#allocation7 + $0x3c] sm:$0xf]
    %v1393 = vld [vmem:[#allocation7 + $0x40] sm:$0xf]
    %v1394 = vld [vmem:[#allocation7 + $0x44] sm:$0xf]
    %v1395 = vld [vmem:[#allocation7 + $0x48] sm:$0xf]
    %v1396 = vld [vmem:[#allocation7 + $0x4c] sm:$0xf]
    %v1397 = vld [vmem:[#allocation7 + $0x50] sm:$0xf]
    %v1398 = vld [vmem:[#allocation7 + $0x54] sm:$0xf]
    %v1399 = vld [vmem:[#allocation7 + $0x58] sm:$0xf]
    %v1400 = vld [vmem:[#allocation7 + $0x5c] sm:$0xf]
    %v1401 = vld [vmem:[#allocation7 + $0x60] sm:$0xf]
    %v1402 = vld [vmem:[#allocation7 + $0x64] sm:$0xf]
    %v1403 = vld [vmem:[#allocation7 + $0x68] sm:$0xf]
    %v1404 = vld [vmem:[#allocation7 + $0x6c] sm:$0xf]
    %v1405 = vld [vmem:[#allocation7 + $0x70] sm:$0xf]
    %v1406 = vld [vmem:[#allocation7 + $0x74] sm:$0xf]
    %v1407 = vld [vmem:[#allocation7 + $0x78] sm:$0xf]
    %v1408 = vld [vmem:[#allocation7 + $0x7c] sm:$0xf]
    %v1409 = vld [vmem:[#allocation7 + $0x80] sm:$0xf]
    %v1410 = vld [vmem:[#allocation7 + $0x84] sm:$0xf]
    %v1411 = vld [vmem:[#allocation7 + $0x88] sm:$0xf]
    %v1412 = vld [vmem:[#allocation7 + $0x8c] sm:$0xf]
    %v1413 = vld [vmem:[#allocation7 + $0x90] sm:$0xf]
    %v1414 = vld [vmem:[#allocation7 + $0x94] sm:$0xf]
    %v1415 = vld [vmem:[#allocation7 + $0x98] sm:$0xf]
    %v1416 = vld [vmem:[#allocation7 + $0x9c] sm:$0xf]
    %v1417 = vld [vmem:[#allocation7 + $0xa0] sm:$0xf]
    %v1418 = vld [vmem:[#allocation7 + $0xa4] sm:$0xf]
    %v1419 = vld [vmem:[#allocation7 + $0xa8] sm:$0xf]
    %v1420 = vld [vmem:[#allocation7 + $0xac] sm:$0xf]
    %v1421 = vld [vmem:[#allocation7 + $0xb0] sm:$0xf]
    %v1422 = vld [vmem:[#allocation7 + $0xb4] sm:$0xf]
    %v1423 = vld [vmem:[#allocation7 + $0xb8] sm:$0xf]
    %v1424 = vld [vmem:[#allocation7 + $0xbc] sm:$0xf]
    %v1425 = vld [vmem:[#allocation7 + $0xc0] sm:$0xf]
    %v1426 = vld [vmem:[#allocation7 + $0xc4] sm:$0xf]
    %v1427 = vld [vmem:[#allocation7 + $0xc8] sm:$0xf]
    %v1428 = vld [vmem:[#allocation7 + $0xcc] sm:$0xf]
    %v1429 = vld [vmem:[#allocation7 + $0xd0] sm:$0xf]
    %v1430 = vld [vmem:[#allocation7 + $0xd4] sm:$0xf]
    %v1431 = vld [vmem:[#allocation7 + $0xd8] sm:$0xf]
    %v1432 = vld [vmem:[#allocation7 + $0xdc] sm:$0xf]
    %v1433 = vld [vmem:[#allocation7 + $0xe0] sm:$0xf]
    %v1434 = vld [vmem:[#allocation7 + $0xe4] sm:$0xf]
    %v1435 = vld [vmem:[#allocation7 + $0xe8] sm:$0xf]
    %v1436 = vld [vmem:[#allocation7 + $0xec] sm:$0xf]
    %v1437 = vld [vmem:[#allocation7 + $0xf0] sm:$0xf]
    %v1438 = vld [vmem:[#allocation7 + $0xf4] sm:$0xf]
    %v1439 = vld [vmem:[#allocation7 + $0xf8] sm:$0xf]
    %v1440 = vld [vmem:[#allocation7 + $0xfc] sm:$0xf]
    %v1441 = vlaneseq
    %v1442 = vshrl.u32 %v1441, 7
    %v1443 = vsub.s32 1, %v1442
    %v1444 = vrot.slane %v154, %v1443
    %v1509 = vunpack.c.l.b16 %v1377
    %v1510 = vunpack.c.l.b16 %v1378
    %v1511 = vunpack.c.l.b16 %v1379
    %v1512 = vunpack.c.l.b16 %v1380
    %v1513 = vunpack.c.l.b16 %v1381
    %v1514 = vunpack.c.l.b16 %v1382
    %v1515 = vunpack.c.l.b16 %v1383
    %v1516 = vunpack.c.l.b16 %v1384
    %v1517 = vunpack.c.l.b16 %v1385
    %v1518 = vunpack.c.l.b16 %v1386
    %v1519 = vunpack.c.l.b16 %v1387
    %v1520 = vunpack.c.l.b16 %v1388
    %v1521 = vunpack.c.l.b16 %v1389
    %v1522 = vunpack.c.l.b16 %v1390
    %v1523 = vunpack.c.l.b16 %v1391
    %v1524 = vunpack.c.l.b16 %v1392
    %v1525 = vunpack.c.l.b16 %v1393
    %v1526 = vunpack.c.l.b16 %v1394
    %v1527 = vunpack.c.l.b16 %v1395
    %v1528 = vunpack.c.l.b16 %v1396
    %v1529 = vunpack.c.l.b16 %v1397
    %v1530 = vunpack.c.l.b16 %v1398
    %v1531 = vunpack.c.l.b16 %v1399
    %v1532 = vunpack.c.l.b16 %v1400
    %v1533 = vunpack.c.l.b16 %v1401
    %v1534 = vunpack.c.l.b16 %v1402
    %v1535 = vunpack.c.l.b16 %v1403
    %v1536 = vunpack.c.l.b16 %v1404
    %v1537 = vunpack.c.l.b16 %v1405
    %v1538 = vunpack.c.l.b16 %v1406
    %v1539 = vunpack.c.l.b16 %v1407
    %v1540 = vunpack.c.l.b16 %v1408
    %v1541 = vunpack.c.l.b16 %v1409
    %v1542 = vunpack.c.l.b16 %v1410
    %v1543 = vunpack.c.l.b16 %v1411
    %v1544 = vunpack.c.l.b16 %v1412
    %v1545 = vunpack.c.l.b16 %v1413
    %v1546 = vunpack.c.l.b16 %v1414
    %v1547 = vunpack.c.l.b16 %v1415
    %v1548 = vunpack.c.l.b16 %v1416
    %v1549 = vunpack.c.l.b16 %v1417
    %v1550 = vunpack.c.l.b16 %v1418
    %v1551 = vunpack.c.l.b16 %v1419
    %v1552 = vunpack.c.l.b16 %v1420
    %v1553 = vunpack.c.l.b16 %v1421
    %v1554 = vunpack.c.l.b16 %v1422
    %v1555 = vunpack.c.l.b16 %v1423
    %v1556 = vunpack.c.l.b16 %v1424
    %v1557 = vunpack.c.l.b16 %v1425
    %v1558 = vunpack.c.l.b16 %v1426
    %v1559 = vunpack.c.l.b16 %v1427
    %v1560 = vunpack.c.l.b16 %v1428
    %v1561 = vunpack.c.l.b16 %v1429
    %v1562 = vunpack.c.l.b16 %v1430
    %v1563 = vunpack.c.l.b16 %v1431
    %v1564 = vunpack.c.l.b16 %v1432
    %v1565 = vunpack.c.l.b16 %v1433
    %v1566 = vunpack.c.l.b16 %v1434
    %v1567 = vunpack.c.l.b16 %v1435
    %v1568 = vunpack.c.l.b16 %v1436
    %v1569 = vunpack.c.l.b16 %v1437
    %v1570 = vunpack.c.l.b16 %v1438
    %v1571 = vunpack.c.l.b16 %v1439
    %v1572 = vunpack.c.l.b16 %v1440
    %v1573 = vpack.c.b16 %v1510, %v1509
    %v1574 = vpack.c.b16 %v1512, %v1511
    %v1575 = vpack.c.b16 %v1514, %v1513
    %v1576 = vpack.c.b16 %v1516, %v1515
    %v1577 = vpack.c.b16 %v1518, %v1517
    %v1578 = vpack.c.b16 %v1520, %v1519
    %v1579 = vpack.c.b16 %v1522, %v1521
    %v1580 = vpack.c.b16 %v1524, %v1523
    %v1581 = vpack.c.b16 %v1526, %v1525
    %v1582 = vpack.c.b16 %v1528, %v1527
    %v1583 = vpack.c.b16 %v1530, %v1529
    %v1584 = vpack.c.b16 %v1532, %v1531
    %v1585 = vpack.c.b16 %v1534, %v1533
    %v1586 = vpack.c.b16 %v1536, %v1535
    %v1587 = vpack.c.b16 %v1538, %v1537
    %v1588 = vpack.c.b16 %v1540, %v1539
    %v1589 = vpack.c.b16 %v1542, %v1541
    %v1590 = vpack.c.b16 %v1544, %v1543
    %v1591 = vpack.c.b16 %v1546, %v1545
    %v1592 = vpack.c.b16 %v1548, %v1547
    %v1593 = vpack.c.b16 %v1550, %v1549
    %v1594 = vpack.c.b16 %v1552, %v1551
    %v1595 = vpack.c.b16 %v1554, %v1553
    %v1596 = vpack.c.b16 %v1556, %v1555
    %v1597 = vpack.c.b16 %v1558, %v1557
    %v1598 = vpack.c.b16 %v1560, %v1559
    %v1599 = vpack.c.b16 %v1562, %v1561
    %v1600 = vpack.c.b16 %v1564, %v1563
    %v1601 = vpack.c.b16 %v1566, %v1565
    %v1602 = vpack.c.b16 %v1568, %v1567
    %v1603 = vpack.c.b16 %v1570, %v1569
    %v1604 = vpack.c.b16 %v1572, %v1571
    %1637 = vmatprep.subr.bf16.mxu0 0
    %1638 = vmatpush1.bf16.msra.mxu0 %v1580
    %1639 = vmatprep.subr.bf16.mxu0 0
    %1640 = vmatpush1.bf16.msra.mxu0 %v1579
    %1641 = vmatprep.subr.bf16.mxu0 0
    %1642 = vmatpush1.bf16.msra.mxu0 %v1578
    %1643 = vmatprep.subr.bf16.mxu0 0
    %1644 = vmatpush1.bf16.msra.mxu0 %v1577
    %1645 = vmatprep.subr.bf16.mxu0 0
    %1646 = vmatpush1.bf16.msra.mxu0 %v1576
    %1647 = vmatprep.subr.bf16.mxu0 0
    %1648 = vmatpush1.bf16.msra.mxu0 %v1575
    %1649 = vmatprep.subr.bf16.mxu0 0
    %1650 = vmatpush1.bf16.msra.mxu0 %v1574
    %1651 = vmatprep.subr.bf16.mxu0 0
    %1652 = vmatpush1.bf16.msra.mxu0 %v1573
    %1653 = vmatprep.subr.bf16.mxu0 0
    %1654 = vmatpush2.bf16.msra.mxu0 %v1588
    %1655 = vmatprep.subr.bf16.mxu0 0
    %1656 = vmatpush2.bf16.msra.mxu0 %v1587
    %1657 = vmatprep.subr.bf16.mxu0 0
    %1658 = vmatpush2.bf16.msra.mxu0 %v1586
    %1659 = vmatprep.subr.bf16.mxu0 0
    %1660 = vmatpush2.bf16.msra.mxu0 %v1585
    %1661 = vmatprep.subr.bf16.mxu0 0
    %1662 = vmatpush2.bf16.msra.mxu0 %v1584
    %1663 = vmatprep.subr.bf16.mxu0 0
    %1664 = vmatpush2.bf16.msra.mxu0 %v1583
    %1665 = vmatprep.subr.bf16.mxu0 0
    %1666 = vmatpush2.bf16.msra.mxu0 %v1582
    %1667 = vmatprep.subr.bf16.mxu0 0
    %1668 = vmatpush2.bf16.msra.mxu0 %v1581
    %1669 = vmatprep.mubr.bf16.mxu0 %v1370
    %1670 = vmatmul.mubr.bf16.gmra.mxu0 %v1369
    %v1671 = vpop.f32.mrf.mxu0
    %v1672 = vadd.f32 %v1444, %v1671
    %v1673 = vpop.f32.mrf.mxu0
    %v1674 = vpop.f32.mrf.mxu0
    %v1675 = vadd.f32 %v1444, %v1674
    %v1676 = vpop.f32.mrf.mxu0
    %1677 = vmatprep.mubr.bf16.mxu0 %v1374
    %1678 = vmatmul.mubr.bf16.gmra.mxu0 %v1373
    %v1679 = vpop.f32.mrf.mxu0
    %v1680 = vadd.f32 %v1444, %v1679
    %v1681 = vpop.f32.mrf.mxu0
    %v1682 = vpop.f32.mrf.mxu0
    %v1683 = vpop.f32.mrf.mxu0
    %1684 = vdwg.mxu0
    %1685 = vmatprep.subr.bf16.mxu0 0
    %1686 = vmatpush1.bf16.msra.mxu0 %v1596
    %1687 = vmatprep.subr.bf16.mxu0 0
    %1688 = vmatpush1.bf16.msra.mxu0 %v1595
    %1689 = vmatprep.subr.bf16.mxu0 0
    %1690 = vmatpush1.bf16.msra.mxu0 %v1594
    %1691 = vmatprep.subr.bf16.mxu0 0
    %1692 = vmatpush1.bf16.msra.mxu0 %v1593
    %1693 = vmatprep.subr.bf16.mxu0 0
    %1694 = vmatpush1.bf16.msra.mxu0 %v1592
    %1695 = vmatprep.subr.bf16.mxu0 0
    %1696 = vmatpush1.bf16.msra.mxu0 %v1591
    %1697 = vmatprep.subr.bf16.mxu0 0
    %1698 = vmatpush1.bf16.msra.mxu0 %v1590
    %1699 = vmatprep.subr.bf16.mxu0 0
    %1700 = vmatpush1.bf16.msra.mxu0 %v1589
    %1701 = vmatprep.subr.bf16.mxu0 0
    %1702 = vmatpush2.bf16.msra.mxu0 %v1604
    %1703 = vmatprep.subr.bf16.mxu0 0
    %1704 = vmatpush2.bf16.msra.mxu0 %v1603
    %1705 = vmatprep.subr.bf16.mxu0 0
    %1706 = vmatpush2.bf16.msra.mxu0 %v1602
    %1707 = vmatprep.subr.bf16.mxu0 0
    %1708 = vmatpush2.bf16.msra.mxu0 %v1601
    %1709 = vmatprep.subr.bf16.mxu0 0
    %1710 = vmatpush2.bf16.msra.mxu0 %v1600
    %1711 = vmatprep.subr.bf16.mxu0 0
    %1712 = vmatpush2.bf16.msra.mxu0 %v1599
    %1713 = vmatprep.subr.bf16.mxu0 0
    %1714 = vmatpush2.bf16.msra.mxu0 %v1598
    %1715 = vmatprep.subr.bf16.mxu0 0
    %1716 = vmatpush2.bf16.msra.mxu0 %v1597
    %1717 = vmatprep.mubr.bf16.mxu0 %v1372
    %1718 = vmatmul.mubr.bf16.gmra.mxu0 %v1371
    %v1719 = vpop.f32.mrf.mxu0
    %v1720 = vadd.f32 %v1672, %v1719
    %v1721 = vpop.f32.mrf.mxu0
    %v1722 = vpop.f32.mrf.mxu0
    %v1723 = vadd.f32 %v1675, %v1722
    %v1724 = vpop.f32.mrf.mxu0
    %1725 = vmatprep.mubr.bf16.mxu0 %v1376
    %1726 = vmatmul.mubr.bf16.gmra.mxu0 %v1375
    %v1727 = vpop.f32.mrf.mxu0
    %v1728 = vadd.f32 %v1680, %v1727
    %v1729 = vpop.f32.mrf.mxu0
    %v1730 = vpop.f32.mrf.mxu0
    %v1731 = vpop.f32.mrf.mxu0
    %1732 = vdwg.mxu0
    %1733 = vmax.xlane.f32.xlu0 %v1720
    %v1734 = vpop.xlane.xlu0 %1733
    %1735 = vmax.xlane.f32.xlu0 %v1723
    %v1736 = vpop.xlane.xlu0 %1735
    %1737 = vmax.xlane.f32.xlu0 %v1728
    %v1738 = vpop.xlane.xlu0 %1737
    %v1739 = vsub.f32 %v1720, %v1734
    %v1740 = vsub.f32 %v1723, %v1736
    %v1741 = vsub.f32 %v1728, %v1738
    %v1742 = vmul.f32 %v1739, 1.442695
    %v1743 = vpow.pop %v1742
    %v1744 = vmul.f32 %v1740, 1.442695
    %v1745 = vpow.pop %v1744
    %v1746 = vmul.f32 %v1741, 1.442695
    %v1747 = vpow.pop %v1746
    %1748 = vadd.xlane.f32.xlu0 %v1743
    %v1749 = vpop.xlane.xlu0 %1748
    %1750 = vadd.xlane.f32.xlu0 %v1745
    %v1751 = vpop.xlane.xlu0 %1750
    %1752 = vadd.xlane.f32.xlu0 %v1747
    %v1753 = vpop.xlane.xlu0 %1752
    %v1754 = vlog2.pop %v1749
    %v1755 = vmul.f32 %v1754, 0.6931472
    %v1756 = vlog2.pop %v1751
    %v1757 = vmul.f32 %v1756, 0.6931472
    %v1758 = vlog2.pop %v1753
    %v1759 = vmul.f32 %v1758, 0.6931472
    %v1760 = vadd.f32 %v1734, %v1755
    %v1761 = vadd.f32 %v1736, %v1757
    %v1762 = vadd.f32 %v1738, %v1759
    %v1763 = vsub.f32 %v1720, %v1760
    %v1764 = vsub.f32 %v1723, %v1761
    %v1765 = vsub.f32 %v1728, %v1762
    %v1766 = vmul.f32 %v92, %v1763
    %v1767 = vmul.f32 %v93, %v1764
    %v1768 = vmul.f32 %v94, %v1765
    %v1769 = vadd.f32 %v1766, %v1767
    %v1770 = vadd.f32 %v1769, %v1768
    %1771 = vadd.xlane.f32.xlu0 %v1770
    %v1772 = vpop.xlane.xlu0 %1771
    %v1773 = vrot.slane %v1772, 4
    %v1774 = vadd.f32 %v1772, %v1773
    %v1775 = vrot.slane %v1774, 2
    %v1776 = vadd.f32 %v1774, %v1775
    %v1777 = vrot.slane %v1776, 1
    %v1778 = vadd.f32 %v1776, %v1777
    %s1779 = vtos %v1778
    %v1780 = vstv %s1779
    %v1781 = vsub.f32 0.0, %v1780
    %v1782 = vmul.f32 %v1781, 0.041666668
    %v1783 = vpack.c.bf16 %v1140, %v1140
    %v1784 = vunpack.c.l.b16 %v99
    %v1785 = vunpack.c.l.b16 %v106
    %v1786 = vunpack.c.l.b16 %v113
    %v1787 = vunpack.c.l.b16 %v120
    %v1788 = vunpack.c.l.b16 %v127
    %v1789 = vunpack.c.l.b16 %v134
    %v1790 = vunpack.c.l.b16 %v141
    %v1791 = vunpack.c.l.b16 %v148
    %v1792 = vpack.c.b16 %v1785, %v1784
    %v1793 = vpack.c.b16 %v1787, %v1786
    %v1794 = vpack.c.b16 %v1789, %v1788
    %v1795 = vpack.c.b16 %v1791, %v1790
    %v1801 = vsel %vm262, %v1783, 0
    %1803 = vmatprep.subr.bf16.mxu0 0
    %1804 = vmatpush1.bf16.msra.mxu0 0
    %1805 = vmatprep.subr.bf16.mxu0 0
    %1806 = vmatpush1.bf16.msra.mxu0 0
    %1807 = vmatprep.subr.bf16.mxu0 0
    %1808 = vmatpush1.bf16.msra.mxu0 0
    %1809 = vmatprep.subr.bf16.mxu0 0
    %1810 = vmatpush1.bf16.msra.mxu0 0
    %1811 = vmatprep.subr.bf16.mxu0 0
    %1812 = vmatpush1.bf16.msra.mxu0 %v1795
    %1813 = vmatprep.subr.bf16.mxu0 0
    %1814 = vmatpush1.bf16.msra.mxu0 %v1794
    %1815 = vmatprep.subr.bf16.mxu0 0
    %1816 = vmatpush1.bf16.msra.mxu0 %v1793
    %1817 = vmatprep.subr.bf16.mxu0 0
    %1818 = vmatpush1.bf16.msra.mxu0 %v1792
    %1819 = vmatprep.subr.bf16.mxu0 0
    %1820 = vmatpush2.bf16.msra.mxu0 0
    %1821 = vmatprep.subr.bf16.mxu0 0
    %1822 = vmatpush2.bf16.msra.mxu0 0
    %1823 = vmatprep.subr.bf16.mxu0 0
    %1824 = vmatpush2.bf16.msra.mxu0 0
    %1825 = vmatprep.subr.bf16.mxu0 0
    %1826 = vmatpush2.bf16.msra.mxu0 0
    %1827 = vmatprep.subr.bf16.mxu0 0
    %1828 = vmatpush2.bf16.msra.mxu0 0
    %1829 = vmatprep.subr.bf16.mxu0 0
    %1830 = vmatpush2.bf16.msra.mxu0 0
    %1831 = vmatprep.subr.bf16.mxu0 0
    %1832 = vmatpush2.bf16.msra.mxu0 0
    %1833 = vmatprep.subr.bf16.mxu0 0
    %1834 = vmatpush2.bf16.msra.mxu0 0
    %1835 = vmatprep.mubr.bf16.mxu0 0
    %1836 = vmatmul.mubr.bf16.gmra.mxu0 %v1801
    %v1837 = vpop.f32.mrf.mxu0
    %v1838 = vadd.f32 0.0, %v1837
    %v1839 = vpop.f32.mrf.mxu0
    %v1840 = vpop.f32.mrf.mxu0
    %v1841 = vpop.f32.mrf.mxu0
    %1842 = vdwg.mxu0
    %v1843 = vpack.c.bf16 %v1838, %v1838
    %v1844 = vpack.c.bf16 %v1142, %v1141
    %v1846 = vsel %vm262, %v1843, 0
    %v1849 = vsel %vm262, %v1844, 0
    %1851 = vmatprep.subr.bf16.mxu0 0
    %1852 = vmatpush1.bf16.xpose.msra.mxu0 0
    %1853 = vmatprep.subr.bf16.mxu0 0
    %1854 = vmatpush1.bf16.xpose.msra.mxu0 0
    %1855 = vmatprep.subr.bf16.mxu0 0
    %1856 = vmatpush1.bf16.xpose.msra.mxu0 0
    %1857 = vmatprep.subr.bf16.mxu0 0
    %1858 = vmatpush1.bf16.xpose.msra.mxu0 0
    %1859 = vmatprep.subr.bf16.mxu0 0
    %1860 = vmatpush1.bf16.xpose.msra.mxu0 0
    %1861 = vmatprep.subr.bf16.mxu0 0
    %1862 = vmatpush1.bf16.xpose.msra.mxu0 0
    %1863 = vmatprep.subr.bf16.mxu0 0
    %1864 = vmatpush1.bf16.xpose.msra.mxu0 0
    %1865 = vmatprep.subr.bf16.mxu0 0
    %1866 = vmatpush1.bf16.xpose.msra.mxu0 %v1849
    %1867 = vmatprep.subr.bf16.mxu0 0
    %1868 = vmatpush2.bf16.xpose.msra.mxu0 0
    %1869 = vmatprep.subr.bf16.mxu0 0
    %1870 = vmatpush2.bf16.xpose.msra.mxu0 0
    %1871 = vmatprep.subr.bf16.mxu0 0
    %1872 = vmatpush2.bf16.xpose.msra.mxu0 0
    %1873 = vmatprep.subr.bf16.mxu0 0
    %1874 = vmatpush2.bf16.xpose.msra.mxu0 0
    %1875 = vmatprep.subr.bf16.mxu0 0
    %1876 = vmatpush2.bf16.xpose.msra.mxu0 0
    %1877 = vmatprep.subr.bf16.mxu0 0
    %1878 = vmatpush2.bf16.xpose.msra.mxu0 0
    %1879 = vmatprep.subr.bf16.mxu0 0
    %1880 = vmatpush2.bf16.xpose.msra.mxu0 0
    %1881 = vmatprep.subr.bf16.mxu0 0
    %1882 = vmatpush2.bf16.xpose.msra.mxu0 0
    %1883 = vmatprep.mubr.bf16.mxu0 0
    %1884 = vmatmul.mubr.bf16.gmra.mxu0 %v1846
    %v1885 = vpop.f32.mrf.mxu0
    %v1886 = vadd.f32 0.0, %v1885
    %v1887 = vpop.f32.mrf.mxu0
    %v1888 = vpop.f32.mrf.mxu0
    %v1889 = vpop.f32.mrf.mxu0
    %1890 = vdwg.mxu0
    %vm1891 = vcmask 130048
    %v1892 = vsel %vm1891, %v1886, 0.0
    %1893 = vadd.xlane.f32.xlu0 %v1892
    %v1894 = vpop.xlane.xlu0 %1893
    %v1895 = vrot.slane %v1894, 4
    %v1896 = vadd.f32 %v1894, %v1895
    %v1897 = vrot.slane %v1896, 2
    %v1898 = vadd.f32 %v1896, %v1897
    %v1899 = vrot.slane %v1898, 1
    %v1900 = vadd.f32 %v1898, %v1899
    %s1901 = vtos %v1900
    %v1902 = vstv %s1901
    %v1903 = vrcp.pop 128.0
    %v1904 = vmul.f32 %v1902, %v1903
    %v1905 = vsub.f32 %v1886, %v1904
    %v1906 = vmul.f32 %v1905, %v1905
    %v1907 = vsel %vm1891, %v1906, 0.0
    %1908 = vadd.xlane.f32.xlu0 %v1907
    %v1909 = vpop.xlane.xlu0 %1908
    %v1910 = vrot.slane %v1909, 4
    %v1911 = vadd.f32 %v1909, %v1910
    %v1912 = vrot.slane %v1911, 2
    %v1913 = vadd.f32 %v1911, %v1912
    %v1914 = vrot.slane %v1913, 1
    %v1915 = vadd.f32 %v1913, %v1914
    %s1916 = vtos %v1915
    %v1917 = vstv %s1916
    %v1918 = vmul.f32 %v1917, %v1903
    %v1919 = vadd.f32 %v1918, 1e-05
    %v1920 = vrsqrt.pop %v1919
    %v1921 = vmul.f32 %v1905, %v1920
    %v1922 = vsel %vm1891, %v1921, -inf
    %1923 = vmax.xlane.f32.xlu0 %v1922
    %v1924 = vpop.xlane.xlu0 %1923
    %v1925 = vmax.f32 %v1924, 0.0
    %v1926 = vsub.f32 %v1921, %v1925
    %v1927 = vmul.f32 %v1926, 1.442695
    %v1928 = vpow.pop %v1927
    %v1929 = vsel %vm1891, %v1928, 0.0
    %1930 = vadd.xlane.f32.xlu0 %v1929
    %v1931 = vpop.xlane.xlu0 %1930
    %v1932 = vsub.f32 0.0, %v1925
    %v1933 = vmul.f32 %v1932, 1.442695
    %v1934 = vpow.pop %v1933
    %v1935 = vadd.f32 %v1931, %v1934
    %v1936 = vlog2.pop %v1935
    %v1937 = vmul.f32 %v1936, 0.6931472
    %v1938 = vadd.f32 %v1925, %v1937
    %v1939 = vsub.f32 %v1921, %v1938
    %v1940 = vsub.f32 0.0, %v1938
    %v1941 = vsel %vm1891, %v1939, -inf
    %v1942 = vrot.slane %v1941, 4
    %v1943 = vmax.f32 %v1941, %v1942
    %v1944 = vrot.slane %v1943, 2
    %v1945 = vmax.f32 %v1943, %v1944
    %v1946 = vrot.slane %v1945, 1
    %v1947 = vmax.f32 %v1945, %v1946
    %v1948 = vmax.f32 %v1947, 0.0
    %v1949 = vsub.f32 %v1939, %v1948
    %v1950 = vmul.f32 %v1949, 1.442695
    %v1951 = vpow.pop %v1950
    %v1952 = vsel %vm1891, %v1951, 0.0
    %v1953 = vrot.slane %v1952, 4
    %v1954 = vadd.f32 %v1952, %v1953
    %v1955 = vrot.slane %v1954, 2
    %v1956 = vadd.f32 %v1954, %v1955
    %v1957 = vrot.slane %v1956, 1
    %v1958 = vadd.f32 %v1956, %v1957
    %v1959 = vsub.f32 0.0, %v1948
    %v1960 = vmul.f32 %v1959, 1.442695
    %v1961 = vpow.pop %v1960
    %v1962 = vadd.f32 %v1958, %v1961
    %v1963 = vlog2.pop %v1962
    %v1964 = vmul.f32 %v1963, 0.6931472
    %v1965 = vadd.f32 %v1948, %v1964
    %v1966 = vsub.f32 %v1939, %v1965
    %v1967 = vsub.f32 0.0, %v1965
    %v1968 = vsel %vm1891, %v1966, -inf
    %1969 = vmax.xlane.f32.xlu0 %v1968
    %v1970 = vpop.xlane.xlu0 %1969
    %v1971 = vmax.f32 %v1970, %v1940
    %v1972 = vsub.f32 %v1966, %v1971
    %v1973 = vmul.f32 %v1972, 1.442695
    %v1974 = vpow.pop %v1973
    %v1975 = vsel %vm1891, %v1974, 0.0
    %1976 = vadd.xlane.f32.xlu0 %v1975
    %v1977 = vpop.xlane.xlu0 %1976
    %v1978 = vsub.f32 %v1940, %v1971
    %v1979 = vmul.f32 %v1978, 1.442695
    %v1980 = vpow.pop %v1979
    %v1981 = vadd.f32 %v1977, %v1980
    %v1982 = vlog2.pop %v1981
    %v1983 = vmul.f32 %v1982, 0.6931472
    %v1984 = vadd.f32 %v1971, %v1983
    %v1985 = vsub.f32 %v1966, %v1984
    %v1986 = vsub.f32 %v1940, %v1984
    %v1987 = vsel %vm1891, %v1985, -inf
    %v1988 = vrot.slane %v1987, 4
    %v1989 = vmax.f32 %v1987, %v1988
    %v1990 = vrot.slane %v1989, 2
    %v1991 = vmax.f32 %v1989, %v1990
    %v1992 = vrot.slane %v1991, 1
    %v1993 = vmax.f32 %v1991, %v1992
    %v1994 = vmax.f32 %v1993, %v1967
    %v1995 = vsub.f32 %v1985, %v1994
    %v1996 = vmul.f32 %v1995, 1.442695
    %v1997 = vpow.pop %v1996
    %v1998 = vsel %vm1891, %v1997, 0.0
    %v1999 = vrot.slane %v1998, 4
    %v2000 = vadd.f32 %v1998, %v1999
    %v2001 = vrot.slane %v2000, 2
    %v2002 = vadd.f32 %v2000, %v2001
    %v2003 = vrot.slane %v2002, 1
    %v2004 = vadd.f32 %v2002, %v2003
    %v2005 = vsub.f32 %v1967, %v1994
    %v2006 = vmul.f32 %v2005, 1.442695
    %v2007 = vpow.pop %v2006
    %v2008 = vadd.f32 %v2004, %v2007
    %v2009 = vlog2.pop %v2008
    %v2010 = vmul.f32 %v2009, 0.6931472
    %v2011 = vadd.f32 %v1994, %v2010
    %v2012 = vsub.f32 %v1985, %v2011
    %v2013 = vsub.f32 %v1967, %v2011
    %v2014 = vsel %vm1891, %v2012, -inf
    %2015 = vmax.xlane.f32.xlu0 %v2014
    %v2016 = vpop.xlane.xlu0 %2015
    %v2017 = vmax.f32 %v2016, %v1986
    %v2018 = vsub.f32 %v2012, %v2017
    %v2019 = vmul.f32 %v2018, 1.442695
    %v2020 = vpow.pop %v2019
    %v2021 = vsel %vm1891, %v2020, 0.0
    %2022 = vadd.xlane.f32.xlu0 %v2021
    %v2023 = vpop.xlane.xlu0 %2022
    %v2024 = vsub.f32 %v1986, %v2017
    %v2025 = vmul.f32 %v2024, 1.442695
    %v2026 = vpow.pop %v2025
    %v2027 = vadd.f32 %v2023, %v2026
    %v2028 = vlog2.pop %v2027
    %v2029 = vmul.f32 %v2028, 0.6931472
    %v2030 = vadd.f32 %v2017, %v2029
    %v2031 = vsub.f32 %v2012, %v2030
    %v2032 = vsub.f32 %v1986, %v2030
    %v2033 = vsel %vm1891, %v2031, -inf
    %v2034 = vrot.slane %v2033, 4
    %v2035 = vmax.f32 %v2033, %v2034
    %v2036 = vrot.slane %v2035, 2
    %v2037 = vmax.f32 %v2035, %v2036
    %v2038 = vrot.slane %v2037, 1
    %v2039 = vmax.f32 %v2037, %v2038
    %v2040 = vmax.f32 %v2039, %v2013
    %v2041 = vsub.f32 %v2031, %v2040
    %v2042 = vmul.f32 %v2041, 1.442695
    %v2043 = vpow.pop %v2042
    %v2044 = vsel %vm1891, %v2043, 0.0
    %v2045 = vrot.slane %v2044, 4
    %v2046 = vadd.f32 %v2044, %v2045
    %v2047 = vrot.slane %v2046, 2
    %v2048 = vadd.f32 %v2046, %v2047
    %v2049 = vrot.slane %v2048, 1
    %v2050 = vadd.f32 %v2048, %v2049
    %v2051 = vsub.f32 %v2013, %v2040
    %v2052 = vmul.f32 %v2051, 1.442695
    %v2053 = vpow.pop %v2052
    %v2054 = vadd.f32 %v2050, %v2053
    %v2055 = vlog2.pop %v2054
    %v2056 = vmul.f32 %v2055, 0.6931472
    %v2057 = vadd.f32 %v2040, %v2056
    %v2058 = vsub.f32 %v2031, %v2057
    %v2059 = vsub.f32 %v2013, %v2057
    %v2060 = vsel %vm1891, %v2058, -inf
    %2061 = vmax.xlane.f32.xlu0 %v2060
    %v2062 = vpop.xlane.xlu0 %2061
    %v2063 = vmax.f32 %v2062, %v2032
    %v2064 = vsub.f32 %v2058, %v2063
    %v2065 = vmul.f32 %v2064, 1.442695
    %v2066 = vpow.pop %v2065
    %v2067 = vsel %vm1891, %v2066, 0.0
    %2068 = vadd.xlane.f32.xlu0 %v2067
    %v2069 = vpop.xlane.xlu0 %2068
    %v2070 = vsub.f32 %v2032, %v2063
    %v2071 = vmul.f32 %v2070, 1.442695
    %v2072 = vpow.pop %v2071
    %v2073 = vadd.f32 %v2069, %v2072
    %v2074 = vlog2.pop %v2073
    %v2075 = vmul.f32 %v2074, 0.6931472
    %v2076 = vadd.f32 %v2063, %v2075
    %v2077 = vsub.f32 %v2058, %v2076
    %v2078 = vsub.f32 %v2032, %v2076
    %v2079 = vsel %vm1891, %v2077, -inf
    %v2080 = vrot.slane %v2079, 4
    %v2081 = vmax.f32 %v2079, %v2080
    %v2082 = vrot.slane %v2081, 2
    %v2083 = vmax.f32 %v2081, %v2082
    %v2084 = vrot.slane %v2083, 1
    %v2085 = vmax.f32 %v2083, %v2084
    %v2086 = vmax.f32 %v2085, %v2059
    %v2087 = vsub.f32 %v2077, %v2086
    %v2088 = vmul.f32 %v2087, 1.442695
    %v2089 = vpow.pop %v2088
    %v2090 = vsel %vm1891, %v2089, 0.0
    %v2091 = vrot.slane %v2090, 4
    %v2092 = vadd.f32 %v2090, %v2091
    %v2093 = vrot.slane %v2092, 2
    %v2094 = vadd.f32 %v2092, %v2093
    %v2095 = vrot.slane %v2094, 1
    %v2096 = vadd.f32 %v2094, %v2095
    %v2097 = vsub.f32 %v2059, %v2086
    %v2098 = vmul.f32 %v2097, 1.442695
    %v2099 = vpow.pop %v2098
    %v2100 = vadd.f32 %v2096, %v2099
    %v2101 = vlog2.pop %v2100
    %v2102 = vmul.f32 %v2101, 0.6931472
    %v2103 = vadd.f32 %v2086, %v2102
    %v2104 = vsub.f32 %v2077, %v2103
    %v2105 = vsub.f32 %v2059, %v2103
    %v2106 = vsel %vm1891, %v2104, -inf
    %2107 = vmax.xlane.f32.xlu0 %v2106
    %v2108 = vpop.xlane.xlu0 %2107
    %v2109 = vmax.f32 %v2108, %v2078
    %v2110 = vsub.f32 %v2104, %v2109
    %v2111 = vmul.f32 %v2110, 1.442695
    %v2112 = vpow.pop %v2111
    %v2113 = vsel %vm1891, %v2112, 0.0
    %2114 = vadd.xlane.f32.xlu0 %v2113
    %v2115 = vpop.xlane.xlu0 %2114
    %v2116 = vsub.f32 %v2078, %v2109
    %v2117 = vmul.f32 %v2116, 1.442695
    %v2118 = vpow.pop %v2117
    %v2119 = vadd.f32 %v2115, %v2118
    %v2120 = vlog2.pop %v2119
    %v2121 = vmul.f32 %v2120, 0.6931472
    %v2122 = vadd.f32 %v2109, %v2121
    %v2123 = vsub.f32 %v2104, %v2122
    %v2124 = vsub.f32 %v2078, %v2122
    %v2125 = vsel %vm1891, %v2123, -inf
    %v2126 = vrot.slane %v2125, 4
    %v2127 = vmax.f32 %v2125, %v2126
    %v2128 = vrot.slane %v2127, 2
    %v2129 = vmax.f32 %v2127, %v2128
    %v2130 = vrot.slane %v2129, 1
    %v2131 = vmax.f32 %v2129, %v2130
    %v2132 = vmax.f32 %v2131, %v2105
    %v2133 = vsub.f32 %v2123, %v2132
    %v2134 = vmul.f32 %v2133, 1.442695
    %v2135 = vpow.pop %v2134
    %v2136 = vsel %vm1891, %v2135, 0.0
    %v2137 = vrot.slane %v2136, 4
    %v2138 = vadd.f32 %v2136, %v2137
    %v2139 = vrot.slane %v2138, 2
    %v2140 = vadd.f32 %v2138, %v2139
    %v2141 = vrot.slane %v2140, 1
    %v2142 = vadd.f32 %v2140, %v2141
    %v2143 = vsub.f32 %v2105, %v2132
    %v2144 = vmul.f32 %v2143, 1.442695
    %v2145 = vpow.pop %v2144
    %v2146 = vadd.f32 %v2142, %v2145
    %v2147 = vlog2.pop %v2146
    %v2148 = vmul.f32 %v2147, 0.6931472
    %v2149 = vadd.f32 %v2132, %v2148
    %v2150 = vsub.f32 %v2123, %v2149
    %v2151 = vsub.f32 %v2105, %v2149
    %v2152 = vsel %vm1891, %v2150, -inf
    %2153 = vmax.xlane.f32.xlu0 %v2152
    %v2154 = vpop.xlane.xlu0 %2153
    %v2155 = vmax.f32 %v2154, %v2124
    %v2156 = vsub.f32 %v2150, %v2155
    %v2157 = vmul.f32 %v2156, 1.442695
    %v2158 = vpow.pop %v2157
    %v2159 = vsel %vm1891, %v2158, 0.0
    %2160 = vadd.xlane.f32.xlu0 %v2159
    %v2161 = vpop.xlane.xlu0 %2160
    %v2162 = vsub.f32 %v2124, %v2155
    %v2163 = vmul.f32 %v2162, 1.442695
    %v2164 = vpow.pop %v2163
    %v2165 = vadd.f32 %v2161, %v2164
    %v2166 = vlog2.pop %v2165
    %v2167 = vmul.f32 %v2166, 0.6931472
    %v2168 = vadd.f32 %v2155, %v2167
    %v2169 = vsub.f32 %v2150, %v2168
    %v2170 = vsub.f32 %v2124, %v2168
    %v2171 = vsel %vm1891, %v2169, -inf
    %v2172 = vrot.slane %v2171, 4
    %v2173 = vmax.f32 %v2171, %v2172
    %v2174 = vrot.slane %v2173, 2
    %v2175 = vmax.f32 %v2173, %v2174
    %v2176 = vrot.slane %v2175, 1
    %v2177 = vmax.f32 %v2175, %v2176
    %v2178 = vmax.f32 %v2177, %v2151
    %v2179 = vsub.f32 %v2169, %v2178
    %v2180 = vmul.f32 %v2179, 1.442695
    %v2181 = vpow.pop %v2180
    %v2182 = vsel %vm1891, %v2181, 0.0
    %v2183 = vrot.slane %v2182, 4
    %v2184 = vadd.f32 %v2182, %v2183
    %v2185 = vrot.slane %v2184, 2
    %v2186 = vadd.f32 %v2184, %v2185
    %v2187 = vrot.slane %v2186, 1
    %v2188 = vadd.f32 %v2186, %v2187
    %v2189 = vsub.f32 %v2151, %v2178
    %v2190 = vmul.f32 %v2189, 1.442695
    %v2191 = vpow.pop %v2190
    %v2192 = vadd.f32 %v2188, %v2191
    %v2193 = vlog2.pop %v2192
    %v2194 = vmul.f32 %v2193, 0.6931472
    %v2195 = vadd.f32 %v2178, %v2194
    %v2196 = vsub.f32 %v2169, %v2195
    %v2197 = vsub.f32 %v2151, %v2195
    %v2198 = vsel %vm1891, %v2196, -inf
    %2199 = vmax.xlane.f32.xlu0 %v2198
    %v2200 = vpop.xlane.xlu0 %2199
    %v2201 = vmax.f32 %v2200, %v2170
    %v2202 = vsub.f32 %v2196, %v2201
    %v2203 = vmul.f32 %v2202, 1.442695
    %v2204 = vpow.pop %v2203
    %v2205 = vsel %vm1891, %v2204, 0.0
    %2206 = vadd.xlane.f32.xlu0 %v2205
    %v2207 = vpop.xlane.xlu0 %2206
    %v2208 = vsub.f32 %v2170, %v2201
    %v2209 = vmul.f32 %v2208, 1.442695
    %v2210 = vpow.pop %v2209
    %v2211 = vadd.f32 %v2207, %v2210
    %v2212 = vlog2.pop %v2211
    %v2213 = vmul.f32 %v2212, 0.6931472
    %v2214 = vadd.f32 %v2201, %v2213
    %v2215 = vsub.f32 %v2196, %v2214
    %v2216 = vsub.f32 %v2170, %v2214
    %v2217 = vsel %vm1891, %v2215, -inf
    %v2218 = vrot.slane %v2217, 4
    %v2219 = vmax.f32 %v2217, %v2218
    %v2220 = vrot.slane %v2219, 2
    %v2221 = vmax.f32 %v2219, %v2220
    %v2222 = vrot.slane %v2221, 1
    %v2223 = vmax.f32 %v2221, %v2222
    %v2224 = vmax.f32 %v2223, %v2197
    %v2225 = vsub.f32 %v2215, %v2224
    %v2226 = vmul.f32 %v2225, 1.442695
    %v2227 = vpow.pop %v2226
    %v2228 = vsel %vm1891, %v2227, 0.0
    %v2229 = vrot.slane %v2228, 4
    %v2230 = vadd.f32 %v2228, %v2229
    %v2231 = vrot.slane %v2230, 2
    %v2232 = vadd.f32 %v2230, %v2231
    %v2233 = vrot.slane %v2232, 1
    %v2234 = vadd.f32 %v2232, %v2233
    %v2235 = vsub.f32 %v2197, %v2224
    %v2236 = vmul.f32 %v2235, 1.442695
    %v2237 = vpow.pop %v2236
    %v2238 = vadd.f32 %v2234, %v2237
    %v2239 = vlog2.pop %v2238
    %v2240 = vmul.f32 %v2239, 0.6931472
    %v2241 = vadd.f32 %v2224, %v2240
    %v2242 = vsub.f32 %v2215, %v2241
    %v2243 = vsub.f32 %v2197, %v2241
    %v2244 = vsel %vm1891, %v2242, -inf
    %2245 = vmax.xlane.f32.xlu0 %v2244
    %v2246 = vpop.xlane.xlu0 %2245
    %v2247 = vmax.f32 %v2246, %v2216
    %v2248 = vsub.f32 %v2242, %v2247
    %v2249 = vmul.f32 %v2248, 1.442695
    %v2250 = vpow.pop %v2249
    %v2251 = vsel %vm1891, %v2250, 0.0
    %2252 = vadd.xlane.f32.xlu0 %v2251
    %v2253 = vpop.xlane.xlu0 %2252
    %v2254 = vsub.f32 %v2216, %v2247
    %v2255 = vmul.f32 %v2254, 1.442695
    %v2256 = vpow.pop %v2255
    %v2257 = vadd.f32 %v2253, %v2256
    %v2258 = vlog2.pop %v2257
    %v2259 = vmul.f32 %v2258, 0.6931472
    %v2260 = vadd.f32 %v2247, %v2259
    %v2261 = vsub.f32 %v2242, %v2260
    %v2262 = vsub.f32 %v2216, %v2260
    %v2263 = vsel %vm1891, %v2261, -inf
    %v2264 = vrot.slane %v2263, 4
    %v2265 = vmax.f32 %v2263, %v2264
    %v2266 = vrot.slane %v2265, 2
    %v2267 = vmax.f32 %v2265, %v2266
    %v2268 = vrot.slane %v2267, 1
    %v2269 = vmax.f32 %v2267, %v2268
    %v2270 = vmax.f32 %v2269, %v2243
    %v2271 = vsub.f32 %v2261, %v2270
    %v2272 = vmul.f32 %v2271, 1.442695
    %v2273 = vpow.pop %v2272
    %v2274 = vsel %vm1891, %v2273, 0.0
    %v2275 = vrot.slane %v2274, 4
    %v2276 = vadd.f32 %v2274, %v2275
    %v2277 = vrot.slane %v2276, 2
    %v2278 = vadd.f32 %v2276, %v2277
    %v2279 = vrot.slane %v2278, 1
    %v2280 = vadd.f32 %v2278, %v2279
    %v2281 = vsub.f32 %v2243, %v2270
    %v2282 = vmul.f32 %v2281, 1.442695
    %v2283 = vpow.pop %v2282
    %v2284 = vadd.f32 %v2280, %v2283
    %v2285 = vlog2.pop %v2284
    %v2286 = vmul.f32 %v2285, 0.6931472
    %v2287 = vadd.f32 %v2270, %v2286
    %v2288 = vsub.f32 %v2261, %v2287
    %v2289 = vsub.f32 %v2243, %v2287
    %v2290 = vsel %vm1891, %v2288, -inf
    %2291 = vmax.xlane.f32.xlu0 %v2290
    %v2292 = vpop.xlane.xlu0 %2291
    %v2293 = vmax.f32 %v2292, %v2262
    %v2294 = vsub.f32 %v2288, %v2293
    %v2295 = vmul.f32 %v2294, 1.442695
    %v2296 = vpow.pop %v2295
    %v2297 = vsel %vm1891, %v2296, 0.0
    %2298 = vadd.xlane.f32.xlu0 %v2297
    %v2299 = vpop.xlane.xlu0 %2298
    %v2300 = vsub.f32 %v2262, %v2293
    %v2301 = vmul.f32 %v2300, 1.442695
    %v2302 = vpow.pop %v2301
    %v2303 = vadd.f32 %v2299, %v2302
    %v2304 = vlog2.pop %v2303
    %v2305 = vmul.f32 %v2304, 0.6931472
    %v2306 = vadd.f32 %v2293, %v2305
    %v2307 = vsub.f32 %v2288, %v2306
    %v2308 = vsub.f32 %v2262, %v2306
    %v2309 = vsel %vm1891, %v2307, -inf
    %v2310 = vrot.slane %v2309, 4
    %v2311 = vmax.f32 %v2309, %v2310
    %v2312 = vrot.slane %v2311, 2
    %v2313 = vmax.f32 %v2311, %v2312
    %v2314 = vrot.slane %v2313, 1
    %v2315 = vmax.f32 %v2313, %v2314
    %v2316 = vmax.f32 %v2315, %v2289
    %v2317 = vsub.f32 %v2307, %v2316
    %v2318 = vmul.f32 %v2317, 1.442695
    %v2319 = vpow.pop %v2318
    %v2320 = vsel %vm1891, %v2319, 0.0
    %v2321 = vrot.slane %v2320, 4
    %v2322 = vadd.f32 %v2320, %v2321
    %v2323 = vrot.slane %v2322, 2
    %v2324 = vadd.f32 %v2322, %v2323
    %v2325 = vrot.slane %v2324, 1
    %v2326 = vadd.f32 %v2324, %v2325
    %v2327 = vsub.f32 %v2289, %v2316
    %v2328 = vmul.f32 %v2327, 1.442695
    %v2329 = vpow.pop %v2328
    %v2330 = vadd.f32 %v2326, %v2329
    %v2331 = vlog2.pop %v2330
    %v2332 = vmul.f32 %v2331, 0.6931472
    %v2333 = vadd.f32 %v2316, %v2332
    %v2334 = vsub.f32 %v2307, %v2333
    %v2335 = vsub.f32 %v2289, %v2333
    %v2336 = vsel %vm1891, %v2334, -inf
    %2337 = vmax.xlane.f32.xlu0 %v2336
    %v2338 = vpop.xlane.xlu0 %2337
    %v2339 = vmax.f32 %v2338, %v2308
    %v2340 = vsub.f32 %v2334, %v2339
    %v2341 = vmul.f32 %v2340, 1.442695
    %v2342 = vpow.pop %v2341
    %v2343 = vsel %vm1891, %v2342, 0.0
    %2344 = vadd.xlane.f32.xlu0 %v2343
    %v2345 = vpop.xlane.xlu0 %2344
    %v2346 = vsub.f32 %v2308, %v2339
    %v2347 = vmul.f32 %v2346, 1.442695
    %v2348 = vpow.pop %v2347
    %v2349 = vadd.f32 %v2345, %v2348
    %v2350 = vlog2.pop %v2349
    %v2351 = vmul.f32 %v2350, 0.6931472
    %v2352 = vadd.f32 %v2339, %v2351
    %v2353 = vsub.f32 %v2334, %v2352
    %v2354 = vsub.f32 %v2308, %v2352
    %v2355 = vsel %vm1891, %v2353, -inf
    %v2356 = vrot.slane %v2355, 4
    %v2357 = vmax.f32 %v2355, %v2356
    %v2358 = vrot.slane %v2357, 2
    %v2359 = vmax.f32 %v2357, %v2358
    %v2360 = vrot.slane %v2359, 1
    %v2361 = vmax.f32 %v2359, %v2360
    %v2362 = vmax.f32 %v2361, %v2335
    %v2363 = vsub.f32 %v2353, %v2362
    %v2364 = vmul.f32 %v2363, 1.442695
    %v2365 = vpow.pop %v2364
    %v2366 = vsel %vm1891, %v2365, 0.0
    %v2367 = vrot.slane %v2366, 4
    %v2368 = vadd.f32 %v2366, %v2367
    %v2369 = vrot.slane %v2368, 2
    %v2370 = vadd.f32 %v2368, %v2369
    %v2371 = vrot.slane %v2370, 1
    %v2372 = vadd.f32 %v2370, %v2371
    %v2373 = vsub.f32 %v2335, %v2362
    %v2374 = vmul.f32 %v2373, 1.442695
    %v2375 = vpow.pop %v2374
    %v2376 = vadd.f32 %v2372, %v2375
    %v2377 = vlog2.pop %v2376
    %v2378 = vmul.f32 %v2377, 0.6931472
    %v2379 = vadd.f32 %v2362, %v2378
    %v2380 = vsub.f32 %v2353, %v2379
    %v2381 = vsub.f32 %v2335, %v2379
    %v2382 = vsel %vm1891, %v2380, -inf
    %2383 = vmax.xlane.f32.xlu0 %v2382
    %v2384 = vpop.xlane.xlu0 %2383
    %v2385 = vmax.f32 %v2384, %v2354
    %v2386 = vsub.f32 %v2380, %v2385
    %v2387 = vmul.f32 %v2386, 1.442695
    %v2388 = vpow.pop %v2387
    %v2389 = vsel %vm1891, %v2388, 0.0
    %2390 = vadd.xlane.f32.xlu0 %v2389
    %v2391 = vpop.xlane.xlu0 %2390
    %v2392 = vsub.f32 %v2354, %v2385
    %v2393 = vmul.f32 %v2392, 1.442695
    %v2394 = vpow.pop %v2393
    %v2395 = vadd.f32 %v2391, %v2394
    %v2396 = vlog2.pop %v2395
    %v2397 = vmul.f32 %v2396, 0.6931472
    %v2398 = vadd.f32 %v2385, %v2397
    %v2399 = vsub.f32 %v2380, %v2398
    %v2400 = vsub.f32 %v2354, %v2398
    %v2401 = vsel %vm1891, %v2399, -inf
    %v2402 = vrot.slane %v2401, 4
    %v2403 = vmax.f32 %v2401, %v2402
    %v2404 = vrot.slane %v2403, 2
    %v2405 = vmax.f32 %v2403, %v2404
    %v2406 = vrot.slane %v2405, 1
    %v2407 = vmax.f32 %v2405, %v2406
    %v2408 = vmax.f32 %v2407, %v2381
    %v2409 = vsub.f32 %v2399, %v2408
    %v2410 = vmul.f32 %v2409, 1.442695
    %v2411 = vpow.pop %v2410
    %v2412 = vsel %vm1891, %v2411, 0.0
    %v2413 = vrot.slane %v2412, 4
    %v2414 = vadd.f32 %v2412, %v2413
    %v2415 = vrot.slane %v2414, 2
    %v2416 = vadd.f32 %v2414, %v2415
    %v2417 = vrot.slane %v2416, 1
    %v2418 = vadd.f32 %v2416, %v2417
    %v2419 = vsub.f32 %v2381, %v2408
    %v2420 = vmul.f32 %v2419, 1.442695
    %v2421 = vpow.pop %v2420
    %v2422 = vadd.f32 %v2418, %v2421
    %v2423 = vlog2.pop %v2422
    %v2424 = vmul.f32 %v2423, 0.6931472
    %v2425 = vadd.f32 %v2408, %v2424
    %v2426 = vsub.f32 %v2399, %v2425
    %v2427 = vsub.f32 %v2381, %v2425
    %v2428 = vsel %vm1891, %v2426, -inf
    %2429 = vmax.xlane.f32.xlu0 %v2428
    %v2430 = vpop.xlane.xlu0 %2429
    %v2431 = vmax.f32 %v2430, %v2400
    %v2432 = vsub.f32 %v2426, %v2431
    %v2433 = vmul.f32 %v2432, 1.442695
    %v2434 = vpow.pop %v2433
    %v2435 = vsel %vm1891, %v2434, 0.0
    %2436 = vadd.xlane.f32.xlu0 %v2435
    %v2437 = vpop.xlane.xlu0 %2436
    %v2438 = vsub.f32 %v2400, %v2431
    %v2439 = vmul.f32 %v2438, 1.442695
    %v2440 = vpow.pop %v2439
    %v2441 = vadd.f32 %v2437, %v2440
    %v2442 = vlog2.pop %v2441
    %v2443 = vmul.f32 %v2442, 0.6931472
    %v2444 = vadd.f32 %v2431, %v2443
    %v2445 = vsub.f32 %v2426, %v2444
    %v2446 = vsub.f32 %v2400, %v2444
    %v2447 = vsel %vm1891, %v2445, -inf
    %v2448 = vrot.slane %v2447, 4
    %v2449 = vmax.f32 %v2447, %v2448
    %v2450 = vrot.slane %v2449, 2
    %v2451 = vmax.f32 %v2449, %v2450
    %v2452 = vrot.slane %v2451, 1
    %v2453 = vmax.f32 %v2451, %v2452
    %v2454 = vmax.f32 %v2453, %v2427
    %v2455 = vsub.f32 %v2445, %v2454
    %v2456 = vmul.f32 %v2455, 1.442695
    %v2457 = vpow.pop %v2456
    %v2458 = vsel %vm1891, %v2457, 0.0
    %v2459 = vrot.slane %v2458, 4
    %v2460 = vadd.f32 %v2458, %v2459
    %v2461 = vrot.slane %v2460, 2
    %v2462 = vadd.f32 %v2460, %v2461
    %v2463 = vrot.slane %v2462, 1
    %v2464 = vadd.f32 %v2462, %v2463
    %v2465 = vsub.f32 %v2427, %v2454
    %v2466 = vmul.f32 %v2465, 1.442695
    %v2467 = vpow.pop %v2466
    %v2468 = vadd.f32 %v2464, %v2467
    %v2469 = vlog2.pop %v2468
    %v2470 = vmul.f32 %v2469, 0.6931472
    %v2471 = vadd.f32 %v2454, %v2470
    %v2472 = vsub.f32 %v2445, %v2471
    %v2473 = vsub.f32 %v2427, %v2471
    %v2474 = vsel %vm1891, %v2472, -inf
    %2475 = vmax.xlane.f32.xlu0 %v2474
    %v2476 = vpop.xlane.xlu0 %2475
    %v2477 = vmax.f32 %v2476, %v2446
    %v2478 = vsub.f32 %v2472, %v2477
    %v2479 = vmul.f32 %v2478, 1.442695
    %v2480 = vpow.pop %v2479
    %v2481 = vsel %vm1891, %v2480, 0.0
    %2482 = vadd.xlane.f32.xlu0 %v2481
    %v2483 = vpop.xlane.xlu0 %2482
    %v2484 = vsub.f32 %v2446, %v2477
    %v2485 = vmul.f32 %v2484, 1.442695
    %v2486 = vpow.pop %v2485
    %v2487 = vadd.f32 %v2483, %v2486
    %v2488 = vlog2.pop %v2487
    %v2489 = vmul.f32 %v2488, 0.6931472
    %v2490 = vadd.f32 %v2477, %v2489
    %v2491 = vsub.f32 %v2472, %v2490
    %v2492 = vsub.f32 %v2446, %v2490
    %v2493 = vsel %vm1891, %v2491, -inf
    %v2494 = vrot.slane %v2493, 4
    %v2495 = vmax.f32 %v2493, %v2494
    %v2496 = vrot.slane %v2495, 2
    %v2497 = vmax.f32 %v2495, %v2496
    %v2498 = vrot.slane %v2497, 1
    %v2499 = vmax.f32 %v2497, %v2498
    %v2500 = vmax.f32 %v2499, %v2473
    %v2501 = vsub.f32 %v2491, %v2500
    %v2502 = vmul.f32 %v2501, 1.442695
    %v2503 = vpow.pop %v2502
    %v2504 = vsel %vm1891, %v2503, 0.0
    %v2505 = vrot.slane %v2504, 4
    %v2506 = vadd.f32 %v2504, %v2505
    %v2507 = vrot.slane %v2506, 2
    %v2508 = vadd.f32 %v2506, %v2507
    %v2509 = vrot.slane %v2508, 1
    %v2510 = vadd.f32 %v2508, %v2509
    %v2511 = vsub.f32 %v2473, %v2500
    %v2512 = vmul.f32 %v2511, 1.442695
    %v2513 = vpow.pop %v2512
    %v2514 = vadd.f32 %v2510, %v2513
    %v2515 = vlog2.pop %v2514
    %v2516 = vmul.f32 %v2515, 0.6931472
    %v2517 = vadd.f32 %v2500, %v2516
    %v2518 = vsub.f32 %v2491, %v2517
    %v2519 = vsub.f32 %v2473, %v2517
    %v2520 = vsel %vm1891, %v2518, -inf
    %2521 = vmax.xlane.f32.xlu0 %v2520
    %v2522 = vpop.xlane.xlu0 %2521
    %v2523 = vmax.f32 %v2522, %v2492
    %v2524 = vsub.f32 %v2518, %v2523
    %v2525 = vmul.f32 %v2524, 1.442695
    %v2526 = vpow.pop %v2525
    %v2527 = vsel %vm1891, %v2526, 0.0
    %2528 = vadd.xlane.f32.xlu0 %v2527
    %v2529 = vpop.xlane.xlu0 %2528
    %v2530 = vsub.f32 %v2492, %v2523
    %v2531 = vmul.f32 %v2530, 1.442695
    %v2532 = vpow.pop %v2531
    %v2533 = vadd.f32 %v2529, %v2532
    %v2534 = vlog2.pop %v2533
    %v2535 = vmul.f32 %v2534, 0.6931472
    %v2536 = vadd.f32 %v2523, %v2535
    %v2537 = vsub.f32 %v2518, %v2536
    %v2538 = vsub.f32 %v2492, %v2536
    %v2539 = vsel %vm1891, %v2537, -inf
    %v2540 = vrot.slane %v2539, 4
    %v2541 = vmax.f32 %v2539, %v2540
    %v2542 = vrot.slane %v2541, 2
    %v2543 = vmax.f32 %v2541, %v2542
    %v2544 = vrot.slane %v2543, 1
    %v2545 = vmax.f32 %v2543, %v2544
    %v2546 = vmax.f32 %v2545, %v2519
    %v2547 = vsub.f32 %v2537, %v2546
    %v2548 = vmul.f32 %v2547, 1.442695
    %v2549 = vpow.pop %v2548
    %v2550 = vsel %vm1891, %v2549, 0.0
    %v2551 = vrot.slane %v2550, 4
    %v2552 = vadd.f32 %v2550, %v2551
    %v2553 = vrot.slane %v2552, 2
    %v2554 = vadd.f32 %v2552, %v2553
    %v2555 = vrot.slane %v2554, 1
    %v2556 = vadd.f32 %v2554, %v2555
    %v2557 = vsub.f32 %v2519, %v2546
    %v2558 = vmul.f32 %v2557, 1.442695
    %v2559 = vpow.pop %v2558
    %v2560 = vadd.f32 %v2556, %v2559
    %v2561 = vlog2.pop %v2560
    %v2562 = vmul.f32 %v2561, 0.6931472
    %v2563 = vadd.f32 %v2546, %v2562
    %v2564 = vsub.f32 %v2537, %v2563
    %v2565 = vsub.f32 %v2519, %v2563
    %v2566 = vsel %vm1891, %v2564, -inf
    %2567 = vmax.xlane.f32.xlu0 %v2566
    %v2568 = vpop.xlane.xlu0 %2567
    %v2569 = vmax.f32 %v2568, %v2538
    %v2570 = vsub.f32 %v2564, %v2569
    %v2571 = vmul.f32 %v2570, 1.442695
    %v2572 = vpow.pop %v2571
    %v2573 = vsel %vm1891, %v2572, 0.0
    %2574 = vadd.xlane.f32.xlu0 %v2573
    %v2575 = vpop.xlane.xlu0 %2574
    %v2576 = vsub.f32 %v2538, %v2569
    %v2577 = vmul.f32 %v2576, 1.442695
    %v2578 = vpow.pop %v2577
    %v2579 = vadd.f32 %v2575, %v2578
    %v2580 = vlog2.pop %v2579
    %v2581 = vmul.f32 %v2580, 0.6931472
    %v2582 = vadd.f32 %v2569, %v2581
    %v2583 = vsub.f32 %v2564, %v2582
    %v2584 = vsub.f32 %v2538, %v2582
    %v2585 = vsel %vm1891, %v2583, -inf
    %v2586 = vrot.slane %v2585, 4
    %v2587 = vmax.f32 %v2585, %v2586
    %v2588 = vrot.slane %v2587, 2
    %v2589 = vmax.f32 %v2587, %v2588
    %v2590 = vrot.slane %v2589, 1
    %v2591 = vmax.f32 %v2589, %v2590
    %v2592 = vmax.f32 %v2591, %v2565
    %v2593 = vsub.f32 %v2583, %v2592
    %v2594 = vmul.f32 %v2593, 1.442695
    %v2595 = vpow.pop %v2594
    %v2596 = vsel %vm1891, %v2595, 0.0
    %v2597 = vrot.slane %v2596, 4
    %v2598 = vadd.f32 %v2596, %v2597
    %v2599 = vrot.slane %v2598, 2
    %v2600 = vadd.f32 %v2598, %v2599
    %v2601 = vrot.slane %v2600, 1
    %v2602 = vadd.f32 %v2600, %v2601
    %v2603 = vsub.f32 %v2565, %v2592
    %v2604 = vmul.f32 %v2603, 1.442695
    %v2605 = vpow.pop %v2604
    %v2606 = vadd.f32 %v2602, %v2605
    %v2607 = vlog2.pop %v2606
    %v2608 = vmul.f32 %v2607, 0.6931472
    %v2609 = vadd.f32 %v2592, %v2608
    %v2610 = vsub.f32 %v2583, %v2609
    %v2611 = vsub.f32 %v2565, %v2609
    %v2612 = vsel %vm1891, %v2610, -inf
    %2613 = vmax.xlane.f32.xlu0 %v2612
    %v2614 = vpop.xlane.xlu0 %2613
    %v2615 = vmax.f32 %v2614, %v2584
    %v2616 = vsub.f32 %v2610, %v2615
    %v2617 = vmul.f32 %v2616, 1.442695
    %v2618 = vpow.pop %v2617
    %v2619 = vsel %vm1891, %v2618, 0.0
    %2620 = vadd.xlane.f32.xlu0 %v2619
    %v2621 = vpop.xlane.xlu0 %2620
    %v2622 = vsub.f32 %v2584, %v2615
    %v2623 = vmul.f32 %v2622, 1.442695
    %v2624 = vpow.pop %v2623
    %v2625 = vadd.f32 %v2621, %v2624
    %v2626 = vlog2.pop %v2625
    %v2627 = vmul.f32 %v2626, 0.6931472
    %v2628 = vadd.f32 %v2615, %v2627
    %v2629 = vsub.f32 %v2610, %v2628
    %v2630 = vsub.f32 %v2584, %v2628
    %v2631 = vsel %vm1891, %v2629, -inf
    %v2632 = vrot.slane %v2631, 4
    %v2633 = vmax.f32 %v2631, %v2632
    %v2634 = vrot.slane %v2633, 2
    %v2635 = vmax.f32 %v2633, %v2634
    %v2636 = vrot.slane %v2635, 1
    %v2637 = vmax.f32 %v2635, %v2636
    %v2638 = vmax.f32 %v2637, %v2611
    %v2639 = vsub.f32 %v2629, %v2638
    %v2640 = vmul.f32 %v2639, 1.442695
    %v2641 = vpow.pop %v2640
    %v2642 = vsel %vm1891, %v2641, 0.0
    %v2643 = vrot.slane %v2642, 4
    %v2644 = vadd.f32 %v2642, %v2643
    %v2645 = vrot.slane %v2644, 2
    %v2646 = vadd.f32 %v2644, %v2645
    %v2647 = vrot.slane %v2646, 1
    %v2648 = vadd.f32 %v2646, %v2647
    %v2649 = vsub.f32 %v2611, %v2638
    %v2650 = vmul.f32 %v2649, 1.442695
    %v2651 = vpow.pop %v2650
    %v2652 = vadd.f32 %v2648, %v2651
    %v2653 = vlog2.pop %v2652
    %v2654 = vmul.f32 %v2653, 0.6931472
    %v2655 = vadd.f32 %v2638, %v2654
    %v2656 = vsub.f32 %v2629, %v2655
    %v2657 = vsub.f32 %v2611, %v2655
    %v2658 = vsel %vm1891, %v2656, -inf
    %2659 = vmax.xlane.f32.xlu0 %v2658
    %v2660 = vpop.xlane.xlu0 %2659
    %v2661 = vmax.f32 %v2660, %v2630
    %v2662 = vsub.f32 %v2656, %v2661
    %v2663 = vmul.f32 %v2662, 1.442695
    %v2664 = vpow.pop %v2663
    %v2665 = vsel %vm1891, %v2664, 0.0
    %2666 = vadd.xlane.f32.xlu0 %v2665
    %v2667 = vpop.xlane.xlu0 %2666
    %v2668 = vsub.f32 %v2630, %v2661
    %v2669 = vmul.f32 %v2668, 1.442695
    %v2670 = vpow.pop %v2669
    %v2671 = vadd.f32 %v2667, %v2670
    %v2672 = vlog2.pop %v2671
    %v2673 = vmul.f32 %v2672, 0.6931472
    %v2674 = vadd.f32 %v2661, %v2673
    %v2675 = vsub.f32 %v2656, %v2674
    %v2676 = vsub.f32 %v2630, %v2674
    %v2677 = vsel %vm1891, %v2675, -inf
    %v2678 = vrot.slane %v2677, 4
    %v2679 = vmax.f32 %v2677, %v2678
    %v2680 = vrot.slane %v2679, 2
    %v2681 = vmax.f32 %v2679, %v2680
    %v2682 = vrot.slane %v2681, 1
    %v2683 = vmax.f32 %v2681, %v2682
    %v2684 = vmax.f32 %v2683, %v2657
    %v2685 = vsub.f32 %v2675, %v2684
    %v2686 = vmul.f32 %v2685, 1.442695
    %v2687 = vpow.pop %v2686
    %v2688 = vsel %vm1891, %v2687, 0.0
    %v2689 = vrot.slane %v2688, 4
    %v2690 = vadd.f32 %v2688, %v2689
    %v2691 = vrot.slane %v2690, 2
    %v2692 = vadd.f32 %v2690, %v2691
    %v2693 = vrot.slane %v2692, 1
    %v2694 = vadd.f32 %v2692, %v2693
    %v2695 = vsub.f32 %v2657, %v2684
    %v2696 = vmul.f32 %v2695, 1.442695
    %v2697 = vpow.pop %v2696
    %v2698 = vadd.f32 %v2694, %v2697
    %v2699 = vlog2.pop %v2698
    %v2700 = vmul.f32 %v2699, 0.6931472
    %v2701 = vadd.f32 %v2684, %v2700
    %v2702 = vsub.f32 %v2675, %v2701
    %v2703 = vsub.f32 %v2657, %v2701
    %v2704 = vsel %vm1891, %v2702, -inf
    %2705 = vmax.xlane.f32.xlu0 %v2704
    %v2706 = vpop.xlane.xlu0 %2705
    %v2707 = vmax.f32 %v2706, %v2676
    %v2708 = vsub.f32 %v2702, %v2707
    %v2709 = vmul.f32 %v2708, 1.442695
    %v2710 = vpow.pop %v2709
    %v2711 = vsel %vm1891, %v2710, 0.0
    %2712 = vadd.xlane.f32.xlu0 %v2711
    %v2713 = vpop.xlane.xlu0 %2712
    %v2714 = vsub.f32 %v2676, %v2707
    %v2715 = vmul.f32 %v2714, 1.442695
    %v2716 = vpow.pop %v2715
    %v2717 = vadd.f32 %v2713, %v2716
    %v2718 = vlog2.pop %v2717
    %v2719 = vmul.f32 %v2718, 0.6931472
    %v2720 = vadd.f32 %v2707, %v2719
    %v2721 = vsub.f32 %v2702, %v2720
    %v2722 = vsub.f32 %v2676, %v2720
    %v2723 = vsel %vm1891, %v2721, -inf
    %v2724 = vrot.slane %v2723, 4
    %v2725 = vmax.f32 %v2723, %v2724
    %v2726 = vrot.slane %v2725, 2
    %v2727 = vmax.f32 %v2725, %v2726
    %v2728 = vrot.slane %v2727, 1
    %v2729 = vmax.f32 %v2727, %v2728
    %v2730 = vmax.f32 %v2729, %v2703
    %v2731 = vsub.f32 %v2721, %v2730
    %v2732 = vmul.f32 %v2731, 1.442695
    %v2733 = vpow.pop %v2732
    %v2734 = vsel %vm1891, %v2733, 0.0
    %v2735 = vrot.slane %v2734, 4
    %v2736 = vadd.f32 %v2734, %v2735
    %v2737 = vrot.slane %v2736, 2
    %v2738 = vadd.f32 %v2736, %v2737
    %v2739 = vrot.slane %v2738, 1
    %v2740 = vadd.f32 %v2738, %v2739
    %v2741 = vsub.f32 %v2703, %v2730
    %v2742 = vmul.f32 %v2741, 1.442695
    %v2743 = vpow.pop %v2742
    %v2744 = vadd.f32 %v2740, %v2743
    %v2745 = vlog2.pop %v2744
    %v2746 = vmul.f32 %v2745, 0.6931472
    %v2747 = vadd.f32 %v2730, %v2746
    %v2748 = vsub.f32 %v2721, %v2747
    %v2749 = vsub.f32 %v2703, %v2747
    %v2750 = vsel %vm1891, %v2748, -inf
    %2751 = vmax.xlane.f32.xlu0 %v2750
    %v2752 = vpop.xlane.xlu0 %2751
    %v2753 = vmax.f32 %v2752, %v2722
    %v2754 = vsub.f32 %v2748, %v2753
    %v2755 = vmul.f32 %v2754, 1.442695
    %v2756 = vpow.pop %v2755
    %v2757 = vsel %vm1891, %v2756, 0.0
    %2758 = vadd.xlane.f32.xlu0 %v2757
    %v2759 = vpop.xlane.xlu0 %2758
    %v2760 = vsub.f32 %v2722, %v2753
    %v2761 = vmul.f32 %v2760, 1.442695
    %v2762 = vpow.pop %v2761
    %v2763 = vadd.f32 %v2759, %v2762
    %v2764 = vlog2.pop %v2763
    %v2765 = vmul.f32 %v2764, 0.6931472
    %v2766 = vadd.f32 %v2753, %v2765
    %v2767 = vsub.f32 %v2748, %v2766
    %v2768 = vsub.f32 %v2722, %v2766
    %v2769 = vsel %vm1891, %v2767, -inf
    %v2770 = vrot.slane %v2769, 4
    %v2771 = vmax.f32 %v2769, %v2770
    %v2772 = vrot.slane %v2771, 2
    %v2773 = vmax.f32 %v2771, %v2772
    %v2774 = vrot.slane %v2773, 1
    %v2775 = vmax.f32 %v2773, %v2774
    %v2776 = vmax.f32 %v2775, %v2749
    %v2777 = vsub.f32 %v2767, %v2776
    %v2778 = vmul.f32 %v2777, 1.442695
    %v2779 = vpow.pop %v2778
    %v2780 = vsel %vm1891, %v2779, 0.0
    %v2781 = vrot.slane %v2780, 4
    %v2782 = vadd.f32 %v2780, %v2781
    %v2783 = vrot.slane %v2782, 2
    %v2784 = vadd.f32 %v2782, %v2783
    %v2785 = vrot.slane %v2784, 1
    %v2786 = vadd.f32 %v2784, %v2785
    %v2787 = vsub.f32 %v2749, %v2776
    %v2788 = vmul.f32 %v2787, 1.442695
    %v2789 = vpow.pop %v2788
    %v2790 = vadd.f32 %v2786, %v2789
    %v2791 = vlog2.pop %v2790
    %v2792 = vmul.f32 %v2791, 0.6931472
    %v2793 = vadd.f32 %v2776, %v2792
    %v2794 = vsub.f32 %v2767, %v2793
    %v2795 = vsub.f32 %v2749, %v2793
    %v2796 = vsel %vm1891, %v2794, -inf
    %2797 = vmax.xlane.f32.xlu0 %v2796
    %v2798 = vpop.xlane.xlu0 %2797
    %v2799 = vmax.f32 %v2798, %v2768
    %v2800 = vsub.f32 %v2794, %v2799
    %v2801 = vmul.f32 %v2800, 1.442695
    %v2802 = vpow.pop %v2801
    %v2803 = vsel %vm1891, %v2802, 0.0
    %2804 = vadd.xlane.f32.xlu0 %v2803
    %v2805 = vpop.xlane.xlu0 %2804
    %v2806 = vsub.f32 %v2768, %v2799
    %v2807 = vmul.f32 %v2806, 1.442695
    %v2808 = vpow.pop %v2807
    %v2809 = vadd.f32 %v2805, %v2808
    %v2810 = vlog2.pop %v2809
    %v2811 = vmul.f32 %v2810, 0.6931472
    %v2812 = vadd.f32 %v2799, %v2811
    %v2813 = vsub.f32 %v2794, %v2812
    %v2814 = vsel %vm1891, %v2813, -inf
    %v2815 = vrot.slane %v2814, 4
    %v2816 = vmax.f32 %v2814, %v2815
    %v2817 = vrot.slane %v2816, 2
    %v2818 = vmax.f32 %v2816, %v2817
    %v2819 = vrot.slane %v2818, 1
    %v2820 = vmax.f32 %v2818, %v2819
    %v2821 = vmax.f32 %v2820, %v2795
    %v2822 = vsub.f32 %v2813, %v2821
    %v2823 = vmul.f32 %v2822, 1.442695
    %v2824 = vpow.pop %v2823
    %v2825 = vsel %vm1891, %v2824, 0.0
    %v2826 = vrot.slane %v2825, 4
    %v2827 = vadd.f32 %v2825, %v2826
    %v2828 = vrot.slane %v2827, 2
    %v2829 = vadd.f32 %v2827, %v2828
    %v2830 = vrot.slane %v2829, 1
    %v2831 = vadd.f32 %v2829, %v2830
    %v2832 = vsub.f32 %v2795, %v2821
    %v2833 = vmul.f32 %v2832, 1.442695
    %v2834 = vpow.pop %v2833
    %v2835 = vadd.f32 %v2831, %v2834
    %v2836 = vlog2.pop %v2835
    %v2837 = vmul.f32 %v2836, 0.6931472
    %v2838 = vadd.f32 %v2821, %v2837
    %v2839 = vsub.f32 %v2813, %v2838
    %v2840 = vmul.f32 %v2839, 1.442695
    %v2841 = vpow.pop %v2840
    %v2842 = vpack.c.bf16 %v92, %v92
    %v2843 = vpack.c.bf16 %v94, %v93
    %2844 = vmatprep.subr.bf16.mxu0 0
    %2845 = vmatpush1.bf16.xpose.msra.mxu0 0
    %2846 = vmatprep.subr.bf16.mxu0 0
    %2847 = vmatpush1.bf16.xpose.msra.mxu0 0
    %2848 = vmatprep.subr.bf16.mxu0 0
    %2849 = vmatpush1.bf16.xpose.msra.mxu0 0
    %2850 = vmatprep.subr.bf16.mxu0 0
    %2851 = vmatpush1.bf16.xpose.msra.mxu0 0
    %2852 = vmatprep.subr.bf16.mxu0 0
    %2853 = vmatpush1.bf16.xpose.msra.mxu0 0
    %2854 = vmatprep.subr.bf16.mxu0 0
    %2855 = vmatpush1.bf16.xpose.msra.mxu0 0
    %2856 = vmatprep.subr.bf16.mxu0 0
    %2857 = vmatpush1.bf16.xpose.msra.mxu0 0
    %2858 = vmatprep.subr.bf16.mxu0 0
    %2859 = vmatpush1.bf16.xpose.msra.mxu0 %v2843
    %2860 = vmatprep.subr.bf16.mxu0 0
    %2861 = vmatpush2.bf16.xpose.msra.mxu0 0
    %2862 = vmatprep.subr.bf16.mxu0 0
    %2863 = vmatpush2.bf16.xpose.msra.mxu0 0
    %2864 = vmatprep.subr.bf16.mxu0 0
    %2865 = vmatpush2.bf16.xpose.msra.mxu0 0
    %2866 = vmatprep.subr.bf16.mxu0 0
    %2867 = vmatpush2.bf16.xpose.msra.mxu0 0
    %2868 = vmatprep.subr.bf16.mxu0 0
    %2869 = vmatpush2.bf16.xpose.msra.mxu0 0
    %2870 = vmatprep.subr.bf16.mxu0 0
    %2871 = vmatpush2.bf16.xpose.msra.mxu0 0
    %2872 = vmatprep.subr.bf16.mxu0 0
    %2873 = vmatpush2.bf16.xpose.msra.mxu0 0
    %2874 = vmatprep.subr.bf16.mxu0 0
    %2875 = vmatpush2.bf16.xpose.msra.mxu0 0
    %2876 = vmatprep.mubr.bf16.mxu0 0
    %2877 = vmatmul.mubr.bf16.gmra.mxu0 %v2842
    %v2878 = vpop.f32.mrf.mxu0
    %v2879 = vadd.f32 0.0, %v2878
    %v2880 = vpop.f32.mrf.mxu0
    %v2881 = vpop.f32.mrf.mxu0
    %v2882 = vpop.f32.mrf.mxu0
    %2883 = vdwg.mxu0
    %vm2884 = vcmp.eq.f32.partialorder %v2879, 1.0
    %v2885 = vsel %vm2884, 1, 0
    %v2886 = vcvt.s32.f32 %v2885
    %vm2887 = vcmp.eq.f32.partialorder %v2879, 0.0
    %v2888 = vsel %vm2887, 1, 0
    %v2889 = vcvt.s32.f32 %v2888
    %v2890 = vmul.f32 %v2841, %v2886
    %v2891 = vsel %vm1891, %v2890, -inf
    %2892 = vmax.xlane.f32.xlu0 %v2891
    %v2893 = vpop.xlane.xlu0 %2892
    %vm2894 = vcmp.eq.f32.partialorder %v2890, %v2893
    %v2895 = vsel %vm2894, %v163, 16
    %v2896 = vsel %vm1891, %v2895, 2147483647
    %v2897 = vand.u32 %v2896, 65535
    %v2898 = vshra.s32 %v2896, 16
    %v2899 = vcvt.s32.f32 %v2897
    %v2900 = vcvt.s32.f32 %v2898
    %2901 = vmin.xlane.f32.xlu0 %v2900
    %v2902 = vpop.xlane.xlu0 %2901
    %vm2903 = vcmp.eq.f32.partialorder %v2900, %v2902
    %v2904 = vsel %vm2903, %v2899, inf
    %2905 = vmin.xlane.f32.xlu0 %v2904
    %v2906 = vpop.xlane.xlu0 %2905
    %v2907 = vcvt.f32.s32 %v2906
    %v2908 = vcvt.f32.s32 %v2902
    %v2909 = vshll.u32 %v2908, 16
    %v2910 = vadd.s32 %v2909, %v2907
    %vm2911 = vcmp.eq.s32.totalorder %v163, %v2910
    %v2912 = vsel %vm2911, 1, 0
    %v2913 = vcvt.s32.f32 %v2912
    %v2914 = vmul.f32 %v2841, %v2913
    %v2915 = vsel %vm1891, %v2914, 0.0
    %2916 = vadd.xlane.f32.xlu0 %v2915
    %v2917 = vpop.xlane.xlu0 %2916
    %v2918 = vsub.f32 %v2917, 1.0
    %v2919 = vmul.f32 %v2918, %v2918
    %vm2920 = vcmask 7168
    %v2921 = vsel %vm2920, %v2919, 0.0
    %2922 = vadd.xlane.f32.xlu0 %v2921
    %v2923 = vpop.xlane.xlu0 %2922
    %v2924 = vrot.slane %v2923, 4
    %v2925 = vadd.f32 %v2923, %v2924
    %v2926 = vrot.slane %v2925, 2
    %v2927 = vadd.f32 %v2925, %v2926
    %v2928 = vrot.slane %v2927, 1
    %v2929 = vadd.f32 %v2927, %v2928
    %s2930 = vtos %v2929
    %v2931 = vstv %s2930
    %v2932 = vmul.f32 %v2931, 0.125
    %v2933 = vmul.f32 %v2841, %v2841
    %v2934 = vmul.f32 %v2933, %v2889
    %v2935 = vsel %vm1891, %v2934, 0.0
    %2936 = vadd.xlane.f32.xlu0 %v2935
    %v2937 = vpop.xlane.xlu0 %2936
    %v2938 = vrot.slane %v2937, 4
    %v2939 = vadd.f32 %v2937, %v2938
    %v2940 = vrot.slane %v2939, 2
    %v2941 = vadd.f32 %v2939, %v2940
    %v2942 = vrot.slane %v2941, 1
    %v2943 = vadd.f32 %v2941, %v2942
    %s2944 = vtos %v2943
    %v2945 = vstv %s2944
    %v2946 = vmul.f32 %v2841, %v2889
    %v2947 = vsel %vm1891, %v2946, 0.0
    %2948 = vadd.xlane.f32.xlu0 %v2947
    %v2949 = vpop.xlane.xlu0 %2948
    %v2950 = vrot.slane %v2949, 4
    %v2951 = vadd.f32 %v2949, %v2950
    %v2952 = vrot.slane %v2951, 2
    %v2953 = vadd.f32 %v2951, %v2952
    %v2954 = vrot.slane %v2953, 1
    %v2955 = vadd.f32 %v2953, %v2954
    %s2956 = vtos %v2955
    %v2957 = vstv %s2956
    %v2958 = vmax.f32 %v2957, 1e-12
    %v2959 = vrcp.pop %v2958
    %v2960 = vmul.f32 %v2945, %v2959
    %v2961 = vadd.f32 %v2932, %v2960
    %v2962 = vpack.c.bf16 %v2841, %v2841
    %v2963 = vpack.c.bf16 %v469, %v469
    %vm2964 = vcmask 64512
    %v2966 = vsel %vm2964, %v2963, 0
    %v2969 = vsel %vm482, %v2962, 0
    %2971 = vmatprep.subr.bf16.mxu0 0
    %2972 = vmatpush1.bf16.msra.mxu0 0
    %2973 = vmatprep.subr.bf16.mxu0 0
    %2974 = vmatpush1.bf16.msra.mxu0 0
    %2975 = vmatprep.subr.bf16.mxu0 0
    %2976 = vmatpush1.bf16.msra.mxu0 0
    %2977 = vmatprep.subr.bf16.mxu0 0
    %2978 = vmatpush1.bf16.msra.mxu0 0
    %2979 = vmatprep.subr.bf16.mxu0 0
    %2980 = vmatpush1.bf16.msra.mxu0 0
    %2981 = vmatprep.subr.bf16.mxu0 0
    %2982 = vmatpush1.bf16.msra.mxu0 0
    %2983 = vmatprep.subr.bf16.mxu0 0
    %2984 = vmatpush1.bf16.msra.mxu0 0
    %2985 = vmatprep.subr.bf16.mxu0 0
    %2986 = vmatpush1.bf16.msra.mxu0 %v2969
    %2987 = vmatprep.subr.bf16.mxu0 0
    %2988 = vmatpush2.bf16.msra.mxu0 0
    %2989 = vmatprep.subr.bf16.mxu0 0
    %2990 = vmatpush2.bf16.msra.mxu0 0
    %2991 = vmatprep.subr.bf16.mxu0 0
    %2992 = vmatpush2.bf16.msra.mxu0 0
    %2993 = vmatprep.subr.bf16.mxu0 0
    %2994 = vmatpush2.bf16.msra.mxu0 0
    %2995 = vmatprep.subr.bf16.mxu0 0
    %2996 = vmatpush2.bf16.msra.mxu0 0
    %2997 = vmatprep.subr.bf16.mxu0 0
    %2998 = vmatpush2.bf16.msra.mxu0 0
    %2999 = vmatprep.subr.bf16.mxu0 0
    %3000 = vmatpush2.bf16.msra.mxu0 0
    %3001 = vmatprep.subr.bf16.mxu0 0
    %3002 = vmatpush2.bf16.msra.mxu0 0
    %3003 = vmatprep.mubr.bf16.mxu0 0
    %3004 = vmatmul.mubr.bf16.gmra.mxu0 %v2966
    %v3005 = vpop.f32.mrf.mxu0
    %v3006 = vadd.f32 0.0, %v3005
    %v3007 = vpop.f32.mrf.mxu0
    %v3008 = vpop.f32.mrf.mxu0
    %v3009 = vpop.f32.mrf.mxu0
    %3010 = vdwg.mxu0
    %v3011 = vpack.c.bf16 %v471, %v470
    %3013 = vrot.lane.b32.xlu0 %v3011, 120
    %v3014 = vpop.permute.xlu0 %3013
    %v3016 = vsel %vm1891, %v2962, 0
    %3018 = vmatprep.subr.bf16.mxu0 0
    %3019 = vmatpush1.bf16.msra.mxu0 0
    %3020 = vmatprep.subr.bf16.mxu0 0
    %3021 = vmatpush1.bf16.msra.mxu0 0
    %3022 = vmatprep.subr.bf16.mxu0 0
    %3023 = vmatpush1.bf16.msra.mxu0 0
    %3024 = vmatprep.subr.bf16.mxu0 0
    %3025 = vmatpush1.bf16.msra.mxu0 0
    %3026 = vmatprep.subr.bf16.mxu0 0
    %3027 = vmatpush1.bf16.msra.mxu0 0
    %3028 = vmatprep.subr.bf16.mxu0 0
    %3029 = vmatpush1.bf16.msra.mxu0 0
    %3030 = vmatprep.subr.bf16.mxu0 0
    %3031 = vmatpush1.bf16.msra.mxu0 0
    %3032 = vmatprep.subr.bf16.mxu0 0
    %3033 = vmatpush1.bf16.msra.mxu0 %v3014
    %3034 = vmatprep.subr.bf16.mxu0 0
    %3035 = vmatpush2.bf16.msra.mxu0 0
    %3036 = vmatprep.subr.bf16.mxu0 0
    %3037 = vmatpush2.bf16.msra.mxu0 0
    %3038 = vmatprep.subr.bf16.mxu0 0
    %3039 = vmatpush2.bf16.msra.mxu0 0
    %3040 = vmatprep.subr.bf16.mxu0 0
    %3041 = vmatpush2.bf16.msra.mxu0 0
    %3042 = vmatprep.subr.bf16.mxu0 0
    %3043 = vmatpush2.bf16.msra.mxu0 0
    %3044 = vmatprep.subr.bf16.mxu0 0
    %3045 = vmatpush2.bf16.msra.mxu0 0
    %3046 = vmatprep.subr.bf16.mxu0 0
    %3047 = vmatpush2.bf16.msra.mxu0 0
    %3048 = vmatprep.subr.bf16.mxu0 0
    %3049 = vmatpush2.bf16.msra.mxu0 0
    %3050 = vmatprep.mubr.bf16.mxu0 0
    %3051 = vmatmul.mubr.bf16.gmra.mxu0 %v3016
    %v3052 = vpop.f32.mrf.mxu0
    %v3053 = vadd.f32 0.0, %v3052
    %v3054 = vpop.f32.mrf.mxu0
    %v3055 = vpop.f32.mrf.mxu0
    %v3056 = vpop.f32.mrf.mxu0
    %3057 = vdwg.mxu0
    %v3058 = vsub.f32 %v3006, %v3053
    %v3059 = vand.u32 2147483647, %v3058
    %v3060 = vsel %vm1891, %v3059, 0.0
    %3061 = vadd.xlane.f32.xlu0 %v3060
    %v3062 = vpop.xlane.xlu0 %3061
    %v3063 = vrot.slane %v3062, 4
    %v3064 = vadd.f32 %v3062, %v3063
    %v3065 = vrot.slane %v3064, 2
    %v3066 = vadd.f32 %v3064, %v3065
    %v3067 = vrot.slane %v3066, 1
    %v3068 = vadd.f32 %v3066, %v3067
    %s3069 = vtos %v3068
    %v3070 = vstv %s3069
    %v3071 = vmul.f32 %v3070, 0.0078125
    %vm3072 = vcmp.eq.s32.totalorder %v163, 0
    %vm3073 = vcmp.eq.s32.totalorder %v163, 1
    %vm3074 = vcmp.eq.s32.totalorder %v163, 2
    %v3075 = vsel %vm3074, %v3071, 0.0
    %v3076 = vsel %vm3073, %v2961, %v3075
    %v3077 = vsel %vm3072, %v1782, %v3076
    %3078 = vst [vmem:[%s5] sm:$0x1] %v3077
    // Predicated region
    $region42: #{_fused_call.1} parent=1 // pred_check
      _
    $region43: #{_fused_call.1} parent=1 // pred_check_branch
      %3080 = sbr.rel (0) target = $region45
    $region44: #{_fused_call.1} parent=1 // pred_region
      _
    $region45: #{_fused_call.1} parent=1 // pred_fallthru
      _
    // Predicated region
    $region46: #{_fused_call.1} parent=1 // pred_check
      _
    $region47: #{_fused_call.1} parent=1 // pred_check_branch
      %3082 = sbr.rel (0) target = $region49
    $region48: #{_fused_call.1} parent=1 // pred_region
      _
    $region49: #{_fused_call.1} parent=1 // pred_fallthru
      _
    %3083 = vsyncpa [#allocation3], 1
    %3084 = vsyncpa [#allocation5], 1
    %3085 = vsyncpa [#allocation8], 1

</llo_original>
